<compile_context>
chip_gen: v7x
topology: tpu7x:2x2x1
jax: 0.10.0
libtpu: 0.0.40
codegen_flags: <defaults>
</compile_context>

<pallas_src>
import functools

import jax
import jax.numpy as jnp
import numpy as np
from jax.experimental import pallas as pl
from jax.experimental.pallas import tpu as pltpu

EPS = 1e-5  # nn.BatchNorm2d default


# --------------------------------------------------------------------------------------
# In-kernel helpers
# --------------------------------------------------------------------------------------
def _im2col_3x3(h, op_dtype):
    """Build the (B*H*W, 9*Cin) im2col operand of a 3x3 / stride-1 / pad-1 conv.

    h: (B, H, W, Cin) float32 (already bn+relu'd).  The 9*Cin axis is ordered
    (dh, dw, cin), matching hwio_weights.reshape(9*Cin, Cout).
    All shifts are data movement (XLU roll / concats); the only VPU work is the two
    border masks and ONE f32->op_dtype cast of the 3*Cin-wide slab.
    """
    B, H, W, C = h.shape

    # W (sublane-axis) shifts: XLU roll + border mask, kept in f32 (v5e-safe).
    w_pos = jax.lax.broadcasted_iota(jnp.int32, (1, 1, W, 1), 2)
    cols = []
    for dw in (-1, 0, 1):
        if dw == 0:
            cols.append(h)
        else:
            rolled = pltpu.roll(h, (-dw) % W, axis=2)        # rolled[w] = h[(w + dw) % W]
            valid = jnp.logical_and(w_pos + dw >= 0, w_pos + dw < W)
            cols.append(jnp.where(valid, rolled, 0.0))

    # Single cast of the 3C-wide slab (instead of 9 per-patch casts).
    hw3 = jnp.concatenate(cols, axis=-1).astype(op_dtype)     # (B, H, W, 3C)

    # H (untiled major-axis) shifts: zero-row concats, pure data movement in op_dtype.
    zero_row = jnp.zeros((B, 1, W, 3 * C), op_dtype)
    rows = [
        jnp.concatenate([zero_row, hw3[:, : H - 1]], axis=1),   # dh = -1
        hw3,                                                    # dh =  0
        jnp.concatenate([hw3[:, 1:], zero_row], axis=1),        # dh = +1
    ]
    patches = jnp.concatenate(rows, axis=-1)                    # (B, H, W, 9C)
    return patches.reshape(B * H * W, 9 * C)


def _tile_stats(y):
    """Per-tile per-channel (mean, centered M2) of a (P, C) f32 value."""
    inv_count = 1.0 / jnp.float32(y.shape[0])
    mean = jnp.sum(y, axis=0, keepdims=True) * inv_count        # (1, C)
    m2 = jnp.sum(jnp.square(y - mean), axis=0, keepdims=True)   # (1, C)
    return mean, m2


def _pass1_kernel(x_ref, s1_ref, t1_ref, w1_ref, y1_ref, stats_ref):
    """y1 = conv1(relu(bn1(x))) for one batch tile + per-tile stats of y1 (for bn2)."""
    B, H, W, _ = x_ref.shape
    Cout = w1_ref.shape[-1]
    prec = jax.lax.Precision.HIGHEST if w1_ref.dtype == jnp.float32 else None
    h = jnp.maximum(x_ref[...] * s1_ref[...] + t1_ref[...], 0.0)     # folded bn1 + relu
    patches = _im2col_3x3(h, w1_ref.dtype)                           # (B*H*W, 9*Cin)
    y = jnp.dot(patches, w1_ref[...], preferred_element_type=jnp.float32, precision=prec)
    mean_t, m2_t = _tile_stats(y)                                    # f32, before the cast
    stats_ref[0, 0] = mean_t
    stats_ref[0, 1] = m2_t
    y1_ref[...] = y.reshape(B, H, W, Cout).astype(y1_ref.dtype)      # single store


def _pass2_kernel(y1_ref, x_ref, s2_ref, t2_ref, w2_ref, o_ref, stats_ref):
    """out = conv2(relu(bn2(y1))) + x for one batch tile + per-tile stats of out."""
    B, H, W, C = x_ref.shape
    Cout = w2_ref.shape[-1]
    prec = jax.lax.Precision.HIGHEST if w2_ref.dtype == jnp.float32 else None
    h = jnp.maximum(y1_ref[...].astype(jnp.float32) * s2_ref[...] + t2_ref[...], 0.0)
    patches = _im2col_3x3(h, w2_ref.dtype)
    out = jnp.dot(patches, w2_ref[...], preferred_element_type=jnp.float32, precision=prec)
    out = out + x_ref[...].reshape(B * H * W, C)                     # residual add (f32)
    mean_t, m2_t = _tile_stats(out)        # lets a stacked tower chain bn1 stats
    stats_ref[0, 0] = mean_t
    stats_ref[0, 1] = m2_t
    o_ref[...] = out.reshape(B, H, W, Cout).astype(o_ref.dtype)      # single store


# --------------------------------------------------------------------------------------
# Wrapper helpers
# --------------------------------------------------------------------------------------
def _vmem_limit_bytes():
    """~3/4 of physical VMEM: ~96 MiB on v5e/v6e (128 MiB), ~48 MiB on v7x (64 MiB)."""
    try:
        cap = int(pltpu.get_tpu_info().vmem_capacity_bytes)
        return min(cap * 3 // 4, 96 * 1024 * 1024)
    except Exception:
        return 32 * 1024 * 1024        # conservative default, safe everywhere


def _pick_batch_block(n, h, w, c, vmem_limit):
    """Largest batch tile whose live VMEM fits the budget; prefer a grid of >= 2 steps."""
    # Live per step ~ x (f32, 2x buffered) + y1 (bf16, 2x) + f32 temporaries + the
    # 9C-wide bf16 im2col operand (~4.5x the f32 tile): budget the f32 tile at ~1/20.
    per_image = h * w * c * 4
    cap = max(1, (vmem_limit // 20) // per_image)
    divisors = [d for d in range(1, n + 1) if n % d == 0]
    fitting = [d for d in divisors if d <= cap]
    best = max(fitting) if fitting else 1
    if best == n and n > 1:
        # Keep >= 2 grid steps: double-buffered DMA overlap and both v7x TensorCores busy.
        smaller = [d for d in fitting if n // d >= 2]
        if smaller:
            best = max(smaller)
    return best


def _fold_bn(gamma, beta, mean, var):
    scale = gamma.astype(jnp.float32) * jax.lax.rsqrt(var + EPS)
    shift = beta.astype(jnp.float32) - mean * scale
    return scale, shift


def _combine_tile_stats(stats, per_tile_count):
    """Chan-style combination of per-tile (mean, M2) -> whole-batch (mean, biased var)."""
    tile_mean = stats[:, 0, 0, :]                                   # (G, C)
    tile_m2 = stats[:, 1, 0, :]                                     # (G, C)
    mean = jnp.mean(tile_mean, axis=0)
    total = jnp.float32(per_tile_count * stats.shape[0])
    ss = jnp.sum(tile_m2, axis=0) + per_tile_count * jnp.sum(jnp.square(tile_mean - mean), axis=0)
    return mean, jnp.maximum(ss / total, 0.0)


# --------------------------------------------------------------------------------------
# Main entry points
# --------------------------------------------------------------------------------------
@functools.partial(
    jax.jit, static_argnames=("batch_block", "conv_operand_dtype", "return_out_stats"))
def residual_block_nhwc(x, params, x_stats=None, *, batch_block=None,
                        conv_operand_dtype=jnp.bfloat16, return_out_stats=False):
    """ResidualBlock forward, NHWC in / NHWC out.

    x_stats: optional per-channel (mean, var) of x (e.g. chained from the previous
             block's return_out_stats=True) -- skips the extra HBM pass over x.
    """
    N, H, W, C = x.shape
    w1, w2 = params["w1"], params["w2"]
    Cout = w1.shape[-1]
    if w1.shape != (3, 3, C, Cout) or w2.shape != (3, 3, Cout, Cout):
        raise ValueError("unexpected conv weight shapes")
    if C != Cout:
        # TODO(synk): downsample path (stride-2 conv3x3 + conv1x1/bn_ds shortcut).
        raise NotImplementedError("downsample / C != Cout not implemented")

    vmem_limit = _vmem_limit_bytes()
    bN = batch_block if batch_block is not None else _pick_batch_block(
        N, H, W, max(C, Cout), vmem_limit)
    if N % bN != 0:
        # TODO(synk): ragged last tile (pl.cdiv grid + masked statistics).
        raise ValueError("batch_block must divide the batch size")
    G = N // bN
    P = bN * H * W                                     # pixels per batch tile

    xf = x.astype(jnp.float32)
    op_dtype = jnp.dtype(conv_operand_dtype)

    # ---- bn1 (training-mode batch statistics), folded to per-channel scale/shift
    if x_stats is None:
        mean1 = jnp.mean(xf, axis=(0, 1, 2))
        var1 = jnp.var(xf, axis=(0, 1, 2))             # biased, like BN training mode
    else:
        mean1 = x_stats[0].astype(jnp.float32)
        var1 = x_stats[1].astype(jnp.float32)
    scale1, shift1 = _fold_bn(params["g1"], params["b1"], mean1, var1)

    # Weights flattened to the im2col order (kh, kw, cin) -> rows of (9*Cin, Cout).
    w1k = w1.reshape(9 * C, Cout).astype(op_dtype)
    w2k = w2.reshape(9 * Cout, Cout).astype(op_dtype)

    x_spec = pl.BlockSpec((bN, H, W, C), lambda n: (n, 0, 0, 0))
    y_spec = pl.BlockSpec((bN, H, W, Cout), lambda n: (n, 0, 0, 0))
    chan_c = pl.BlockSpec((1, 1, 1, C), lambda n: (0, 0, 0, 0))
    chan_co = pl.BlockSpec((1, 1, 1, Cout), lambda n: (0, 0, 0, 0))
    w1_spec = pl.BlockSpec((9 * C, Cout), lambda n: (0, 0))
    w2_spec = pl.BlockSpec((9 * Cout, Cout), lambda n: (0, 0))
    stats_spec = pl.BlockSpec((1, 2, 1, Cout), lambda n: (n, 0, 0, 0))

    cparams = pltpu.CompilerParams(
        dimension_semantics=("parallel",),             # batch tiles are independent
        vmem_limit_bytes=vmem_limit,
    )

    # ---- pass 1: y1 = conv1(relu(bn1(x))); y1 stored in op_dtype (bf16 by default)
    y1, stats1 = pl.pallas_call(
        _pass1_kernel,
        grid=(G,),
        in_specs=[x_spec, chan_c, chan_c, w1_spec],
        out_specs=(y_spec, stats_spec),
        out_shape=(
            jax.ShapeDtypeStruct((N, H, W, Cout), op_dtype),
            jax.ShapeDtypeStruct((G, 2, 1, Cout), jnp.float32),
        ),
        compiler_params=cparams,
    )(xf, scale1.reshape(1, 1, 1, C), shift1.reshape(1, 1, 1, C), w1k)

    # ---- bn2 from per-tile (mean, M2) partials (exactly whole-batch statistics)
    mean2, var2 = _combine_tile_stats(stats1, P)
    scale2, shift2 = _fold_bn(params["g2"], params["b2"], mean2, var2)

    # ---- pass 2: out = conv2(relu(bn2(y1))) + x (+ per-tile stats of out for chaining)
    out, stats2 = pl.pallas_call(
        _pass2_kernel,
        grid=(G,),
        in_specs=[y_spec, x_spec, chan_co, chan_co, w2_spec],
        out_specs=(y_spec, stats_spec),
        out_shape=(
            jax.ShapeDtypeStruct((N, H, W, Cout), x.dtype),
            jax.ShapeDtypeStruct((G, 2, 1, Cout), jnp.float32),
        ),
        compiler_params=cparams,
    )(y1, xf, scale2.reshape(1, 1, 1, Cout), shift2.reshape(1, 1, 1, Cout), w2k)

    if return_out_stats:
        return out, _combine_tile_stats(stats2, P)
    return out


def residual_block(x_nchw, params, *, batch_block=None, conv_operand_dtype=jnp.bfloat16):
    """PyTorch-layout (NCHW) entry point. Transposes once in / once out.

    A stacked residual tower should call residual_block_nhwc directly, keep activations
    NHWC across blocks, and chain x_stats / return_out_stats between blocks."""
    x = jnp.transpose(x_nchw, (0, 2, 3, 1))                 # NCHW -> NHWC
    out = residual_block_nhwc(x, params, batch_block=batch_block,
                              conv_operand_dtype=conv_operand_dtype)
    return jnp.transpose(out, (0, 3, 1, 2))                 # NHWC -> NCHW


# --------------------------------------------------------------------------------------
# Pure-JAX reference (same math as the PyTorch forward, training-mode BN)
# --------------------------------------------------------------------------------------
def residual_block_ref(x_nchw, params, conv_dtype=jnp.float32):
    x = jnp.transpose(x_nchw, (0, 2, 3, 1)).astype(jnp.float32)
    prec = jax.lax.Precision.HIGHEST if conv_dtype == jnp.float32 else None

    def bn(v, g, b):
        m = jnp.mean(v, axis=(0, 1, 2))
        var = jnp.var(v, axis=(0, 1, 2))
        return (v - m) * jax.lax.rsqrt(var + EPS) * g + b

    def conv3x3(v, w):
        return jax.lax.conv_general_dilated(
            v.astype(conv_dtype), w.astype(conv_dtype),
            window_strides=(1, 1), padding="SAME",
            dimension_numbers=("NHWC", "HWIO", "NHWC"),
            preferred_element_type=jnp.float32, precision=prec)

    h = jnp.maximum(bn(x, params["g1"], params["b1"]), 0.0)
    h = conv3x3(h, params["w1"])
    h = jnp.maximum(bn(h, params["g2"], params["b2"]), 0.0)
    h = conv3x3(h, params["w2"])
    return jnp.transpose(h + x, (0, 3, 1, 2))


def init_params(key, c_in, c_out):
    k1, k2, k3, k4, k5, k6 = jax.random.split(key, 6)
    return {
        # conv weights stored HWIO (PyTorch stores OIHW; this is the transposed layout)
        "w1": 0.3 * jax.random.normal(k1, (3, 3, c_in, c_out), jnp.float32),
        "w2": 0.3 * jax.random.normal(k2, (3, 3, c_out, c_out), jnp.float32),
        "g1": 1.0 + 0.1 * jax.random.normal(k3, (c_in,), jnp.float32),
        "b1": 0.05 * jax.random.normal(k4, (c_in,), jnp.float32),
        "g2": 1.0 + 0.1 * jax.random.normal(k5, (c_out,), jnp.float32),
        "b2": 0.05 * jax.random.normal(k6, (c_out,), jnp.float32),
    }


if __name__ == "__main__":
    key = jax.random.PRNGKey(0)
    kx, kp = jax.random.split(key)

    N, C, H, W = 2, 4, 16, 16            # small NCHW input, in_channels == out_channels
    x = jax.random.normal(kx, (N, C, H, W), jnp.float32)
    params = init_params(kp, C, C)

    ref_f32 = jax.block_until_ready(residual_block_ref(x, params))
    ref_bf16 = jax.block_until_ready(residual_block_ref(x, params, conv_dtype=jnp.bfloat16))

    # Production path: bf16 matmul operands + bf16 y1 intermediate, auto batch tiling
    # (heuristic picks bN=1 here -> grid of 2 "parallel" steps).
    out = jax.block_until_ready(residual_block(x, params))
    assert out.shape == (N, C, H, W)
    np.testing.assert_allclose(np.asarray(out), np.asarray(ref_bf16), rtol=5e-2, atol=5e-2)
    np.testing.assert_allclose(np.asarray(out), np.asarray(ref_f32), rtol=1.5e-1, atol=1.5e-1)

    # f32-operand path: semantic parity check against the full-precision module math.
    out_f32 = jax.block_until_ready(
        residual_block(x, params, batch_block=1, conv_operand_dtype=jnp.float32))
    np.testing.assert_allclose(np.asarray(out_f32), np.asarray(ref_f32), rtol=1e-3, atol=1e-3)

    print("KERNEL_OK")
</pallas_src>

<mosaic_0001>
module attributes {stable_mosaic.version = 11 : i64} {
  func.func @_pass1_kernel(%arg0: i32, %arg1: memref<1x16x16x4xf32, #tpu.memory_space<vmem>>, %arg2: memref<1x1x1x4xf32, #tpu.memory_space<vmem>>, %arg3: memref<1x1x1x4xf32, #tpu.memory_space<vmem>>, %arg4: memref<36x4xbf16, #tpu.memory_space<vmem>>, %arg5: memref<1x16x16x4xbf16, #tpu.memory_space<vmem>>, %arg6: memref<1x2x1x4xf32, #tpu.memory_space<vmem>>) attributes {dimension_semantics = [#tpu.dimension_semantics<parallel>], iteration_bounds = array<i64: 2>, scalar_prefetch = 0 : i64, scratch_operands = 0 : i64, tpu.core_type = #tpu.core_type<tc>, window_params = [{transform_indices = @transform_0, window_bounds = array<i64: 1, 16, 16, 4>}, {pipeline_mode = #tpu.pipeline_mode<synchronous>, transform_indices = @transform_1, window_bounds = array<i64: 1, 1, 1, 4>}, {pipeline_mode = #tpu.pipeline_mode<synchronous>, transform_indices = @transform_2, window_bounds = array<i64: 1, 1, 1, 4>}, {pipeline_mode = #tpu.pipeline_mode<synchronous>, transform_indices = @transform_3, window_bounds = array<i64: 36, 4>}, {transform_indices = @transform_4, window_bounds = array<i64: 1, 16, 16, 4>}, {transform_indices = @transform_5, window_bounds = array<i64: 1, 2, 1, 4>}]} {
    %c0 = arith.constant 0 : index
    %c0_0 = arith.constant 0 : index
    %c0_1 = arith.constant 0 : index
    %c0_2 = arith.constant 0 : index
    %0 = vector.load %arg1[%c0, %c0_0, %c0_1, %c0_2] : memref<1x16x16x4xf32, #tpu.memory_space<vmem>>, vector<1x16x16x4xf32>
    %c0_3 = arith.constant 0 : index
    %c0_4 = arith.constant 0 : index
    %c0_5 = arith.constant 0 : index
    %c0_6 = arith.constant 0 : index
    %1 = vector.load %arg2[%c0_3, %c0_4, %c0_5, %c0_6] : memref<1x1x1x4xf32, #tpu.memory_space<vmem>>, vector<1x1x1x4xf32>
    %2 = vector.broadcast %1 : vector<1x1x1x4xf32> to vector<1x16x16x4xf32>
    %3 = arith.mulf %0, %2 : vector<1x16x16x4xf32>
    %c0_7 = arith.constant 0 : index
    %c0_8 = arith.constant 0 : index
    %c0_9 = arith.constant 0 : index
    %c0_10 = arith.constant 0 : index
    %4 = vector.load %arg3[%c0_7, %c0_8, %c0_9, %c0_10] : memref<1x1x1x4xf32, #tpu.memory_space<vmem>>, vector<1x1x1x4xf32>
    %5 = vector.broadcast %4 : vector<1x1x1x4xf32> to vector<1x16x16x4xf32>
    %6 = arith.addf %3, %5 : vector<1x16x16x4xf32>
    %cst = arith.constant 0.000000e+00 : f32
    %7 = vector.broadcast %cst : f32 to vector<1x16x16x4xf32>
    %8 = arith.maximumf %6, %7 : vector<1x16x16x4xf32>
    %9 = tpu.iota {dimensions = array<i32: 2>} : vector<1x1x16x1xi32>
    %c1_i32 = arith.constant 1 : i32
    %10 = tpu.dynamic_rotate %8 by %c1_i32 dim 2 : vector<1x16x16x4xf32>, i32 -> vector<1x16x16x4xf32>
    %c-1_i32 = arith.constant -1 : i32
    %11 = vector.broadcast %c-1_i32 : i32 to vector<1x1x16x1xi32>
    %12 = arith.addi %9, %11 : vector<1x1x16x1xi32>
    %c0_i32 = arith.constant 0 : i32
    %13 = vector.broadcast %c0_i32 : i32 to vector<1x1x16x1xi32>
    %14 = arith.cmpi sge, %12, %13 : vector<1x1x16x1xi32>
    %c-1_i32_11 = arith.constant -1 : i32
    %15 = vector.broadcast %c-1_i32_11 : i32 to vector<1x1x16x1xi32>
    %16 = arith.addi %9, %15 : vector<1x1x16x1xi32>
    %c16_i32 = arith.constant 16 : i32
    %17 = vector.broadcast %c16_i32 : i32 to vector<1x1x16x1xi32>
    %18 = arith.cmpi slt, %16, %17 : vector<1x1x16x1xi32>
    %19 = arith.andi %14, %18 : vector<1x1x16x1xi1>
    %cst_12 = arith.constant 0.000000e+00 : f32
    %20 = vector.shape_cast %19 : vector<1x1x16x1xi1> to vector<1x1x16x1xi1>
    %21 = vector.broadcast %20 : vector<1x1x16x1xi1> to vector<1x16x16x4xi1>
    %22 = vector.broadcast %cst_12 : f32 to vector<1x16x16x4xf32>
    %23 = arith.select %21, %10, %22 : vector<1x16x16x4xi1>, vector<1x16x16x4xf32>
    %c15_i32 = arith.constant 15 : i32
    %24 = tpu.dynamic_rotate %8 by %c15_i32 dim 2 : vector<1x16x16x4xf32>, i32 -> vector<1x16x16x4xf32>
    %c1_i32_13 = arith.constant 1 : i32
    %25 = vector.broadcast %c1_i32_13 : i32 to vector<1x1x16x1xi32>
    %26 = arith.addi %9, %25 : vector<1x1x16x1xi32>
    %c0_i32_14 = arith.constant 0 : i32
    %27 = vector.broadcast %c0_i32_14 : i32 to vector<1x1x16x1xi32>
    %28 = arith.cmpi sge, %26, %27 : vector<1x1x16x1xi32>
    %c1_i32_15 = arith.constant 1 : i32
    %29 = vector.broadcast %c1_i32_15 : i32 to vector<1x1x16x1xi32>
    %30 = arith.addi %9, %29 : vector<1x1x16x1xi32>
    %c16_i32_16 = arith.constant 16 : i32
    %31 = vector.broadcast %c16_i32_16 : i32 to vector<1x1x16x1xi32>
    %32 = arith.cmpi slt, %30, %31 : vector<1x1x16x1xi32>
    %33 = arith.andi %28, %32 : vector<1x1x16x1xi1>
    %cst_17 = arith.constant 0.000000e+00 : f32
    %34 = vector.shape_cast %33 : vector<1x1x16x1xi1> to vector<1x1x16x1xi1>
    %35 = vector.broadcast %34 : vector<1x1x16x1xi1> to vector<1x16x16x4xi1>
    %36 = vector.broadcast %cst_17 : f32 to vector<1x16x16x4xf32>
    %37 = arith.select %35, %24, %36 : vector<1x16x16x4xi1>, vector<1x16x16x4xf32>
    %38 = tpu.concatenate %23, %8, %37 in 3 : vector<1x16x16x4xf32>, vector<1x16x16x4xf32>, vector<1x16x16x4xf32> -> vector<1x16x16x12xf32>
    %39 = arith.truncf %38 : vector<1x16x16x12xf32> to vector<1x16x16x12xbf16>
    %cst_18 = arith.constant 0.000000e+00 : bf16
    %40 = vector.broadcast %cst_18 : bf16 to vector<1x1x16x12xbf16>
    %41 = vector.extract_strided_slice %39 {offsets = [0, 0, 0, 0], sizes = [1, 15, 16, 12], strides = [1, 1, 1, 1]} : vector<1x16x16x12xbf16> to vector<1x15x16x12xbf16>
    %42 = tpu.concatenate %40, %41 in 1 : vector<1x1x16x12xbf16>, vector<1x15x16x12xbf16> -> vector<1x16x16x12xbf16>
    %43 = vector.extract_strided_slice %39 {offsets = [0, 1, 0, 0], sizes = [1, 15, 16, 12], strides = [1, 1, 1, 1]} : vector<1x16x16x12xbf16> to vector<1x15x16x12xbf16>
    %44 = tpu.concatenate %43, %40 in 1 : vector<1x15x16x12xbf16>, vector<1x1x16x12xbf16> -> vector<1x16x16x12xbf16>
    %45 = tpu.concatenate %42, %39, %44 in 3 : vector<1x16x16x12xbf16>, vector<1x16x16x12xbf16>, vector<1x16x16x12xbf16> -> vector<1x16x16x36xbf16>
    %46 = vector.shape_cast %45 : vector<1x16x16x36xbf16> to vector<256x36xbf16>
    %c0_19 = arith.constant 0 : index
    %c0_20 = arith.constant 0 : index
    %47 = vector.load %arg4[%c0_19, %c0_20] : memref<36x4xbf16, #tpu.memory_space<vmem>>, vector<36x4xbf16>
    %cst_21 = arith.constant dense<0.000000e+00> : vector<256x4xf32>
    %48 = tpu.matmul %46, %47, %cst_21 {dimension_numbers = #tpu.dot_dimension_numbers<[1], [0], [0], [1], [0, 0, 1, 1], [], []>} : vector<256x36xbf16>, vector<36x4xbf16>, vector<256x4xf32> -> vector<256x4xf32>
    %cst_22 = arith.constant 1.000000e+00 : f32
    %cst_23 = arith.constant 2.560000e+02 : f32
    %49 = arith.divf %cst_22, %cst_23 : f32
    %cst_24 = arith.constant dense<0.000000e+00> : vector<4xf32>
    %50 = vector.multi_reduction <add>, %48, %cst_24 [0] : vector<256x4xf32> to vector<4xf32>
    %51 = vector.shape_cast %50 : vector<4xf32> to vector<1x4xf32>
    %52 = vector.broadcast %49 : f32 to vector<1x4xf32>
    %53 = arith.mulf %51, %52 : vector<1x4xf32>
    %54 = vector.broadcast %53 : vector<1x4xf32> to vector<256x4xf32>
    %55 = arith.subf %48, %54 : vector<256x4xf32>
    %56 = arith.mulf %55, %55 : vector<256x4xf32>
    %cst_25 = arith.constant dense<0.000000e+00> : vector<4xf32>
    %57 = vector.multi_reduction <add>, %56, %cst_25 [0] : vector<256x4xf32> to vector<4xf32>
    %58 = vector.shape_cast %57 : vector<4xf32> to vector<1x4xf32>
    %c0_26 = arith.constant 0 : index
    %c0_27 = arith.constant 0 : index
    %c0_28 = arith.constant 0 : index
    %c0_29 = arith.constant 0 : index
    %59 = vector.load %arg6[%c0_26, %c0_27, %c0_28, %c0_29] : memref<1x2x1x4xf32, #tpu.memory_space<vmem>>, vector<1x1x1x4xf32>
    %60 = vector.shape_cast %59 : vector<1x1x1x4xf32> to vector<1x4xf32>
    %61 = vector.shape_cast %53 : vector<1x4xf32> to vector<1x1x1x4xf32>
    tpu.vector_store %arg6[%c0_26, %c0_27, %c0_28, %c0_29], %61 {strides = array<i32>} : memref<1x2x1x4xf32, #tpu.memory_space<vmem>>, vector<1x1x1x4xf32>,
    %c0_30 = arith.constant 0 : index
    %c1 = arith.constant 1 : index
    %c0_31 = arith.constant 0 : index
    %c0_32 = arith.constant 0 : index
    %62 = vector.load %arg6[%c0_30, %c1, %c0_31, %c0_32] : memref<1x2x1x4xf32, #tpu.memory_space<vmem>>, vector<1x1x1x4xf32>
    %63 = vector.shape_cast %62 : vector<1x1x1x4xf32> to vector<1x4xf32>
    %64 = vector.shape_cast %58 : vector<1x4xf32> to vector<1x1x1x4xf32>
    tpu.vector_store %arg6[%c0_30, %c1, %c0_31, %c0_32], %64 {strides = array<i32>} : memref<1x2x1x4xf32, #tpu.memory_space<vmem>>, vector<1x1x1x4xf32>,
    %65 = vector.shape_cast %48 : vector<256x4xf32> to vector<1x16x16x4xf32>
    %66 = arith.truncf %65 : vector<1x16x16x4xf32> to vector<1x16x16x4xbf16>
    %c0_33 = arith.constant 0 : index
    %c0_34 = arith.constant 0 : index
    %c0_35 = arith.constant 0 : index
    %c0_36 = arith.constant 0 : index
    %67 = vector.load %arg5[%c0_33, %c0_34, %c0_35, %c0_36] : memref<1x16x16x4xbf16, #tpu.memory_space<vmem>>, vector<1x16x16x4xbf16>
    tpu.vector_store %arg5[%c0_33, %c0_34, %c0_35, %c0_36], %66 {strides = array<i32>} : memref<1x16x16x4xbf16, #tpu.memory_space<vmem>>, vector<1x16x16x4xbf16>,
    return
  }
  func.func @transform_0(%arg0: i32) -> (i32, i32, i32, i32) {
    %c0_i32 = arith.constant 0 : i32
    %c0_i32_0 = arith.constant 0 : i32
    %c0_i32_1 = arith.constant 0 : i32
    %c0_i32_2 = arith.constant 0 : i32
    return %arg0, %c0_i32, %c0_i32_0, %c0_i32_1 : i32, i32, i32, i32
  }
  func.func @transform_1(%arg0: i32) -> (i32, i32, i32, i32) {
    %c0_i32 = arith.constant 0 : i32
    %c0_i32_0 = arith.constant 0 : i32
    %c0_i32_1 = arith.constant 0 : i32
    %c0_i32_2 = arith.constant 0 : i32
    %c0_i32_3 = arith.constant 0 : i32
    return %c0_i32, %c0_i32_0, %c0_i32_1, %c0_i32_2 : i32, i32, i32, i32
  }
  func.func @transform_2(%arg0: i32) -> (i32, i32, i32, i32) {
    %c0_i32 = arith.constant 0 : i32
    %c0_i32_0 = arith.constant 0 : i32
    %c0_i32_1 = arith.constant 0 : i32
    %c0_i32_2 = arith.constant 0 : i32
    %c0_i32_3 = arith.constant 0 : i32
    return %c0_i32, %c0_i32_0, %c0_i32_1, %c0_i32_2 : i32, i32, i32, i32
  }
  func.func @transform_3(%arg0: i32) -> (i32, i32) {
    %c0_i32 = arith.constant 0 : i32
    %c0_i32_0 = arith.constant 0 : i32
    %c0_i32_1 = arith.constant 0 : i32
    return %c0_i32, %c0_i32_0 : i32, i32
  }
  func.func @transform_4(%arg0: i32) -> (i32, i32, i32, i32) {
    %c0_i32 = arith.constant 0 : i32
    %c0_i32_0 = arith.constant 0 : i32
    %c0_i32_1 = arith.constant 0 : i32
    %c0_i32_2 = arith.constant 0 : i32
    return %arg0, %c0_i32, %c0_i32_0, %c0_i32_1 : i32, i32, i32, i32
  }
  func.func @transform_5(%arg0: i32) -> (i32, i32, i32, i32) {
    %c0_i32 = arith.constant 0 : i32
    %c0_i32_0 = arith.constant 0 : i32
    %c0_i32_1 = arith.constant 0 : i32
    %c0_i32_2 = arith.constant 0 : i32
    return %arg0, %c0_i32, %c0_i32_0, %c0_i32_1 : i32, i32, i32, i32
  }
}

module attributes {stable_mosaic.version = 11 : i64} {
  func.func @_pass2_kernel(%arg0: i32, %arg1: memref<1x16x16x4xbf16, #tpu.memory_space<vmem>>, %arg2: memref<1x16x16x4xf32, #tpu.memory_space<vmem>>, %arg3: memref<1x1x1x4xf32, #tpu.memory_space<vmem>>, %arg4: memref<1x1x1x4xf32, #tpu.memory_space<vmem>>, %arg5: memref<36x4xbf16, #tpu.memory_space<vmem>>, %arg6: memref<1x16x16x4xf32, #tpu.memory_space<vmem>>, %arg7: memref<1x2x1x4xf32, #tpu.memory_space<vmem>>) attributes {dimension_semantics = [#tpu.dimension_semantics<parallel>], iteration_bounds = array<i64: 2>, scalar_prefetch = 0 : i64, scratch_operands = 0 : i64, tpu.core_type = #tpu.core_type<tc>, window_params = [{transform_indices = @transform_0, window_bounds = array<i64: 1, 16, 16, 4>}, {transform_indices = @transform_1, window_bounds = array<i64: 1, 16, 16, 4>}, {pipeline_mode = #tpu.pipeline_mode<synchronous>, transform_indices = @transform_2, window_bounds = array<i64: 1, 1, 1, 4>}, {pipeline_mode = #tpu.pipeline_mode<synchronous>, transform_indices = @transform_3, window_bounds = array<i64: 1, 1, 1, 4>}, {pipeline_mode = #tpu.pipeline_mode<synchronous>, transform_indices = @transform_4, window_bounds = array<i64: 36, 4>}, {transform_indices = @transform_5, window_bounds = array<i64: 1, 16, 16, 4>}, {transform_indices = @transform_6, window_bounds = array<i64: 1, 2, 1, 4>}]} {
    %c0 = arith.constant 0 : index
    %c0_0 = arith.constant 0 : index
    %c0_1 = arith.constant 0 : index
    %c0_2 = arith.constant 0 : index
    %0 = vector.load %arg1[%c0, %c0_0, %c0_1, %c0_2] : memref<1x16x16x4xbf16, #tpu.memory_space<vmem>>, vector<1x16x16x4xbf16>
    %1 = arith.extf %0 : vector<1x16x16x4xbf16> to vector<1x16x16x4xf32>
    %c0_3 = arith.constant 0 : index
    %c0_4 = arith.constant 0 : index
    %c0_5 = arith.constant 0 : index
    %c0_6 = arith.constant 0 : index
    %2 = vector.load %arg3[%c0_3, %c0_4, %c0_5, %c0_6] : memref<1x1x1x4xf32, #tpu.memory_space<vmem>>, vector<1x1x1x4xf32>
    %3 = vector.broadcast %2 : vector<1x1x1x4xf32> to vector<1x16x16x4xf32>
    %4 = arith.mulf %1, %3 : vector<1x16x16x4xf32>
    %c0_7 = arith.constant 0 : index
    %c0_8 = arith.constant 0 : index
    %c0_9 = arith.constant 0 : index
    %c0_10 = arith.constant 0 : index
    %5 = vector.load %arg4[%c0_7, %c0_8, %c0_9, %c0_10] : memref<1x1x1x4xf32, #tpu.memory_space<vmem>>, vector<1x1x1x4xf32>
    %6 = vector.broadcast %5 : vector<1x1x1x4xf32> to vector<1x16x16x4xf32>
    %7 = arith.addf %4, %6 : vector<1x16x16x4xf32>
    %cst = arith.constant 0.000000e+00 : f32
    %8 = vector.broadcast %cst : f32 to vector<1x16x16x4xf32>
    %9 = arith.maximumf %7, %8 : vector<1x16x16x4xf32>
    %10 = tpu.iota {dimensions = array<i32: 2>} : vector<1x1x16x1xi32>
    %c1_i32 = arith.constant 1 : i32
    %11 = tpu.dynamic_rotate %9 by %c1_i32 dim 2 : vector<1x16x16x4xf32>, i32 -> vector<1x16x16x4xf32>
    %c-1_i32 = arith.constant -1 : i32
    %12 = vector.broadcast %c-1_i32 : i32 to vector<1x1x16x1xi32>
    %13 = arith.addi %10, %12 : vector<1x1x16x1xi32>
    %c0_i32 = arith.constant 0 : i32
    %14 = vector.broadcast %c0_i32 : i32 to vector<1x1x16x1xi32>
    %15 = arith.cmpi sge, %13, %14 : vector<1x1x16x1xi32>
    %c-1_i32_11 = arith.constant -1 : i32
    %16 = vector.broadcast %c-1_i32_11 : i32 to vector<1x1x16x1xi32>
    %17 = arith.addi %10, %16 : vector<1x1x16x1xi32>
    %c16_i32 = arith.constant 16 : i32
    %18 = vector.broadcast %c16_i32 : i32 to vector<1x1x16x1xi32>
    %19 = arith.cmpi slt, %17, %18 : vector<1x1x16x1xi32>
    %20 = arith.andi %15, %19 : vector<1x1x16x1xi1>
    %cst_12 = arith.constant 0.000000e+00 : f32
    %21 = vector.shape_cast %20 : vector<1x1x16x1xi1> to vector<1x1x16x1xi1>
    %22 = vector.broadcast %21 : vector<1x1x16x1xi1> to vector<1x16x16x4xi1>
    %23 = vector.broadcast %cst_12 : f32 to vector<1x16x16x4xf32>
    %24 = arith.select %22, %11, %23 : vector<1x16x16x4xi1>, vector<1x16x16x4xf32>
    %c15_i32 = arith.constant 15 : i32
    %25 = tpu.dynamic_rotate %9 by %c15_i32 dim 2 : vector<1x16x16x4xf32>, i32 -> vector<1x16x16x4xf32>
    %c1_i32_13 = arith.constant 1 : i32
    %26 = vector.broadcast %c1_i32_13 : i32 to vector<1x1x16x1xi32>
    %27 = arith.addi %10, %26 : vector<1x1x16x1xi32>
    %c0_i32_14 = arith.constant 0 : i32
    %28 = vector.broadcast %c0_i32_14 : i32 to vector<1x1x16x1xi32>
    %29 = arith.cmpi sge, %27, %28 : vector<1x1x16x1xi32>
    %c1_i32_15 = arith.constant 1 : i32
    %30 = vector.broadcast %c1_i32_15 : i32 to vector<1x1x16x1xi32>
    %31 = arith.addi %10, %30 : vector<1x1x16x1xi32>
    %c16_i32_16 = arith.constant 16 : i32
    %32 = vector.broadcast %c16_i32_16 : i32 to vector<1x1x16x1xi32>
    %33 = arith.cmpi slt, %31, %32 : vector<1x1x16x1xi32>
    %34 = arith.andi %29, %33 : vector<1x1x16x1xi1>
    %cst_17 = arith.constant 0.000000e+00 : f32
    %35 = vector.shape_cast %34 : vector<1x1x16x1xi1> to vector<1x1x16x1xi1>
    %36 = vector.broadcast %35 : vector<1x1x16x1xi1> to vector<1x16x16x4xi1>
    %37 = vector.broadcast %cst_17 : f32 to vector<1x16x16x4xf32>
    %38 = arith.select %36, %25, %37 : vector<1x16x16x4xi1>, vector<1x16x16x4xf32>
    %39 = tpu.concatenate %24, %9, %38 in 3 : vector<1x16x16x4xf32>, vector<1x16x16x4xf32>, vector<1x16x16x4xf32> -> vector<1x16x16x12xf32>
    %40 = arith.truncf %39 : vector<1x16x16x12xf32> to vector<1x16x16x12xbf16>
    %cst_18 = arith.constant 0.000000e+00 : bf16
    %41 = vector.broadcast %cst_18 : bf16 to vector<1x1x16x12xbf16>
    %42 = vector.extract_strided_slice %40 {offsets = [0, 0, 0, 0], sizes = [1, 15, 16, 12], strides = [1, 1, 1, 1]} : vector<1x16x16x12xbf16> to vector<1x15x16x12xbf16>
    %43 = tpu.concatenate %41, %42 in 1 : vector<1x1x16x12xbf16>, vector<1x15x16x12xbf16> -> vector<1x16x16x12xbf16>
    %44 = vector.extract_strided_slice %40 {offsets = [0, 1, 0, 0], sizes = [1, 15, 16, 12], strides = [1, 1, 1, 1]} : vector<1x16x16x12xbf16> to vector<1x15x16x12xbf16>
    %45 = tpu.concatenate %44, %41 in 1 : vector<1x15x16x12xbf16>, vector<1x1x16x12xbf16> -> vector<1x16x16x12xbf16>
    %46 = tpu.concatenate %43, %40, %45 in 3 : vector<1x16x16x12xbf16>, vector<1x16x16x12xbf16>, vector<1x16x16x12xbf16> -> vector<1x16x16x36xbf16>
    %47 = vector.shape_cast %46 : vector<1x16x16x36xbf16> to vector<256x36xbf16>
    %c0_19 = arith.constant 0 : index
    %c0_20 = arith.constant 0 : index
    %48 = vector.load %arg5[%c0_19, %c0_20] : memref<36x4xbf16, #tpu.memory_space<vmem>>, vector<36x4xbf16>
    %cst_21 = arith.constant dense<0.000000e+00> : vector<256x4xf32>
    %49 = tpu.matmul %47, %48, %cst_21 {dimension_numbers = #tpu.dot_dimension_numbers<[1], [0], [0], [1], [0, 0, 1, 1], [], []>} : vector<256x36xbf16>, vector<36x4xbf16>, vector<256x4xf32> -> vector<256x4xf32>
    %c0_22 = arith.constant 0 : index
    %c0_23 = arith.constant 0 : index
    %c0_24 = arith.constant 0 : index
    %c0_25 = arith.constant 0 : index
    %50 = vector.load %arg2[%c0_22, %c0_23, %c0_24, %c0_25] : memref<1x16x16x4xf32, #tpu.memory_space<vmem>>, vector<1x16x16x4xf32>
    %51 = vector.shape_cast %50 : vector<1x16x16x4xf32> to vector<256x4xf32>
    %52 = arith.addf %49, %51 : vector<256x4xf32>
    %cst_26 = arith.constant 1.000000e+00 : f32
    %cst_27 = arith.constant 2.560000e+02 : f32
    %53 = arith.divf %cst_26, %cst_27 : f32
    %cst_28 = arith.constant dense<0.000000e+00> : vector<4xf32>
    %54 = vector.multi_reduction <add>, %52, %cst_28 [0] : vector<256x4xf32> to vector<4xf32>
    %55 = vector.shape_cast %54 : vector<4xf32> to vector<1x4xf32>
    %56 = vector.broadcast %53 : f32 to vector<1x4xf32>
    %57 = arith.mulf %55, %56 : vector<1x4xf32>
    %58 = vector.broadcast %57 : vector<1x4xf32> to vector<256x4xf32>
    %59 = arith.subf %52, %58 : vector<256x4xf32>
    %60 = arith.mulf %59, %59 : vector<256x4xf32>
    %cst_29 = arith.constant dense<0.000000e+00> : vector<4xf32>
    %61 = vector.multi_reduction <add>, %60, %cst_29 [0] : vector<256x4xf32> to vector<4xf32>
    %62 = vector.shape_cast %61 : vector<4xf32> to vector<1x4xf32>
    %c0_30 = arith.constant 0 : index
    %c0_31 = arith.constant 0 : index
    %c0_32 = arith.constant 0 : index
    %c0_33 = arith.constant 0 : index
    %63 = vector.load %arg7[%c0_30, %c0_31, %c0_32, %c0_33] : memref<1x2x1x4xf32, #tpu.memory_space<vmem>>, vector<1x1x1x4xf32>
    %64 = vector.shape_cast %63 : vector<1x1x1x4xf32> to vector<1x4xf32>
    %65 = vector.shape_cast %57 : vector<1x4xf32> to vector<1x1x1x4xf32>
    tpu.vector_store %arg7[%c0_30, %c0_31, %c0_32, %c0_33], %65 {strides = array<i32>} : memref<1x2x1x4xf32, #tpu.memory_space<vmem>>, vector<1x1x1x4xf32>,
    %c0_34 = arith.constant 0 : index
    %c1 = arith.constant 1 : index
    %c0_35 = arith.constant 0 : index
    %c0_36 = arith.constant 0 : index
    %66 = vector.load %arg7[%c0_34, %c1, %c0_35, %c0_36] : memref<1x2x1x4xf32, #tpu.memory_space<vmem>>, vector<1x1x1x4xf32>
    %67 = vector.shape_cast %66 : vector<1x1x1x4xf32> to vector<1x4xf32>
    %68 = vector.shape_cast %62 : vector<1x4xf32> to vector<1x1x1x4xf32>
    tpu.vector_store %arg7[%c0_34, %c1, %c0_35, %c0_36], %68 {strides = array<i32>} : memref<1x2x1x4xf32, #tpu.memory_space<vmem>>, vector<1x1x1x4xf32>,
    %69 = vector.shape_cast %52 : vector<256x4xf32> to vector<1x16x16x4xf32>
    %c0_37 = arith.constant 0 : index
    %c0_38 = arith.constant 0 : index
    %c0_39 = arith.constant 0 : index
    %c0_40 = arith.constant 0 : index
    %70 = vector.load %arg6[%c0_37, %c0_38, %c0_39, %c0_40] : memref<1x16x16x4xf32, #tpu.memory_space<vmem>>, vector<1x16x16x4xf32>
    tpu.vector_store %arg6[%c0_37, %c0_38, %c0_39, %c0_40], %69 {strides = array<i32>} : memref<1x16x16x4xf32, #tpu.memory_space<vmem>>, vector<1x16x16x4xf32>,
    return
  }
  func.func @transform_0(%arg0: i32) -> (i32, i32, i32, i32) {
    %c0_i32 = arith.constant 0 : i32
    %c0_i32_0 = arith.constant 0 : i32
    %c0_i32_1 = arith.constant 0 : i32
    %c0_i32_2 = arith.constant 0 : i32
    return %arg0, %c0_i32, %c0_i32_0, %c0_i32_1 : i32, i32, i32, i32
  }
  func.func @transform_1(%arg0: i32) -> (i32, i32, i32, i32) {
    %c0_i32 = arith.constant 0 : i32
    %c0_i32_0 = arith.constant 0 : i32
    %c0_i32_1 = arith.constant 0 : i32
    %c0_i32_2 = arith.constant 0 : i32
    return %arg0, %c0_i32, %c0_i32_0, %c0_i32_1 : i32, i32, i32, i32
  }
  func.func @transform_2(%arg0: i32) -> (i32, i32, i32, i32) {
    %c0_i32 = arith.constant 0 : i32
    %c0_i32_0 = arith.constant 0 : i32
    %c0_i32_1 = arith.constant 0 : i32
    %c0_i32_2 = arith.constant 0 : i32
    %c0_i32_3 = arith.constant 0 : i32
    return %c0_i32, %c0_i32_0, %c0_i32_1, %c0_i32_2 : i32, i32, i32, i32
  }
  func.func @transform_3(%arg0: i32) -> (i32, i32, i32, i32) {
    %c0_i32 = arith.constant 0 : i32
    %c0_i32_0 = arith.constant 0 : i32
    %c0_i32_1 = arith.constant 0 : i32
    %c0_i32_2 = arith.constant 0 : i32
    %c0_i32_3 = arith.constant 0 : i32
    return %c0_i32, %c0_i32_0, %c0_i32_1, %c0_i32_2 : i32, i32, i32, i32
  }
  func.func @transform_4(%arg0: i32) -> (i32, i32) {
    %c0_i32 = arith.constant 0 : i32
    %c0_i32_0 = arith.constant 0 : i32
    %c0_i32_1 = arith.constant 0 : i32
    return %c0_i32, %c0_i32_0 : i32, i32
  }
  func.func @transform_5(%arg0: i32) -> (i32, i32, i32, i32) {
    %c0_i32 = arith.constant 0 : i32
    %c0_i32_0 = arith.constant 0 : i32
    %c0_i32_1 = arith.constant 0 : i32
    %c0_i32_2 = arith.constant 0 : i32
    return %arg0, %c0_i32, %c0_i32_0, %c0_i32_1 : i32, i32, i32, i32
  }
  func.func @transform_6(%arg0: i32) -> (i32, i32, i32, i32) {
    %c0_i32 = arith.constant 0 : i32
    %c0_i32_0 = arith.constant 0 : i32
    %c0_i32_1 = arith.constant 0 : i32
    %c0_i32_2 = arith.constant 0 : i32
    return %arg0, %c0_i32, %c0_i32_0, %c0_i32_1 : i32, i32, i32, i32
  }
}

</mosaic_0001>

<llo_original>
// kernel: residual_block_nhwc.3
$region0: #{residual_block_nhwc.3}
  #allocation0 [shape = 'u32[]', space=smem, size = 0x4, offset = 0x4, fixed_abs, tag = 'smem constant byte address 0x4 - core index']
  #allocation1 [shape = 'u32[144,128]{1,0:T(1,128)}', space=vmem, size = 0x12000, scoped, tag = 'internal scratch']
  %s0 = inlined_call_operand.vmem [shape: bf16[2,16,16,4], index: 0, kind: input, shape index: {}]
  %s1 = inlined_call_operand.vmem [shape: f32[2,16,16,4], index: 1, kind: input, shape index: {}]
  %s2 = inlined_call_operand.vmem [shape: f32[1,1,1,4], index: 2, kind: input, shape index: {}]
  %s3 = inlined_call_operand.vmem [shape: f32[1,1,1,4], index: 3, kind: input, shape index: {}]
  %s4 = inlined_call_operand.vmem [shape: bf16[36,4], index: 4, kind: input, shape index: {}]
  %s5 = inlined_call_operand.vmem [shape: f32[2,16,16,4], index: 5, kind: output, shape index: {0}]
  %s6 = inlined_call_operand.hbm [shape: f32[2,2,1,4], index: 6, kind: output, shape index: {1}]
  %7 = xla_tuple %s5, %s6
  %s8 = sld [smem:[#allocation0]]
  $region61: #{residual_block_nhwc.3} parent=0
    _
  %s10 = ssub.s32 1, %s8
  %s11 = scalar_select 0, %s10, %s8
  $region1: #{residual_block_nhwc.3} parent=0
    #allocation2 [shape = 'u8[2048]{0}', space=vmem, size = 0x800, scoped, tag = 'output window, operand 1']
    #allocation3 [shape = 's32[2]{0}', space=sflag, size = 0x8, scoped, tag = 'scoped memory for residual_block_nhwc.3']
    %12 = vsyncpa [#allocation3], 0
    %s13 = scalar_lea.sflag [#allocation3], 1
    %14 = vsyncpa %s13, 0
    loop: start=0, step=1, limit=4
    $region2: #{residual_block_nhwc.3} parent=1 // loop_pre_header
      _
    $region3: #{residual_block_nhwc.3} parent=1 // loop_header
      %s16 = sphi 0, %s20
      %p17 = scmp.ge.s32.totalorder %s16, 4
      %s26 = sphi 0, %s28
      %s29 = sphi 0, %s26
      %s30 = sphi 0, %s29
      %s46 = sphi 0, %s30
      %s52 = sphi 0, %s54
      %s55 = sphi 0, %s52
      %s56 = sphi 0, %s55
      %s72 = sphi 0, %s56
      %s76 = sphi 0, %s76
      %s78 = sphi 0, %s76
      %s79 = sphi 0, %s78
      %s93 = sphi 0, %s79
      %s97 = sphi 0, %s97
      %s99 = sphi 0, %s97
      %s100 = sphi 0, %s99
      %s114 = sphi 0, %s100
      %s118 = sphi 0, %s118
      %s120 = sphi 0, %s118
      %s121 = sphi 0, %s120
      %s135 = sphi 0, %s121
      %s141 = sphi 0, %s143
      %s144 = sphi 0, %s141
      %s145 = sphi 0, %s144
      %s161 = sphi 0, %s145
      %s167 = sphi 0, %s169
      %s170 = sphi 0, %s167
      %s171 = sphi 0, %s170
      %s187 = sphi 0, %s171
    $region4: #{residual_block_nhwc.3} parent=1 // loop_header_branch
      %19 = sbr.rel (%p17) target = $region8
    $region5: #{residual_block_nhwc.3} parent=1 // loop_body
      %s21 = ssub.s32 %s16, 1
      %s22 = ssub.s32 %s16, 2
      %s23 = sadd.s32 %s16, 1
      %s24 = ssub.s32 %s16, %s23
      %p25 = scmp.eq.s32.totalorder %s24, 0
      %s27 = sadd.s32 %s26, 1
      %s28 = scalar_select %p25, %s26, %s27
      %p31 = pneg %p25
      %p32 = scmp.eq.s32.totalorder %s16, 1
      %p33 = por %p31, %p32
      %p34 = scmp.ne.s32.totalorder %s26, %s29
      %p35 = scmp.eq.s32.totalorder %s16, 0
      %p36 = por %p34, %p35
      %p37 = scmp.ne.s32.totalorder %s26, %s29
      %p38 = scmp.eq.s32.totalorder %s21, 1
      %p39 = por %p37, %p38
      %p40 = scmp.ne.s32.totalorder %s29, %s30
      %p41 = scmp.eq.s32.totalorder %s21, 0
      %p42 = por %p40, %p41
      %p43 = scmp.ne.s32.totalorder %s29, %s30
      %p44 = scmp.eq.s32.totalorder %s22, 1
      %p45 = por %p43, %p44
      %p47 = scmp.ne.s32.totalorder %s30, %s46
      %p48 = scmp.eq.s32.totalorder %s22, 0
      %p49 = por %p47, %p48
      %s50 = ssub.s32 %s16, %s23
      %p51 = scmp.eq.s32.totalorder %s50, 0
      %s53 = sadd.s32 %s52, 1
      %s54 = scalar_select %p51, %s52, %s53
      %p57 = pneg %p51
      %p58 = scmp.eq.s32.totalorder %s16, 1
      %p59 = por %p57, %p58
      %p60 = scmp.ne.s32.totalorder %s52, %s55
      %p61 = scmp.eq.s32.totalorder %s16, 0
      %p62 = por %p60, %p61
      %p63 = scmp.ne.s32.totalorder %s52, %s55
      %p64 = scmp.eq.s32.totalorder %s21, 1
      %p65 = por %p63, %p64
      %p66 = scmp.ne.s32.totalorder %s55, %s56
      %p67 = scmp.eq.s32.totalorder %s21, 0
      %p68 = por %p66, %p67
      %p69 = scmp.ne.s32.totalorder %s55, %s56
      %p70 = scmp.eq.s32.totalorder %s22, 1
      %p71 = por %p69, %p70
      %p73 = scmp.ne.s32.totalorder %s56, %s72
      %p74 = scmp.eq.s32.totalorder %s22, 0
      %p75 = por %p73, %p74
      %s77 = sadd.s32 %s76, 1
      %p80 = scmp.eq.s32.totalorder %s16, 1
      %p81 = scmp.ne.s32.totalorder %s76, %s78
      %p82 = scmp.eq.s32.totalorder %s16, 0
      %p83 = por %p81, %p82
      %p84 = scmp.ne.s32.totalorder %s76, %s78
      %p85 = scmp.eq.s32.totalorder %s21, 1
      %p86 = por %p84, %p85
      %p87 = scmp.ne.s32.totalorder %s78, %s79
      %p88 = scmp.eq.s32.totalorder %s21, 0
      %p89 = por %p87, %p88
      %p90 = scmp.ne.s32.totalorder %s78, %s79
      %p91 = scmp.eq.s32.totalorder %s22, 1
      %p92 = por %p90, %p91
      %p94 = scmp.ne.s32.totalorder %s79, %s93
      %p95 = scmp.eq.s32.totalorder %s22, 0
      %p96 = por %p94, %p95
      %s98 = sadd.s32 %s97, 1
      %p101 = scmp.eq.s32.totalorder %s16, 1
      %p102 = scmp.ne.s32.totalorder %s97, %s99
      %p103 = scmp.eq.s32.totalorder %s16, 0
      %p104 = por %p102, %p103
      %p105 = scmp.ne.s32.totalorder %s97, %s99
      %p106 = scmp.eq.s32.totalorder %s21, 1
      %p107 = por %p105, %p106
      %p108 = scmp.ne.s32.totalorder %s99, %s100
      %p109 = scmp.eq.s32.totalorder %s21, 0
      %p110 = por %p108, %p109
      %p111 = scmp.ne.s32.totalorder %s99, %s100
      %p112 = scmp.eq.s32.totalorder %s22, 1
      %p113 = por %p111, %p112
      %p115 = scmp.ne.s32.totalorder %s100, %s114
      %p116 = scmp.eq.s32.totalorder %s22, 0
      %p117 = por %p115, %p116
      %s119 = sadd.s32 %s118, 1
      %p122 = scmp.eq.s32.totalorder %s16, 1
      %p123 = scmp.ne.s32.totalorder %s118, %s120
      %p124 = scmp.eq.s32.totalorder %s16, 0
      %p125 = por %p123, %p124
      %p126 = scmp.ne.s32.totalorder %s118, %s120
      %p127 = scmp.eq.s32.totalorder %s21, 1
      %p128 = por %p126, %p127
      %p129 = scmp.ne.s32.totalorder %s120, %s121
      %p130 = scmp.eq.s32.totalorder %s21, 0
      %p131 = por %p129, %p130
      %p132 = scmp.ne.s32.totalorder %s120, %s121
      %p133 = scmp.eq.s32.totalorder %s22, 1
      %p134 = por %p132, %p133
      %p136 = scmp.ne.s32.totalorder %s121, %s135
      %p137 = scmp.eq.s32.totalorder %s22, 0
      %p138 = por %p136, %p137
      %s139 = ssub.s32 %s16, %s23
      %p140 = scmp.eq.s32.totalorder %s139, 0
      %s142 = sadd.s32 %s141, 1
      %s143 = scalar_select %p140, %s141, %s142
      %p146 = pneg %p140
      %p147 = scmp.eq.s32.totalorder %s16, 1
      %p148 = por %p146, %p147
      %p149 = scmp.ne.s32.totalorder %s141, %s144
      %p150 = scmp.eq.s32.totalorder %s16, 0
      %p151 = por %p149, %p150
      %p152 = scmp.ne.s32.totalorder %s141, %s144
      %p153 = scmp.eq.s32.totalorder %s21, 1
      %p154 = por %p152, %p153
      %p155 = scmp.ne.s32.totalorder %s144, %s145
      %p156 = scmp.eq.s32.totalorder %s21, 0
      %p157 = por %p155, %p156
      %p158 = scmp.ne.s32.totalorder %s144, %s145
      %p159 = scmp.eq.s32.totalorder %s22, 1
      %p160 = por %p158, %p159
      %p162 = scmp.ne.s32.totalorder %s145, %s161
      %p163 = scmp.eq.s32.totalorder %s22, 0
      %p164 = por %p162, %p163
      %s165 = ssub.s32 %s16, %s23
      %p166 = scmp.eq.s32.totalorder %s165, 0
      %s168 = sadd.s32 %s167, 1
      %s169 = scalar_select %p166, %s167, %s168
      %p172 = pneg %p166
      %p173 = scmp.eq.s32.totalorder %s16, 1
      %p174 = por %p172, %p173
      %p175 = scmp.ne.s32.totalorder %s167, %s170
      %p176 = scmp.eq.s32.totalorder %s16, 0
      %p177 = por %p175, %p176
      %p178 = scmp.ne.s32.totalorder %s167, %s170
      %p179 = scmp.eq.s32.totalorder %s21, 1
      %p180 = por %p178, %p179
      %p181 = scmp.ne.s32.totalorder %s170, %s171
      %p182 = scmp.eq.s32.totalorder %s21, 0
      %p183 = por %p181, %p182
      %p184 = scmp.ne.s32.totalorder %s170, %s171
      %p185 = scmp.eq.s32.totalorder %s22, 1
      %p186 = por %p184, %p185
      %p188 = scmp.ne.s32.totalorder %s171, %s187
      %p189 = scmp.eq.s32.totalorder %s22, 0
      %p190 = por %p188, %p189
      %p191 = scmp.le.s32.totalorder 1, %s16
      %p192 = scmp.lt.s32.totalorder %s16, 3
      %p193 = pnand %p191, %p192
      %p194 = pneg %p193
      // Predicated region
      $region9: #{residual_block_nhwc.3} parent=5 // pred_check
        _
      $region10: #{residual_block_nhwc.3} parent=5 // pred_check_branch
        %196 = sbr.rel (%p193) target = $region12
      $region11: #{residual_block_nhwc.3} parent=5 // pred_region
        %s197 = ssub.s32 %s16, 1
        // Predicated region
        $region13: #{residual_block_nhwc.3} parent=11 // pred_check
          %p198 = pneg %p89
        $region14: #{residual_block_nhwc.3} parent=11 // pred_check_branch
          %200 = sbr.rel (%p198) target = $region16
        $region15: #{residual_block_nhwc.3} parent=11 // pred_region
          _
        $region16: #{residual_block_nhwc.3} parent=11 // pred_fallthru
          _
        // Predicated region
        $region17: #{residual_block_nhwc.3} parent=11 // pred_check
          %p201 = pneg %p110
        $region18: #{residual_block_nhwc.3} parent=11 // pred_check_branch
          %203 = sbr.rel (%p201) target = $region20
        $region19: #{residual_block_nhwc.3} parent=11 // pred_region
          _
        $region20: #{residual_block_nhwc.3} parent=11 // pred_fallthru
          _
        // Predicated region
        $region21: #{residual_block_nhwc.3} parent=11 // pred_check
          %p204 = pneg %p131
        $region22: #{residual_block_nhwc.3} parent=11 // pred_check_branch
          %206 = sbr.rel (%p204) target = $region24
        $region23: #{residual_block_nhwc.3} parent=11 // pred_region
          _
        $region24: #{residual_block_nhwc.3} parent=11 // pred_fallthru
          _
      $region12: #{residual_block_nhwc.3} parent=5 // pred_fallthru
        _
      %p207 = scmp.lt.s32.totalorder %s16, 2
      // Predicated region
      $region25: #{residual_block_nhwc.3} parent=5 // pred_check
        %p208 = pneg %p207
      $region26: #{residual_block_nhwc.3} parent=5 // pred_check_branch
        %210 = sbr.rel (%p208) target = $region28
      $region27: #{residual_block_nhwc.3} parent=5 // pred_region
        // Predicated region
        $region29: #{residual_block_nhwc.3} parent=27 // pred_check
          %p211 = pneg %p36
        $region30: #{residual_block_nhwc.3} parent=27 // pred_check_branch
          %213 = sbr.rel (%p211) target = $region32
        $region31: #{residual_block_nhwc.3} parent=27 // pred_region
          %p214 = scmp.lt.s32.totalorder %s16, 1
          %s215 = scalar_select %p214, %s16, 1
          %s216 = smul.addr %s215, 32
          %s217 = smul.addr %s216, 4
          %s218 = scalar_lea.vmem %s0, %s217
        $region32: #{residual_block_nhwc.3} parent=27 // pred_fallthru
          _
        // Predicated region
        $region33: #{residual_block_nhwc.3} parent=27 // pred_check
          %p219 = pneg %p62
        $region34: #{residual_block_nhwc.3} parent=27 // pred_check_branch
          %221 = sbr.rel (%p219) target = $region36
        $region35: #{residual_block_nhwc.3} parent=27 // pred_region
          %p222 = scmp.lt.s32.totalorder %s16, 1
          %s223 = scalar_select %p222, %s16, 1
          %s224 = smul.addr %s223, 32
          %s225 = smul.addr %s224, 8
          %s226 = scalar_lea.vmem %s1, %s225
        $region36: #{residual_block_nhwc.3} parent=27 // pred_fallthru
          _
      $region28: #{residual_block_nhwc.3} parent=5 // pred_fallthru
        _
      %p227 = scmp.le.s32.totalorder 1, %s16
      %p228 = scmp.lt.s32.totalorder %s16, 3
      %p229 = pnand %p227, %p228
      %p230 = pneg %p229
      // Predicated region
      $region37: #{residual_block_nhwc.3} parent=5 // pred_check
        _
      $region38: #{residual_block_nhwc.3} parent=5 // pred_check_branch
        %232 = sbr.rel (%p229) target = $region40
      $region39: #{residual_block_nhwc.3} parent=5 // pred_region
        %s233 = ssub.s32 %s16, 1
        %p234 = scmp.lt.s32.totalorder %s21, 1
        %s235 = scalar_select %p234, %s21, 1
        %s236 = smul.addr %s235, 32
        %s237 = smul.addr %s236, 4
        %s238 = scalar_lea.vmem %s0, %s237
        %p239 = pneg %p42
        %p240 = pneg %p39
        %p241 = scmp.lt.s32.totalorder %s21, 1
        %s242 = scalar_select %p241, %s21, 1
        %s243 = smul.addr %s242, 32
        %s244 = smul.addr %s243, 8
        %s245 = scalar_lea.vmem %s1, %s244
        %p246 = pneg %p68
        %p247 = pneg %p65
        %p248 = pneg %p89
        %p249 = pneg %p86
        %p250 = pneg %p110
        %p251 = pneg %p107
        %p252 = pneg %p131
        %p253 = pneg %p128
        %p254 = pneg %p157
        %p255 = pneg %p154
        %p256 = scmp.lt.s32.totalorder %s21, 1
        %s257 = scalar_select %p256, %s21, 1
        %s258 = smul.addr %s257, 32
        %s259 = smul.addr %s258, 8
        %s260 = scalar_lea.vmem %s5, %s259
        %p261 = pneg %p183
        %p262 = pneg %p180
        %s263 = sand.u32 %s170, 1
        %s264 = scalar_lea.sflag [#allocation3], %s263
        %s265 = sand.u32 %s170, 1
        %s266 = smul.addr %s265, 2
        %s267 = scalar_lea.vmem [#allocation2], %s266
        %p268 = scmp.lt.s32.totalorder %s21, 1
        %s269 = scalar_select %p268, %s21, 1
        %s270 = smul.addr %s269, 32
        %s271 = smul.addr %s270, 4
        %s272 = scalar_lea.vmem %s0, %s271
        %p273 = scmp.lt.s32.totalorder %s21, 1
        %s274 = scalar_select %p273, %s21, 1
        %s275 = smul.addr %s274, 32
        %s276 = smul.addr %s275, 8
        %s277 = scalar_lea.vmem %s1, %s276
        %p278 = scmp.lt.s32.totalorder %s21, 1
        %s279 = scalar_select %p278, %s21, 1
        %s280 = smul.addr %s279, 32
        %s281 = smul.addr %s280, 8
        %s282 = scalar_lea.vmem %s5, %s281
        %v284 = vld [vmem:[%s272] sm:$0xf]
        %v285 = vld [vmem:[%s272 + $0x4] sm:$0xf]
        %v286 = vld [vmem:[%s272 + $0x8] sm:$0xf]
        %v287 = vld [vmem:[%s272 + $0xc] sm:$0xf]
        %v288 = vld [vmem:[%s272 + $0x10] sm:$0xf]
        %v289 = vld [vmem:[%s272 + $0x14] sm:$0xf]
        %v290 = vld [vmem:[%s272 + $0x18] sm:$0xf]
        %v291 = vld [vmem:[%s272 + $0x1c] sm:$0xf]
        %v292 = vld [vmem:[%s272 + $0x20] sm:$0xf]
        %v293 = vld [vmem:[%s272 + $0x24] sm:$0xf]
        %v294 = vld [vmem:[%s272 + $0x28] sm:$0xf]
        %v295 = vld [vmem:[%s272 + $0x2c] sm:$0xf]
        %v296 = vld [vmem:[%s272 + $0x30] sm:$0xf]
        %v297 = vld [vmem:[%s272 + $0x34] sm:$0xf]
        %v298 = vld [vmem:[%s272 + $0x38] sm:$0xf]
        %v299 = vld [vmem:[%s272 + $0x3c] sm:$0xf]
        %v300 = vld [vmem:[%s272 + $0x40] sm:$0xf]
        %v301 = vld [vmem:[%s272 + $0x44] sm:$0xf]
        %v302 = vld [vmem:[%s272 + $0x48] sm:$0xf]
        %v303 = vld [vmem:[%s272 + $0x4c] sm:$0xf]
        %v304 = vld [vmem:[%s272 + $0x50] sm:$0xf]
        %v305 = vld [vmem:[%s272 + $0x54] sm:$0xf]
        %v306 = vld [vmem:[%s272 + $0x58] sm:$0xf]
        %v307 = vld [vmem:[%s272 + $0x5c] sm:$0xf]
        %v308 = vld [vmem:[%s272 + $0x60] sm:$0xf]
        %v309 = vld [vmem:[%s272 + $0x64] sm:$0xf]
        %v310 = vld [vmem:[%s272 + $0x68] sm:$0xf]
        %v311 = vld [vmem:[%s272 + $0x6c] sm:$0xf]
        %v312 = vld [vmem:[%s272 + $0x70] sm:$0xf]
        %v313 = vld [vmem:[%s272 + $0x74] sm:$0xf]
        %v314 = vld [vmem:[%s272 + $0x78] sm:$0xf]
        %v315 = vld [vmem:[%s272 + $0x7c] sm:$0xf]
        %v316 = vunpack.c.l.bf16 %v284
        %v317 = vunpack.c.l.bf16 %v285
        %v318 = vunpack.c.l.bf16 %v286
        %v319 = vunpack.c.l.bf16 %v287
        %v320 = vunpack.c.l.bf16 %v288
        %v321 = vunpack.c.l.bf16 %v289
        %v322 = vunpack.c.l.bf16 %v290
        %v323 = vunpack.c.l.bf16 %v291
        %v324 = vunpack.c.l.bf16 %v292
        %v325 = vunpack.c.l.bf16 %v293
        %v326 = vunpack.c.l.bf16 %v294
        %v327 = vunpack.c.l.bf16 %v295
        %v328 = vunpack.c.l.bf16 %v296
        %v329 = vunpack.c.l.bf16 %v297
        %v330 = vunpack.c.l.bf16 %v298
        %v331 = vunpack.c.l.bf16 %v299
        %v332 = vunpack.c.l.bf16 %v300
        %v333 = vunpack.c.l.bf16 %v301
        %v334 = vunpack.c.l.bf16 %v302
        %v335 = vunpack.c.l.bf16 %v303
        %v336 = vunpack.c.l.bf16 %v304
        %v337 = vunpack.c.l.bf16 %v305
        %v338 = vunpack.c.l.bf16 %v306
        %v339 = vunpack.c.l.bf16 %v307
        %v340 = vunpack.c.l.bf16 %v308
        %v341 = vunpack.c.l.bf16 %v309
        %v342 = vunpack.c.l.bf16 %v310
        %v343 = vunpack.c.l.bf16 %v311
        %v344 = vunpack.c.l.bf16 %v312
        %v345 = vunpack.c.l.bf16 %v313
        %v346 = vunpack.c.l.bf16 %v314
        %v347 = vunpack.c.l.bf16 %v315
        %v348 = vld [vmem:[%s2] sm:$0x1]
        %v350 = vlaneseq
        %v351 = vshrl.u32 %v350, 7
        %v352 = vsub.s32 0, %v351
        %v353 = vrot.slane %v348, %v352
        %v355 = vmul.f32 %v316, %v353
        %v356 = vmul.f32 %v317, %v353
        %v357 = vmul.f32 %v318, %v353
        %v358 = vmul.f32 %v319, %v353
        %v359 = vmul.f32 %v320, %v353
        %v360 = vmul.f32 %v321, %v353
        %v361 = vmul.f32 %v322, %v353
        %v362 = vmul.f32 %v323, %v353
        %v363 = vmul.f32 %v324, %v353
        %v364 = vmul.f32 %v325, %v353
        %v365 = vmul.f32 %v326, %v353
        %v366 = vmul.f32 %v327, %v353
        %v367 = vmul.f32 %v328, %v353
        %v368 = vmul.f32 %v329, %v353
        %v369 = vmul.f32 %v330, %v353
        %v370 = vmul.f32 %v331, %v353
        %v371 = vmul.f32 %v332, %v353
        %v372 = vmul.f32 %v333, %v353
        %v373 = vmul.f32 %v334, %v353
        %v374 = vmul.f32 %v335, %v353
        %v375 = vmul.f32 %v336, %v353
        %v376 = vmul.f32 %v337, %v353
        %v377 = vmul.f32 %v338, %v353
        %v378 = vmul.f32 %v339, %v353
        %v379 = vmul.f32 %v340, %v353
        %v380 = vmul.f32 %v341, %v353
        %v381 = vmul.f32 %v342, %v353
        %v382 = vmul.f32 %v343, %v353
        %v383 = vmul.f32 %v344, %v353
        %v384 = vmul.f32 %v345, %v353
        %v385 = vmul.f32 %v346, %v353
        %v386 = vmul.f32 %v347, %v353
        %v387 = vld [vmem:[%s3] sm:$0x1]
        %v389 = vlaneseq
        %v390 = vshrl.u32 %v389, 7
        %v391 = vsub.s32 0, %v390
        %v392 = vrot.slane %v387, %v391
        %v394 = vadd.f32 %v355, %v392
        %v395 = vadd.f32 %v356, %v392
        %v396 = vadd.f32 %v357, %v392
        %v397 = vadd.f32 %v358, %v392
        %v398 = vadd.f32 %v359, %v392
        %v399 = vadd.f32 %v360, %v392
        %v400 = vadd.f32 %v361, %v392
        %v401 = vadd.f32 %v362, %v392
        %v402 = vadd.f32 %v363, %v392
        %v403 = vadd.f32 %v364, %v392
        %v404 = vadd.f32 %v365, %v392
        %v405 = vadd.f32 %v366, %v392
        %v406 = vadd.f32 %v367, %v392
        %v407 = vadd.f32 %v368, %v392
        %v408 = vadd.f32 %v369, %v392
        %v409 = vadd.f32 %v370, %v392
        %v410 = vadd.f32 %v371, %v392
        %v411 = vadd.f32 %v372, %v392
        %v412 = vadd.f32 %v373, %v392
        %v413 = vadd.f32 %v374, %v392
        %v414 = vadd.f32 %v375, %v392
        %v415 = vadd.f32 %v376, %v392
        %v416 = vadd.f32 %v377, %v392
        %v417 = vadd.f32 %v378, %v392
        %v418 = vadd.f32 %v379, %v392
        %v419 = vadd.f32 %v380, %v392
        %v420 = vadd.f32 %v381, %v392
        %v421 = vadd.f32 %v382, %v392
        %v422 = vadd.f32 %v383, %v392
        %v423 = vadd.f32 %v384, %v392
        %v424 = vadd.f32 %v385, %v392
        %v425 = vadd.f32 %v386, %v392
        %v426 = vmax.f32 %v394, 0.0
        %v427 = vmax.f32 %v395, 0.0
        %v428 = vmax.f32 %v396, 0.0
        %v429 = vmax.f32 %v397, 0.0
        %v430 = vmax.f32 %v398, 0.0
        %v431 = vmax.f32 %v399, 0.0
        %v432 = vmax.f32 %v400, 0.0
        %v433 = vmax.f32 %v401, 0.0
        %v434 = vmax.f32 %v402, 0.0
        %v435 = vmax.f32 %v403, 0.0
        %v436 = vmax.f32 %v404, 0.0
        %v437 = vmax.f32 %v405, 0.0
        %v438 = vmax.f32 %v406, 0.0
        %v439 = vmax.f32 %v407, 0.0
        %v440 = vmax.f32 %v408, 0.0
        %v441 = vmax.f32 %v409, 0.0
        %v442 = vmax.f32 %v410, 0.0
        %v443 = vmax.f32 %v411, 0.0
        %v444 = vmax.f32 %v412, 0.0
        %v445 = vmax.f32 %v413, 0.0
        %v446 = vmax.f32 %v414, 0.0
        %v447 = vmax.f32 %v415, 0.0
        %v448 = vmax.f32 %v416, 0.0
        %v449 = vmax.f32 %v417, 0.0
        %v450 = vmax.f32 %v418, 0.0
        %v451 = vmax.f32 %v419, 0.0
        %v452 = vmax.f32 %v420, 0.0
        %v453 = vmax.f32 %v421, 0.0
        %v454 = vmax.f32 %v422, 0.0
        %v455 = vmax.f32 %v423, 0.0
        %v456 = vmax.f32 %v424, 0.0
        %v457 = vmax.f32 %v425, 0.0
        %v458 = vlaneseq
        %v459 = vshrl.u32 %v458, 7
        %v460 = vadd.s32 %v459, 8
        %v461 = vrot.slane %v426, 7
        %v462 = vrot.slane %v428, 7
        %v463 = vrot.slane %v430, 7
        %v464 = vrot.slane %v432, 7
        %v465 = vrot.slane %v434, 7
        %v466 = vrot.slane %v436, 7
        %v467 = vrot.slane %v438, 7
        %v468 = vrot.slane %v440, 7
        %v469 = vrot.slane %v442, 7
        %v470 = vrot.slane %v444, 7
        %v471 = vrot.slane %v446, 7
        %v472 = vrot.slane %v448, 7
        %v473 = vrot.slane %v450, 7
        %v474 = vrot.slane %v452, 7
        %v475 = vrot.slane %v454, 7
        %v476 = vrot.slane %v456, 7
        %v477 = vrot.slane %v427, 7
        %v478 = vrot.slane %v429, 7
        %v479 = vrot.slane %v431, 7
        %v480 = vrot.slane %v433, 7
        %v481 = vrot.slane %v435, 7
        %v482 = vrot.slane %v437, 7
        %v483 = vrot.slane %v439, 7
        %v484 = vrot.slane %v441, 7
        %v485 = vrot.slane %v443, 7
        %v486 = vrot.slane %v445, 7
        %v487 = vrot.slane %v447, 7
        %v488 = vrot.slane %v449, 7
        %v489 = vrot.slane %v451, 7
        %v490 = vrot.slane %v453, 7
        %v491 = vrot.slane %v455, 7
        %v492 = vrot.slane %v457, 7
        %vm493 = vcmp.lt.s32.totalorder %v459, 1
        %v494 = vsel %vm493, %v461, %v477
        %v495 = vsel %vm493, %v462, %v478
        %v496 = vsel %vm493, %v463, %v479
        %v497 = vsel %vm493, %v464, %v480
        %v498 = vsel %vm493, %v465, %v481
        %v499 = vsel %vm493, %v466, %v482
        %v500 = vsel %vm493, %v467, %v483
        %v501 = vsel %vm493, %v468, %v484
        %v502 = vsel %vm493, %v469, %v485
        %v503 = vsel %vm493, %v470, %v486
        %v504 = vsel %vm493, %v471, %v487
        %v505 = vsel %vm493, %v472, %v488
        %v506 = vsel %vm493, %v473, %v489
        %v507 = vsel %vm493, %v474, %v490
        %v508 = vsel %vm493, %v475, %v491
        %v509 = vsel %vm493, %v476, %v492
        %v510 = vsel %vm493, %v477, %v461
        %v511 = vsel %vm493, %v478, %v462
        %v512 = vsel %vm493, %v479, %v463
        %v513 = vsel %vm493, %v480, %v464
        %v514 = vsel %vm493, %v481, %v465
        %v515 = vsel %vm493, %v482, %v466
        %v516 = vsel %vm493, %v483, %v467
        %v517 = vsel %vm493, %v484, %v468
        %v518 = vsel %vm493, %v485, %v469
        %v519 = vsel %vm493, %v486, %v470
        %v520 = vsel %vm493, %v487, %v471
        %v521 = vsel %vm493, %v488, %v472
        %v522 = vsel %vm493, %v489, %v473
        %v523 = vsel %vm493, %v490, %v474
        %v524 = vsel %vm493, %v491, %v475
        %v525 = vsel %vm493, %v492, %v476
        %v526 = vadd.s32 %v459, 4294967295
        %v527 = vadd.s32 %v460, 4294967295
        %vm528 = vcmp.ge.s32.totalorder %v526, 0
        %vm529 = vcmp.ge.s32.totalorder %v527, 0
        %vm530 = vcmp.lt.s32.totalorder %v526, 16
        %vm531 = vcmp.lt.s32.totalorder %v527, 16
        %vm532 = vmand %vm528, %vm530
        %vm533 = vmand %vm529, %vm531
        %v534 = vsel %vm532, 1, 0
        %v535 = vsel %vm533, 1, 0
        %vm536 = vcmp.eq.s32.totalorder %v534, 1
        %vm537 = vcmp.eq.s32.totalorder %v535, 1
        %v538 = vsel %vm536, %v510, 0.0
        %v539 = vsel %vm537, %v494, 0.0
        %v540 = vsel %vm536, %v511, 0.0
        %v541 = vsel %vm537, %v495, 0.0
        %v542 = vsel %vm536, %v512, 0.0
        %v543 = vsel %vm537, %v496, 0.0
        %v544 = vsel %vm536, %v513, 0.0
        %v545 = vsel %vm537, %v497, 0.0
        %v546 = vsel %vm536, %v514, 0.0
        %v547 = vsel %vm537, %v498, 0.0
        %v548 = vsel %vm536, %v515, 0.0
        %v549 = vsel %vm537, %v499, 0.0
        %v550 = vsel %vm536, %v516, 0.0
        %v551 = vsel %vm537, %v500, 0.0
        %v552 = vsel %vm536, %v517, 0.0
        %v553 = vsel %vm537, %v501, 0.0
        %v554 = vsel %vm536, %v518, 0.0
        %v555 = vsel %vm537, %v502, 0.0
        %v556 = vsel %vm536, %v519, 0.0
        %v557 = vsel %vm537, %v503, 0.0
        %v558 = vsel %vm536, %v520, 0.0
        %v559 = vsel %vm537, %v504, 0.0
        %v560 = vsel %vm536, %v521, 0.0
        %v561 = vsel %vm537, %v505, 0.0
        %v562 = vsel %vm536, %v522, 0.0
        %v563 = vsel %vm537, %v506, 0.0
        %v564 = vsel %vm536, %v523, 0.0
        %v565 = vsel %vm537, %v507, 0.0
        %v566 = vsel %vm536, %v524, 0.0
        %v567 = vsel %vm537, %v508, 0.0
        %v568 = vsel %vm536, %v525, 0.0
        %v569 = vsel %vm537, %v509, 0.0
        %v570 = vrot.slane %v426, 1
        %v571 = vrot.slane %v428, 1
        %v572 = vrot.slane %v430, 1
        %v573 = vrot.slane %v432, 1
        %v574 = vrot.slane %v434, 1
        %v575 = vrot.slane %v436, 1
        %v576 = vrot.slane %v438, 1
        %v577 = vrot.slane %v440, 1
        %v578 = vrot.slane %v442, 1
        %v579 = vrot.slane %v444, 1
        %v580 = vrot.slane %v446, 1
        %v581 = vrot.slane %v448, 1
        %v582 = vrot.slane %v450, 1
        %v583 = vrot.slane %v452, 1
        %v584 = vrot.slane %v454, 1
        %v585 = vrot.slane %v456, 1
        %v586 = vrot.slane %v427, 1
        %v587 = vrot.slane %v429, 1
        %v588 = vrot.slane %v431, 1
        %v589 = vrot.slane %v433, 1
        %v590 = vrot.slane %v435, 1
        %v591 = vrot.slane %v437, 1
        %v592 = vrot.slane %v439, 1
        %v593 = vrot.slane %v441, 1
        %v594 = vrot.slane %v443, 1
        %v595 = vrot.slane %v445, 1
        %v596 = vrot.slane %v447, 1
        %v597 = vrot.slane %v449, 1
        %v598 = vrot.slane %v451, 1
        %v599 = vrot.slane %v453, 1
        %v600 = vrot.slane %v455, 1
        %v601 = vrot.slane %v457, 1
        %vm602 = vcmp.lt.s32.totalorder %v459, 7
        %v603 = vsel %vm602, %v570, %v586
        %v604 = vsel %vm602, %v571, %v587
        %v605 = vsel %vm602, %v572, %v588
        %v606 = vsel %vm602, %v573, %v589
        %v607 = vsel %vm602, %v574, %v590
        %v608 = vsel %vm602, %v575, %v591
        %v609 = vsel %vm602, %v576, %v592
        %v610 = vsel %vm602, %v577, %v593
        %v611 = vsel %vm602, %v578, %v594
        %v612 = vsel %vm602, %v579, %v595
        %v613 = vsel %vm602, %v580, %v596
        %v614 = vsel %vm602, %v581, %v597
        %v615 = vsel %vm602, %v582, %v598
        %v616 = vsel %vm602, %v583, %v599
        %v617 = vsel %vm602, %v584, %v600
        %v618 = vsel %vm602, %v585, %v601
        %v619 = vsel %vm602, %v586, %v570
        %v620 = vsel %vm602, %v587, %v571
        %v621 = vsel %vm602, %v588, %v572
        %v622 = vsel %vm602, %v589, %v573
        %v623 = vsel %vm602, %v590, %v574
        %v624 = vsel %vm602, %v591, %v575
        %v625 = vsel %vm602, %v592, %v576
        %v626 = vsel %vm602, %v593, %v577
        %v627 = vsel %vm602, %v594, %v578
        %v628 = vsel %vm602, %v595, %v579
        %v629 = vsel %vm602, %v596, %v580
        %v630 = vsel %vm602, %v597, %v581
        %v631 = vsel %vm602, %v598, %v582
        %v632 = vsel %vm602, %v599, %v583
        %v633 = vsel %vm602, %v600, %v584
        %v634 = vsel %vm602, %v601, %v585
        %v635 = vadd.s32 %v459, 1
        %v636 = vadd.s32 %v460, 1
        %vm637 = vcmp.ge.s32.totalorder %v635, 0
        %vm638 = vcmp.ge.s32.totalorder %v636, 0
        %vm639 = vcmp.lt.s32.totalorder %v635, 16
        %vm640 = vcmp.lt.s32.totalorder %v636, 16
        %vm641 = vmand %vm637, %vm639
        %vm642 = vmand %vm638, %vm640
        %v643 = vsel %vm641, 1, 0
        %v644 = vsel %vm642, 1, 0
        %vm645 = vcmp.eq.s32.totalorder %v643, 1
        %vm646 = vcmp.eq.s32.totalorder %v644, 1
        %v647 = vsel %vm645, %v603, 0.0
        %v648 = vsel %vm646, %v619, 0.0
        %v649 = vsel %vm645, %v604, 0.0
        %v650 = vsel %vm646, %v620, 0.0
        %v651 = vsel %vm645, %v605, 0.0
        %v652 = vsel %vm646, %v621, 0.0
        %v653 = vsel %vm645, %v606, 0.0
        %v654 = vsel %vm646, %v622, 0.0
        %v655 = vsel %vm645, %v607, 0.0
        %v656 = vsel %vm646, %v623, 0.0
        %v657 = vsel %vm645, %v608, 0.0
        %v658 = vsel %vm646, %v624, 0.0
        %v659 = vsel %vm645, %v609, 0.0
        %v660 = vsel %vm646, %v625, 0.0
        %v661 = vsel %vm645, %v610, 0.0
        %v662 = vsel %vm646, %v626, 0.0
        %v663 = vsel %vm645, %v611, 0.0
        %v664 = vsel %vm646, %v627, 0.0
        %v665 = vsel %vm645, %v612, 0.0
        %v666 = vsel %vm646, %v628, 0.0
        %v667 = vsel %vm645, %v613, 0.0
        %v668 = vsel %vm646, %v629, 0.0
        %v669 = vsel %vm645, %v614, 0.0
        %v670 = vsel %vm646, %v630, 0.0
        %v671 = vsel %vm645, %v615, 0.0
        %v672 = vsel %vm646, %v631, 0.0
        %v673 = vsel %vm645, %v616, 0.0
        %v674 = vsel %vm646, %v632, 0.0
        %v675 = vsel %vm645, %v617, 0.0
        %v676 = vsel %vm646, %v633, 0.0
        %v677 = vsel %vm645, %v618, 0.0
        %v678 = vsel %vm646, %v634, 0.0
        %711 = vrot.lane.b32.xlu0 %v426, 4
        %v712 = vpop.permute.xlu0 %711
        %713 = vrot.lane.b32.xlu0 %v427, 4
        %v714 = vpop.permute.xlu0 %713
        %715 = vrot.lane.b32.xlu0 %v428, 4
        %v716 = vpop.permute.xlu0 %715
        %717 = vrot.lane.b32.xlu0 %v429, 4
        %v718 = vpop.permute.xlu0 %717
        %719 = vrot.lane.b32.xlu0 %v430, 4
        %v720 = vpop.permute.xlu0 %719
        %721 = vrot.lane.b32.xlu0 %v431, 4
        %v722 = vpop.permute.xlu0 %721
        %723 = vrot.lane.b32.xlu0 %v432, 4
        %v724 = vpop.permute.xlu0 %723
        %725 = vrot.lane.b32.xlu0 %v433, 4
        %v726 = vpop.permute.xlu0 %725
        %727 = vrot.lane.b32.xlu0 %v434, 4
        %v728 = vpop.permute.xlu0 %727
        %729 = vrot.lane.b32.xlu0 %v435, 4
        %v730 = vpop.permute.xlu0 %729
        %731 = vrot.lane.b32.xlu0 %v436, 4
        %v732 = vpop.permute.xlu0 %731
        %733 = vrot.lane.b32.xlu0 %v437, 4
        %v734 = vpop.permute.xlu0 %733
        %735 = vrot.lane.b32.xlu0 %v438, 4
        %v736 = vpop.permute.xlu0 %735
        %737 = vrot.lane.b32.xlu0 %v439, 4
        %v738 = vpop.permute.xlu0 %737
        %739 = vrot.lane.b32.xlu0 %v440, 4
        %v740 = vpop.permute.xlu0 %739
        %741 = vrot.lane.b32.xlu0 %v441, 4
        %v742 = vpop.permute.xlu0 %741
        %743 = vrot.lane.b32.xlu0 %v442, 4
        %v744 = vpop.permute.xlu0 %743
        %745 = vrot.lane.b32.xlu0 %v443, 4
        %v746 = vpop.permute.xlu0 %745
        %747 = vrot.lane.b32.xlu0 %v444, 4
        %v748 = vpop.permute.xlu0 %747
        %749 = vrot.lane.b32.xlu0 %v445, 4
        %v750 = vpop.permute.xlu0 %749
        %751 = vrot.lane.b32.xlu0 %v446, 4
        %v752 = vpop.permute.xlu0 %751
        %753 = vrot.lane.b32.xlu0 %v447, 4
        %v754 = vpop.permute.xlu0 %753
        %755 = vrot.lane.b32.xlu0 %v448, 4
        %v756 = vpop.permute.xlu0 %755
        %757 = vrot.lane.b32.xlu0 %v449, 4
        %v758 = vpop.permute.xlu0 %757
        %759 = vrot.lane.b32.xlu0 %v450, 4
        %v760 = vpop.permute.xlu0 %759
        %761 = vrot.lane.b32.xlu0 %v451, 4
        %v762 = vpop.permute.xlu0 %761
        %763 = vrot.lane.b32.xlu0 %v452, 4
        %v764 = vpop.permute.xlu0 %763
        %765 = vrot.lane.b32.xlu0 %v453, 4
        %v766 = vpop.permute.xlu0 %765
        %767 = vrot.lane.b32.xlu0 %v454, 4
        %v768 = vpop.permute.xlu0 %767
        %769 = vrot.lane.b32.xlu0 %v455, 4
        %v770 = vpop.permute.xlu0 %769
        %771 = vrot.lane.b32.xlu0 %v456, 4
        %v772 = vpop.permute.xlu0 %771
        %773 = vrot.lane.b32.xlu0 %v457, 4
        %v774 = vpop.permute.xlu0 %773
        %839 = vrot.lane.b32.xlu0 %v647, 8
        %v840 = vpop.permute.xlu0 %839
        %841 = vrot.lane.b32.xlu0 %v648, 8
        %v842 = vpop.permute.xlu0 %841
        %843 = vrot.lane.b32.xlu0 %v649, 8
        %v844 = vpop.permute.xlu0 %843
        %845 = vrot.lane.b32.xlu0 %v650, 8
        %v846 = vpop.permute.xlu0 %845
        %847 = vrot.lane.b32.xlu0 %v651, 8
        %v848 = vpop.permute.xlu0 %847
        %849 = vrot.lane.b32.xlu0 %v652, 8
        %v850 = vpop.permute.xlu0 %849
        %851 = vrot.lane.b32.xlu0 %v653, 8
        %v852 = vpop.permute.xlu0 %851
        %853 = vrot.lane.b32.xlu0 %v654, 8
        %v854 = vpop.permute.xlu0 %853
        %855 = vrot.lane.b32.xlu0 %v655, 8
        %v856 = vpop.permute.xlu0 %855
        %857 = vrot.lane.b32.xlu0 %v656, 8
        %v858 = vpop.permute.xlu0 %857
        %859 = vrot.lane.b32.xlu0 %v657, 8
        %v860 = vpop.permute.xlu0 %859
        %861 = vrot.lane.b32.xlu0 %v658, 8
        %v862 = vpop.permute.xlu0 %861
        %863 = vrot.lane.b32.xlu0 %v659, 8
        %v864 = vpop.permute.xlu0 %863
        %865 = vrot.lane.b32.xlu0 %v660, 8
        %v866 = vpop.permute.xlu0 %865
        %867 = vrot.lane.b32.xlu0 %v661, 8
        %v868 = vpop.permute.xlu0 %867
        %869 = vrot.lane.b32.xlu0 %v662, 8
        %v870 = vpop.permute.xlu0 %869
        %871 = vrot.lane.b32.xlu0 %v663, 8
        %v872 = vpop.permute.xlu0 %871
        %873 = vrot.lane.b32.xlu0 %v664, 8
        %v874 = vpop.permute.xlu0 %873
        %875 = vrot.lane.b32.xlu0 %v665, 8
        %v876 = vpop.permute.xlu0 %875
        %877 = vrot.lane.b32.xlu0 %v666, 8
        %v878 = vpop.permute.xlu0 %877
        %879 = vrot.lane.b32.xlu0 %v667, 8
        %v880 = vpop.permute.xlu0 %879
        %881 = vrot.lane.b32.xlu0 %v668, 8
        %v882 = vpop.permute.xlu0 %881
        %883 = vrot.lane.b32.xlu0 %v669, 8
        %v884 = vpop.permute.xlu0 %883
        %885 = vrot.lane.b32.xlu0 %v670, 8
        %v886 = vpop.permute.xlu0 %885
        %887 = vrot.lane.b32.xlu0 %v671, 8
        %v888 = vpop.permute.xlu0 %887
        %889 = vrot.lane.b32.xlu0 %v672, 8
        %v890 = vpop.permute.xlu0 %889
        %891 = vrot.lane.b32.xlu0 %v673, 8
        %v892 = vpop.permute.xlu0 %891
        %893 = vrot.lane.b32.xlu0 %v674, 8
        %v894 = vpop.permute.xlu0 %893
        %895 = vrot.lane.b32.xlu0 %v675, 8
        %v896 = vpop.permute.xlu0 %895
        %897 = vrot.lane.b32.xlu0 %v676, 8
        %v898 = vpop.permute.xlu0 %897
        %899 = vrot.lane.b32.xlu0 %v677, 8
        %v900 = vpop.permute.xlu0 %899
        %901 = vrot.lane.b32.xlu0 %v678, 8
        %v902 = vpop.permute.xlu0 %901
        %vm935 = vcmask 31744
        %v936 = vsel %vm935, %v538, %v712
        %v937 = vsel %vm935, %v539, %v714
        %v938 = vsel %vm935, %v540, %v716
        %v939 = vsel %vm935, %v541, %v718
        %v940 = vsel %vm935, %v542, %v720
        %v941 = vsel %vm935, %v543, %v722
        %v942 = vsel %vm935, %v544, %v724
        %v943 = vsel %vm935, %v545, %v726
        %v944 = vsel %vm935, %v546, %v728
        %v945 = vsel %vm935, %v547, %v730
        %v946 = vsel %vm935, %v548, %v732
        %v947 = vsel %vm935, %v549, %v734
        %v948 = vsel %vm935, %v550, %v736
        %v949 = vsel %vm935, %v551, %v738
        %v950 = vsel %vm935, %v552, %v740
        %v951 = vsel %vm935, %v553, %v742
        %v952 = vsel %vm935, %v554, %v744
        %v953 = vsel %vm935, %v555, %v746
        %v954 = vsel %vm935, %v556, %v748
        %v955 = vsel %vm935, %v557, %v750
        %v956 = vsel %vm935, %v558, %v752
        %v957 = vsel %vm935, %v559, %v754
        %v958 = vsel %vm935, %v560, %v756
        %v959 = vsel %vm935, %v561, %v758
        %v960 = vsel %vm935, %v562, %v760
        %v961 = vsel %vm935, %v563, %v762
        %v962 = vsel %vm935, %v564, %v764
        %v963 = vsel %vm935, %v565, %v766
        %v964 = vsel %vm935, %v566, %v768
        %v965 = vsel %vm935, %v567, %v770
        %v966 = vsel %vm935, %v568, %v772
        %v967 = vsel %vm935, %v569, %v774
        %vm968 = vcmask 64512
        %v969 = vsel %vm968, %v936, %v840
        %v970 = vsel %vm968, %v937, %v842
        %v971 = vsel %vm968, %v938, %v844
        %v972 = vsel %vm968, %v939, %v846
        %v973 = vsel %vm968, %v940, %v848
        %v974 = vsel %vm968, %v941, %v850
        %v975 = vsel %vm968, %v942, %v852
        %v976 = vsel %vm968, %v943, %v854
        %v977 = vsel %vm968, %v944, %v856
        %v978 = vsel %vm968, %v945, %v858
        %v979 = vsel %vm968, %v946, %v860
        %v980 = vsel %vm968, %v947, %v862
        %v981 = vsel %vm968, %v948, %v864
        %v982 = vsel %vm968, %v949, %v866
        %v983 = vsel %vm968, %v950, %v868
        %v984 = vsel %vm968, %v951, %v870
        %v985 = vsel %vm968, %v952, %v872
        %v986 = vsel %vm968, %v953, %v874
        %v987 = vsel %vm968, %v954, %v876
        %v988 = vsel %vm968, %v955, %v878
        %v989 = vsel %vm968, %v956, %v880
        %v990 = vsel %vm968, %v957, %v882
        %v991 = vsel %vm968, %v958, %v884
        %v992 = vsel %vm968, %v959, %v886
        %v993 = vsel %vm968, %v960, %v888
        %v994 = vsel %vm968, %v961, %v890
        %v995 = vsel %vm968, %v962, %v892
        %v996 = vsel %vm968, %v963, %v894
        %v997 = vsel %vm968, %v964, %v896
        %v998 = vsel %vm968, %v965, %v898
        %v999 = vsel %vm968, %v966, %v900
        %v1000 = vsel %vm968, %v967, %v902
        %v1001 = vpack.c.bf16 %v970, %v969
        %v1002 = vpack.c.bf16 %v972, %v971
        %v1003 = vpack.c.bf16 %v974, %v973
        %v1004 = vpack.c.bf16 %v976, %v975
        %v1005 = vpack.c.bf16 %v978, %v977
        %v1006 = vpack.c.bf16 %v980, %v979
        %v1007 = vpack.c.bf16 %v982, %v981
        %v1008 = vpack.c.bf16 %v984, %v983
        %v1009 = vpack.c.bf16 %v986, %v985
        %v1010 = vpack.c.bf16 %v988, %v987
        %v1011 = vpack.c.bf16 %v990, %v989
        %v1012 = vpack.c.bf16 %v992, %v991
        %v1013 = vpack.c.bf16 %v994, %v993
        %v1014 = vpack.c.bf16 %v996, %v995
        %v1015 = vpack.c.bf16 %v998, %v997
        %v1016 = vpack.c.bf16 %v1000, %v999
        %1033 = vrot.lane.b32.xlu0 %v1001, 12
        %v1034 = vpop.permute.xlu0 %1033
        %1035 = vrot.lane.b32.xlu0 %v1002, 12
        %v1036 = vpop.permute.xlu0 %1035
        %1037 = vrot.lane.b32.xlu0 %v1003, 12
        %v1038 = vpop.permute.xlu0 %1037
        %1039 = vrot.lane.b32.xlu0 %v1004, 12
        %v1040 = vpop.permute.xlu0 %1039
        %1041 = vrot.lane.b32.xlu0 %v1005, 12
        %v1042 = vpop.permute.xlu0 %1041
        %1043 = vrot.lane.b32.xlu0 %v1006, 12
        %v1044 = vpop.permute.xlu0 %1043
        %1045 = vrot.lane.b32.xlu0 %v1007, 12
        %v1046 = vpop.permute.xlu0 %1045
        %1047 = vrot.lane.b32.xlu0 %v1008, 12
        %v1048 = vpop.permute.xlu0 %1047
        %1049 = vrot.lane.b32.xlu0 %v1009, 12
        %v1050 = vpop.permute.xlu0 %1049
        %1051 = vrot.lane.b32.xlu0 %v1010, 12
        %v1052 = vpop.permute.xlu0 %1051
        %1053 = vrot.lane.b32.xlu0 %v1011, 12
        %v1054 = vpop.permute.xlu0 %1053
        %1055 = vrot.lane.b32.xlu0 %v1012, 12
        %v1056 = vpop.permute.xlu0 %1055
        %1057 = vrot.lane.b32.xlu0 %v1013, 12
        %v1058 = vpop.permute.xlu0 %1057
        %1059 = vrot.lane.b32.xlu0 %v1014, 12
        %v1060 = vpop.permute.xlu0 %1059
        %1061 = vrot.lane.b32.xlu0 %v1015, 12
        %v1062 = vpop.permute.xlu0 %1061
        %1063 = vrot.lane.b32.xlu0 %v1016, 12
        %v1064 = vpop.permute.xlu0 %1063
        %1066 = vrot.lane.b32.xlu0 %v1002, 24
        %v1067 = vpop.permute.xlu0 %1066
        %1068 = vrot.lane.b32.xlu0 %v1003, 24
        %v1069 = vpop.permute.xlu0 %1068
        %1070 = vrot.lane.b32.xlu0 %v1004, 24
        %v1071 = vpop.permute.xlu0 %1070
        %1072 = vrot.lane.b32.xlu0 %v1005, 24
        %v1073 = vpop.permute.xlu0 %1072
        %1074 = vrot.lane.b32.xlu0 %v1006, 24
        %v1075 = vpop.permute.xlu0 %1074
        %1076 = vrot.lane.b32.xlu0 %v1007, 24
        %v1077 = vpop.permute.xlu0 %1076
        %1078 = vrot.lane.b32.xlu0 %v1008, 24
        %v1079 = vpop.permute.xlu0 %1078
        %1080 = vrot.lane.b32.xlu0 %v1009, 24
        %v1081 = vpop.permute.xlu0 %1080
        %1082 = vrot.lane.b32.xlu0 %v1010, 24
        %v1083 = vpop.permute.xlu0 %1082
        %1084 = vrot.lane.b32.xlu0 %v1011, 24
        %v1085 = vpop.permute.xlu0 %1084
        %1086 = vrot.lane.b32.xlu0 %v1012, 24
        %v1087 = vpop.permute.xlu0 %1086
        %1088 = vrot.lane.b32.xlu0 %v1013, 24
        %v1089 = vpop.permute.xlu0 %1088
        %1090 = vrot.lane.b32.xlu0 %v1014, 24
        %v1091 = vpop.permute.xlu0 %1090
        %1092 = vrot.lane.b32.xlu0 %v1015, 24
        %v1093 = vpop.permute.xlu0 %1092
        %1094 = vrot.lane.b32.xlu0 %v1016, 24
        %v1095 = vpop.permute.xlu0 %1094
        %1096 = vrot.lane.b32.xlu0 0, 24
        %v1097 = vpop.permute.xlu0 %1096
        %vm1098 = vcmask 97280
        %v1101 = vsel %vm1098, 0, %v1034
        %v1104 = vsel %vm1098, %v1001, %v1036
        %v1107 = vsel %vm1098, %v1002, %v1038
        %v1110 = vsel %vm1098, %v1003, %v1040
        %v1113 = vsel %vm1098, %v1004, %v1042
        %v1116 = vsel %vm1098, %v1005, %v1044
        %v1119 = vsel %vm1098, %v1006, %v1046
        %v1122 = vsel %vm1098, %v1007, %v1048
        %v1125 = vsel %vm1098, %v1008, %v1050
        %v1128 = vsel %vm1098, %v1009, %v1052
        %v1131 = vsel %vm1098, %v1010, %v1054
        %v1134 = vsel %vm1098, %v1011, %v1056
        %v1137 = vsel %vm1098, %v1012, %v1058
        %v1140 = vsel %vm1098, %v1013, %v1060
        %v1143 = vsel %vm1098, %v1014, %v1062
        %v1146 = vsel %vm1098, %v1015, %v1064
        %vm1147 = vcmask 195584
        %v1149 = vsel %vm1147, %v1101, %v1067
        %v1151 = vsel %vm1147, %v1104, %v1069
        %v1153 = vsel %vm1147, %v1107, %v1071
        %v1155 = vsel %vm1147, %v1110, %v1073
        %v1157 = vsel %vm1147, %v1113, %v1075
        %v1159 = vsel %vm1147, %v1116, %v1077
        %v1161 = vsel %vm1147, %v1119, %v1079
        %v1163 = vsel %vm1147, %v1122, %v1081
        %v1165 = vsel %vm1147, %v1125, %v1083
        %v1167 = vsel %vm1147, %v1128, %v1085
        %v1169 = vsel %vm1147, %v1131, %v1087
        %v1171 = vsel %vm1147, %v1134, %v1089
        %v1173 = vsel %vm1147, %v1137, %v1091
        %v1175 = vsel %vm1147, %v1140, %v1093
        %v1177 = vsel %vm1147, %v1143, %v1095
        %v1179 = vsel %vm1147, %v1146, %v1097
        %v1180 = vld [vmem:[%s4] sm:$0xf]
        %v1181 = vld [vmem:[%s4 + $0x4] sm:$0xf]
        %v1182 = vld [vmem:[%s4 + $0x8] sm:$0xf]
        %v1183 = vld [vmem:[%s4 + $0xc] sm:$0xf]
        %v1184 = vld [vmem:[%s4 + $0x10] sm:$0x3]
        %v1185 = vld [vmem:[%s277] sm:$0xff]
        %v1186 = vld [vmem:[%s277 + $0x8] sm:$0xff]
        %v1187 = vld [vmem:[%s277 + $0x10] sm:$0xff]
        %v1188 = vld [vmem:[%s277 + $0x18] sm:$0xff]
        %v1189 = vld [vmem:[%s277 + $0x20] sm:$0xff]
        %v1190 = vld [vmem:[%s277 + $0x28] sm:$0xff]
        %v1191 = vld [vmem:[%s277 + $0x30] sm:$0xff]
        %v1192 = vld [vmem:[%s277 + $0x38] sm:$0xff]
        %v1193 = vld [vmem:[%s277 + $0x40] sm:$0xff]
        %v1194 = vld [vmem:[%s277 + $0x48] sm:$0xff]
        %v1195 = vld [vmem:[%s277 + $0x50] sm:$0xff]
        %v1196 = vld [vmem:[%s277 + $0x58] sm:$0xff]
        %v1197 = vld [vmem:[%s277 + $0x60] sm:$0xff]
        %v1198 = vld [vmem:[%s277 + $0x68] sm:$0xff]
        %v1199 = vld [vmem:[%s277 + $0x70] sm:$0xff]
        %v1200 = vld [vmem:[%s277 + $0x78] sm:$0xff]
        %v1201 = vld [vmem:[%s277 + $0x80] sm:$0xff]
        %v1202 = vld [vmem:[%s277 + $0x88] sm:$0xff]
        %v1203 = vld [vmem:[%s277 + $0x90] sm:$0xff]
        %v1204 = vld [vmem:[%s277 + $0x98] sm:$0xff]
        %v1205 = vld [vmem:[%s277 + $0xa0] sm:$0xff]
        %v1206 = vld [vmem:[%s277 + $0xa8] sm:$0xff]
        %v1207 = vld [vmem:[%s277 + $0xb0] sm:$0xff]
        %v1208 = vld [vmem:[%s277 + $0xb8] sm:$0xff]
        %v1209 = vld [vmem:[%s277 + $0xc0] sm:$0xff]
        %v1210 = vld [vmem:[%s277 + $0xc8] sm:$0xff]
        %v1211 = vld [vmem:[%s277 + $0xd0] sm:$0xff]
        %v1212 = vld [vmem:[%s277 + $0xd8] sm:$0xff]
        %v1213 = vld [vmem:[%s277 + $0xe0] sm:$0xff]
        %v1214 = vld [vmem:[%s277 + $0xe8] sm:$0xff]
        %v1215 = vld [vmem:[%s277 + $0xf0] sm:$0xff]
        %v1216 = vld [vmem:[%s277 + $0xf8] sm:$0xff]
        %v1222 = vunpack.c.l.b16 %v1180
        %v1223 = vunpack.c.l.b16 %v1181
        %v1224 = vunpack.c.l.b16 %v1182
        %v1225 = vunpack.c.l.b16 %v1183
        %v1226 = vunpack.c.l.b16 %v1184
        %v1227 = vpack.c.b16 %v1223, %v1222
        %v1228 = vpack.c.b16 %v1225, %v1224
        %v1229 = vpack.c.b16 %v1226, %v1226
        %vm1232 = vcmask 293888
        %v1233 = vsel %vm1232, %v1149, 0
        %v1235 = vsel %vm1232, %v1151, 0
        %v1237 = vsel %vm1232, %v1153, 0
        %v1239 = vsel %vm1232, %v1155, 0
        %v1241 = vsel %vm1232, %v1157, 0
        %v1243 = vsel %vm1232, %v1159, 0
        %v1245 = vsel %vm1232, %v1161, 0
        %v1247 = vsel %vm1232, %v1163, 0
        %v1249 = vsel %vm1232, %v1165, 0
        %v1251 = vsel %vm1232, %v1167, 0
        %v1253 = vsel %vm1232, %v1169, 0
        %v1255 = vsel %vm1232, %v1171, 0
        %v1257 = vsel %vm1232, %v1173, 0
        %v1259 = vsel %vm1232, %v1175, 0
        %v1261 = vsel %vm1232, %v1177, 0
        %v1263 = vsel %vm1232, %v1179, 0
        %vm1265 = vcmask 1041408
        %v1267 = vsel %vm1265, %v1229, 0
        %1269 = vmatprep.subr.bf16.mxu0 0
        %1270 = vmatpush1.bf16.msra.mxu0 %v1227
        %1271 = vmatprep.subr.bf16.mxu0 0
        %1272 = vmatpush1.bf16.msra.mxu0 %v1228
        %1273 = vmatprep.subr.bf16.mxu0 0
        %1274 = vmatpush1.bf16.msra.mxu0 %v1267
        %1275 = vmatprep.subr.bf16.mxu0 0
        %1276 = vmatpush1.bf16.msra.mxu0 0
        %1277 = vmatprep.subr.bf16.mxu0 0
        %1278 = vmatpush1.bf16.msra.mxu0 0
        %1279 = vmatprep.subr.bf16.mxu0 0
        %1280 = vmatpush1.bf16.msra.mxu0 0
        %1281 = vmatprep.subr.bf16.mxu0 0
        %1282 = vmatpush1.bf16.msra.mxu0 0
        %1283 = vmatprep.subr.bf16.mxu0 0
        %1284 = vmatpush1.bf16.msra.mxu0 0
        %1285 = vmatprep.subr.bf16.mxu0 0
        %1286 = vmatpush1.bf16.msra.mxu0 0
        %1287 = vmatprep.subr.bf16.mxu0 0
        %1288 = vmatpush1.bf16.msra.mxu0 0
        %1289 = vmatprep.subr.bf16.mxu0 0
        %1290 = vmatpush1.bf16.msra.mxu0 0
        %1291 = vmatprep.subr.bf16.mxu0 0
        %1292 = vmatpush1.bf16.msra.mxu0 0
        %1293 = vmatprep.subr.bf16.mxu0 0
        %1294 = vmatpush1.bf16.msra.mxu0 0
        %1295 = vmatprep.subr.bf16.mxu0 0
        %1296 = vmatpush1.bf16.msra.mxu0 0
        %1297 = vmatprep.subr.bf16.mxu0 0
        %1298 = vmatpush1.bf16.msra.mxu0 0
        %1299 = vmatprep.subr.bf16.mxu0 0
        %1300 = vmatpush1.bf16.msra.mxu0 0
        %1301 = vmatprep.mubr.bf16.mxu0 0
        %1302 = vmatmul.mubr.bf16.gmra.mrb[0].mxu0 %v1233
        %v1303 = vpop.f32.mrb[0].mxu0
        %v1304 = vadd.f32 %v1185, %v1303
        %v1305 = vpop.f32.mrb[0].mxu0
        %v1306 = vpop.f32.mrb[0].mxu0
        %v1307 = vadd.f32 %v1186, %v1306
        %v1308 = vpop.f32.mrb[0].mxu0
        %1309 = vmatprep.mubr.bf16.mxu0 0
        %1310 = vmatmul.mubr.bf16.gmra.mrb[0].mxu0 %v1235
        %v1311 = vpop.f32.mrb[0].mxu0
        %v1312 = vadd.f32 %v1187, %v1311
        %v1313 = vpop.f32.mrb[0].mxu0
        %v1314 = vpop.f32.mrb[0].mxu0
        %v1315 = vadd.f32 %v1188, %v1314
        %v1316 = vpop.f32.mrb[0].mxu0
        %1317 = vmatprep.mubr.bf16.mxu0 0
        %1318 = vmatmul.mubr.bf16.gmra.mrb[0].mxu0 %v1237
        %v1319 = vpop.f32.mrb[0].mxu0
        %v1320 = vadd.f32 %v1189, %v1319
        %v1321 = vpop.f32.mrb[0].mxu0
        %v1322 = vpop.f32.mrb[0].mxu0
        %v1323 = vadd.f32 %v1190, %v1322
        %v1324 = vpop.f32.mrb[0].mxu0
        %1325 = vmatprep.mubr.bf16.mxu0 0
        %1326 = vmatmul.mubr.bf16.gmra.mrb[0].mxu0 %v1239
        %v1327 = vpop.f32.mrb[0].mxu0
        %v1328 = vadd.f32 %v1191, %v1327
        %v1329 = vpop.f32.mrb[0].mxu0
        %v1330 = vpop.f32.mrb[0].mxu0
        %v1331 = vadd.f32 %v1192, %v1330
        %v1332 = vpop.f32.mrb[0].mxu0
        %1333 = vmatprep.mubr.bf16.mxu0 0
        %1334 = vmatmul.mubr.bf16.gmra.mrb[0].mxu0 %v1241
        %v1335 = vpop.f32.mrb[0].mxu0
        %v1336 = vadd.f32 %v1193, %v1335
        %v1337 = vpop.f32.mrb[0].mxu0
        %v1338 = vpop.f32.mrb[0].mxu0
        %v1339 = vadd.f32 %v1194, %v1338
        %v1340 = vpop.f32.mrb[0].mxu0
        %1341 = vmatprep.mubr.bf16.mxu0 0
        %1342 = vmatmul.mubr.bf16.gmra.mrb[0].mxu0 %v1243
        %v1343 = vpop.f32.mrb[0].mxu0
        %v1344 = vadd.f32 %v1195, %v1343
        %v1345 = vpop.f32.mrb[0].mxu0
        %v1346 = vpop.f32.mrb[0].mxu0
        %v1347 = vadd.f32 %v1196, %v1346
        %v1348 = vpop.f32.mrb[0].mxu0
        %1349 = vmatprep.mubr.bf16.mxu0 0
        %1350 = vmatmul.mubr.bf16.gmra.mrb[0].mxu0 %v1245
        %v1351 = vpop.f32.mrb[0].mxu0
        %v1352 = vadd.f32 %v1197, %v1351
        %v1353 = vpop.f32.mrb[0].mxu0
        %v1354 = vpop.f32.mrb[0].mxu0
        %v1355 = vadd.f32 %v1198, %v1354
        %v1356 = vpop.f32.mrb[0].mxu0
        %1357 = vmatprep.mubr.bf16.mxu0 0
        %1358 = vmatmul.mubr.bf16.gmra.mrb[0].mxu0 %v1247
        %v1359 = vpop.f32.mrb[0].mxu0
        %v1360 = vadd.f32 %v1199, %v1359
        %v1361 = vpop.f32.mrb[0].mxu0
        %v1362 = vpop.f32.mrb[0].mxu0
        %v1363 = vadd.f32 %v1200, %v1362
        %v1364 = vpop.f32.mrb[0].mxu0
        %1365 = vmatprep.mubr.bf16.mxu0 0
        %1366 = vmatmul.mubr.bf16.gmra.mrb[0].mxu0 %v1249
        %v1367 = vpop.f32.mrb[0].mxu0
        %v1368 = vadd.f32 %v1201, %v1367
        %v1369 = vpop.f32.mrb[0].mxu0
        %v1370 = vpop.f32.mrb[0].mxu0
        %v1371 = vadd.f32 %v1202, %v1370
        %v1372 = vpop.f32.mrb[0].mxu0
        %1373 = vmatprep.mubr.bf16.mxu0 0
        %1374 = vmatmul.mubr.bf16.gmra.mrb[0].mxu0 %v1251
        %v1375 = vpop.f32.mrb[0].mxu0
        %v1376 = vadd.f32 %v1203, %v1375
        %v1377 = vpop.f32.mrb[0].mxu0
        %v1378 = vpop.f32.mrb[0].mxu0
        %v1379 = vadd.f32 %v1204, %v1378
        %v1380 = vpop.f32.mrb[0].mxu0
        %1381 = vmatprep.mubr.bf16.mxu0 0
        %1382 = vmatmul.mubr.bf16.gmra.mrb[0].mxu0 %v1253
        %v1383 = vpop.f32.mrb[0].mxu0
        %v1384 = vadd.f32 %v1205, %v1383
        %v1385 = vpop.f32.mrb[0].mxu0
        %v1386 = vpop.f32.mrb[0].mxu0
        %v1387 = vadd.f32 %v1206, %v1386
        %v1388 = vpop.f32.mrb[0].mxu0
        %1389 = vmatprep.mubr.bf16.mxu0 0
        %1390 = vmatmul.mubr.bf16.gmra.mrb[0].mxu0 %v1255
        %v1391 = vpop.f32.mrb[0].mxu0
        %v1392 = vadd.f32 %v1207, %v1391
        %v1393 = vpop.f32.mrb[0].mxu0
        %v1394 = vpop.f32.mrb[0].mxu0
        %v1395 = vadd.f32 %v1208, %v1394
        %v1396 = vpop.f32.mrb[0].mxu0
        %1397 = vmatprep.mubr.bf16.mxu0 0
        %1398 = vmatmul.mubr.bf16.gmra.mrb[0].mxu0 %v1257
        %v1399 = vpop.f32.mrb[0].mxu0
        %v1400 = vadd.f32 %v1209, %v1399
        %v1401 = vpop.f32.mrb[0].mxu0
        %v1402 = vpop.f32.mrb[0].mxu0
        %v1403 = vadd.f32 %v1210, %v1402
        %v1404 = vpop.f32.mrb[0].mxu0
        %1405 = vmatprep.mubr.bf16.mxu0 0
        %1406 = vmatmul.mubr.bf16.gmra.mrb[0].mxu0 %v1259
        %v1407 = vpop.f32.mrb[0].mxu0
        %v1408 = vadd.f32 %v1211, %v1407
        %v1409 = vpop.f32.mrb[0].mxu0
        %v1410 = vpop.f32.mrb[0].mxu0
        %v1411 = vadd.f32 %v1212, %v1410
        %v1412 = vpop.f32.mrb[0].mxu0
        %1413 = vmatprep.mubr.bf16.mxu0 0
        %1414 = vmatmul.mubr.bf16.gmra.mrb[0].mxu0 %v1261
        %v1415 = vpop.f32.mrb[0].mxu0
        %v1416 = vadd.f32 %v1213, %v1415
        %v1417 = vpop.f32.mrb[0].mxu0
        %v1418 = vpop.f32.mrb[0].mxu0
        %v1419 = vadd.f32 %v1214, %v1418
        %v1420 = vpop.f32.mrb[0].mxu0
        %1421 = vmatprep.mubr.bf16.mxu0 0
        %1422 = vmatmul.mubr.bf16.gmra.mrb[0].mxu0 %v1263
        %v1423 = vpop.f32.mrb[0].mxu0
        %v1424 = vadd.f32 %v1215, %v1423
        %v1425 = vpop.f32.mrb[0].mxu0
        %v1426 = vpop.f32.mrb[0].mxu0
        %v1427 = vadd.f32 %v1216, %v1426
        %v1428 = vpop.f32.mrb[0].mxu0
        %1429 = vdwg.mxu0
        %v1430 = vsel %vm935, %v1304, 0.0
        %v1431 = vsel %vm935, %v1307, 0.0
        %v1432 = vadd.f32 %v1430, %v1431
        %v1433 = vsel %vm935, %v1312, 0.0
        %v1434 = vadd.f32 %v1432, %v1433
        %v1435 = vsel %vm935, %v1315, 0.0
        %v1436 = vadd.f32 %v1434, %v1435
        %v1437 = vsel %vm935, %v1320, 0.0
        %v1438 = vadd.f32 %v1436, %v1437
        %v1439 = vsel %vm935, %v1323, 0.0
        %v1440 = vadd.f32 %v1438, %v1439
        %v1441 = vsel %vm935, %v1328, 0.0
        %v1442 = vadd.f32 %v1440, %v1441
        %v1443 = vsel %vm935, %v1331, 0.0
        %v1444 = vadd.f32 %v1442, %v1443
        %v1445 = vsel %vm935, %v1336, 0.0
        %v1446 = vadd.f32 %v1444, %v1445
        %v1447 = vsel %vm935, %v1339, 0.0
        %v1448 = vadd.f32 %v1446, %v1447
        %v1449 = vsel %vm935, %v1344, 0.0
        %v1450 = vadd.f32 %v1448, %v1449
        %v1451 = vsel %vm935, %v1347, 0.0
        %v1452 = vadd.f32 %v1450, %v1451
        %v1453 = vsel %vm935, %v1352, 0.0
        %v1454 = vadd.f32 %v1452, %v1453
        %v1455 = vsel %vm935, %v1355, 0.0
        %v1456 = vadd.f32 %v1454, %v1455
        %v1457 = vsel %vm935, %v1360, 0.0
        %v1458 = vadd.f32 %v1456, %v1457
        %v1459 = vsel %vm935, %v1363, 0.0
        %v1460 = vadd.f32 %v1458, %v1459
        %v1461 = vsel %vm935, %v1368, 0.0
        %v1462 = vadd.f32 %v1460, %v1461
        %v1463 = vsel %vm935, %v1371, 0.0
        %v1464 = vadd.f32 %v1462, %v1463
        %v1465 = vsel %vm935, %v1376, 0.0
        %v1466 = vadd.f32 %v1464, %v1465
        %v1467 = vsel %vm935, %v1379, 0.0
        %v1468 = vadd.f32 %v1466, %v1467
        %v1469 = vsel %vm935, %v1384, 0.0
        %v1470 = vadd.f32 %v1468, %v1469
        %v1471 = vsel %vm935, %v1387, 0.0
        %v1472 = vadd.f32 %v1470, %v1471
        %v1473 = vsel %vm935, %v1392, 0.0
        %v1474 = vadd.f32 %v1472, %v1473
        %v1475 = vsel %vm935, %v1395, 0.0
        %v1476 = vadd.f32 %v1474, %v1475
        %v1477 = vsel %vm935, %v1400, 0.0
        %v1478 = vadd.f32 %v1476, %v1477
        %v1479 = vsel %vm935, %v1403, 0.0
        %v1480 = vadd.f32 %v1478, %v1479
        %v1481 = vsel %vm935, %v1408, 0.0
        %v1482 = vadd.f32 %v1480, %v1481
        %v1483 = vsel %vm935, %v1411, 0.0
        %v1484 = vadd.f32 %v1482, %v1483
        %v1485 = vsel %vm935, %v1416, 0.0
        %v1486 = vadd.f32 %v1484, %v1485
        %v1487 = vsel %vm935, %v1419, 0.0
        %v1488 = vadd.f32 %v1486, %v1487
        %v1489 = vsel %vm935, %v1424, 0.0
        %v1490 = vadd.f32 %v1488, %v1489
        %v1491 = vsel %vm935, %v1427, 0.0
        %v1492 = vadd.f32 %v1490, %v1491
        %v1493 = vrot.slane %v1492, 4
        %v1494 = vadd.f32 %v1492, %v1493
        %v1495 = vrot.slane %v1494, 2
        %v1496 = vadd.f32 %v1494, %v1495
        %v1497 = vrot.slane %v1496, 1
        %v1498 = vadd.f32 %v1496, %v1497
        %v1499 = vmul.f32 %v1498, 0.00390625
        %v1500 = vsub.f32 %v1304, %v1499
        %v1501 = vsub.f32 %v1307, %v1499
        %v1502 = vsub.f32 %v1312, %v1499
        %v1503 = vsub.f32 %v1315, %v1499
        %v1504 = vsub.f32 %v1320, %v1499
        %v1505 = vsub.f32 %v1323, %v1499
        %v1506 = vsub.f32 %v1328, %v1499
        %v1507 = vsub.f32 %v1331, %v1499
        %v1508 = vsub.f32 %v1336, %v1499
        %v1509 = vsub.f32 %v1339, %v1499
        %v1510 = vsub.f32 %v1344, %v1499
        %v1511 = vsub.f32 %v1347, %v1499
        %v1512 = vsub.f32 %v1352, %v1499
        %v1513 = vsub.f32 %v1355, %v1499
        %v1514 = vsub.f32 %v1360, %v1499
        %v1515 = vsub.f32 %v1363, %v1499
        %v1516 = vsub.f32 %v1368, %v1499
        %v1517 = vsub.f32 %v1371, %v1499
        %v1518 = vsub.f32 %v1376, %v1499
        %v1519 = vsub.f32 %v1379, %v1499
        %v1520 = vsub.f32 %v1384, %v1499
        %v1521 = vsub.f32 %v1387, %v1499
        %v1522 = vsub.f32 %v1392, %v1499
        %v1523 = vsub.f32 %v1395, %v1499
        %v1524 = vsub.f32 %v1400, %v1499
        %v1525 = vsub.f32 %v1403, %v1499
        %v1526 = vsub.f32 %v1408, %v1499
        %v1527 = vsub.f32 %v1411, %v1499
        %v1528 = vsub.f32 %v1416, %v1499
        %v1529 = vsub.f32 %v1419, %v1499
        %v1530 = vsub.f32 %v1424, %v1499
        %v1531 = vsub.f32 %v1427, %v1499
        %v1532 = vmul.f32 %v1500, %v1500
        %v1533 = vmul.f32 %v1501, %v1501
        %v1534 = vmul.f32 %v1502, %v1502
        %v1535 = vmul.f32 %v1503, %v1503
        %v1536 = vmul.f32 %v1504, %v1504
        %v1537 = vmul.f32 %v1505, %v1505
        %v1538 = vmul.f32 %v1506, %v1506
        %v1539 = vmul.f32 %v1507, %v1507
        %v1540 = vmul.f32 %v1508, %v1508
        %v1541 = vmul.f32 %v1509, %v1509
        %v1542 = vmul.f32 %v1510, %v1510
        %v1543 = vmul.f32 %v1511, %v1511
        %v1544 = vmul.f32 %v1512, %v1512
        %v1545 = vmul.f32 %v1513, %v1513
        %v1546 = vmul.f32 %v1514, %v1514
        %v1547 = vmul.f32 %v1515, %v1515
        %v1548 = vmul.f32 %v1516, %v1516
        %v1549 = vmul.f32 %v1517, %v1517
        %v1550 = vmul.f32 %v1518, %v1518
        %v1551 = vmul.f32 %v1519, %v1519
        %v1552 = vmul.f32 %v1520, %v1520
        %v1553 = vmul.f32 %v1521, %v1521
        %v1554 = vmul.f32 %v1522, %v1522
        %v1555 = vmul.f32 %v1523, %v1523
        %v1556 = vmul.f32 %v1524, %v1524
        %v1557 = vmul.f32 %v1525, %v1525
        %v1558 = vmul.f32 %v1526, %v1526
        %v1559 = vmul.f32 %v1527, %v1527
        %v1560 = vmul.f32 %v1528, %v1528
        %v1561 = vmul.f32 %v1529, %v1529
        %v1562 = vmul.f32 %v1530, %v1530
        %v1563 = vmul.f32 %v1531, %v1531
        %v1564 = vsel %vm935, %v1532, 0.0
        %v1565 = vsel %vm935, %v1533, 0.0
        %v1566 = vadd.f32 %v1564, %v1565
        %v1567 = vsel %vm935, %v1534, 0.0
        %v1568 = vadd.f32 %v1566, %v1567
        %v1569 = vsel %vm935, %v1535, 0.0
        %v1570 = vadd.f32 %v1568, %v1569
        %v1571 = vsel %vm935, %v1536, 0.0
        %v1572 = vadd.f32 %v1570, %v1571
        %v1573 = vsel %vm935, %v1537, 0.0
        %v1574 = vadd.f32 %v1572, %v1573
        %v1575 = vsel %vm935, %v1538, 0.0
        %v1576 = vadd.f32 %v1574, %v1575
        %v1577 = vsel %vm935, %v1539, 0.0
        %v1578 = vadd.f32 %v1576, %v1577
        %v1579 = vsel %vm935, %v1540, 0.0
        %v1580 = vadd.f32 %v1578, %v1579
        %v1581 = vsel %vm935, %v1541, 0.0
        %v1582 = vadd.f32 %v1580, %v1581
        %v1583 = vsel %vm935, %v1542, 0.0
        %v1584 = vadd.f32 %v1582, %v1583
        %v1585 = vsel %vm935, %v1543, 0.0
        %v1586 = vadd.f32 %v1584, %v1585
        %v1587 = vsel %vm935, %v1544, 0.0
        %v1588 = vadd.f32 %v1586, %v1587
        %v1589 = vsel %vm935, %v1545, 0.0
        %v1590 = vadd.f32 %v1588, %v1589
        %v1591 = vsel %vm935, %v1546, 0.0
        %v1592 = vadd.f32 %v1590, %v1591
        %v1593 = vsel %vm935, %v1547, 0.0
        %v1594 = vadd.f32 %v1592, %v1593
        %v1595 = vsel %vm935, %v1548, 0.0
        %v1596 = vadd.f32 %v1594, %v1595
        %v1597 = vsel %vm935, %v1549, 0.0
        %v1598 = vadd.f32 %v1596, %v1597
        %v1599 = vsel %vm935, %v1550, 0.0
        %v1600 = vadd.f32 %v1598, %v1599
        %v1601 = vsel %vm935, %v1551, 0.0
        %v1602 = vadd.f32 %v1600, %v1601
        %v1603 = vsel %vm935, %v1552, 0.0
        %v1604 = vadd.f32 %v1602, %v1603
        %v1605 = vsel %vm935, %v1553, 0.0
        %v1606 = vadd.f32 %v1604, %v1605
        %v1607 = vsel %vm935, %v1554, 0.0
        %v1608 = vadd.f32 %v1606, %v1607
        %v1609 = vsel %vm935, %v1555, 0.0
        %v1610 = vadd.f32 %v1608, %v1609
        %v1611 = vsel %vm935, %v1556, 0.0
        %v1612 = vadd.f32 %v1610, %v1611
        %v1613 = vsel %vm935, %v1557, 0.0
        %v1614 = vadd.f32 %v1612, %v1613
        %v1615 = vsel %vm935, %v1558, 0.0
        %v1616 = vadd.f32 %v1614, %v1615
        %v1617 = vsel %vm935, %v1559, 0.0
        %v1618 = vadd.f32 %v1616, %v1617
        %v1619 = vsel %vm935, %v1560, 0.0
        %v1620 = vadd.f32 %v1618, %v1619
        %v1621 = vsel %vm935, %v1561, 0.0
        %v1622 = vadd.f32 %v1620, %v1621
        %v1623 = vsel %vm935, %v1562, 0.0
        %v1624 = vadd.f32 %v1622, %v1623
        %v1625 = vsel %vm935, %v1563, 0.0
        %v1626 = vadd.f32 %v1624, %v1625
        %v1627 = vrot.slane %v1626, 4
        %v1628 = vadd.f32 %v1626, %v1627
        %v1629 = vrot.slane %v1628, 2
        %v1630 = vadd.f32 %v1628, %v1629
        %v1631 = vrot.slane %v1630, 1
        %v1632 = vadd.f32 %v1630, %v1631
        %vm1633 = vcmask 24576
        %1634 = vst.msk [vmem:[%s267] sm:$0x1] %vm1633, %v1499
        %s1635 = scalar_lea.vmem %s267, 1 [#allocation2]
        %1636 = vst.msk [vmem:[%s1635] sm:$0x1] %vm1633, %v1632
        %1637 = vst.msk [vmem:[%s282] sm:$0xff] %vm935, %v1304
        %1638 = vst.msk [vmem:[%s282 + $0x8] sm:$0xff] %vm935, %v1307
        %1639 = vst.msk [vmem:[%s282 + $0x10] sm:$0xff] %vm935, %v1312
        %1640 = vst.msk [vmem:[%s282 + $0x18] sm:$0xff] %vm935, %v1315
        %1641 = vst.msk [vmem:[%s282 + $0x20] sm:$0xff] %vm935, %v1320
        %1642 = vst.msk [vmem:[%s282 + $0x28] sm:$0xff] %vm935, %v1323
        %1643 = vst.msk [vmem:[%s282 + $0x30] sm:$0xff] %vm935, %v1328
        %1644 = vst.msk [vmem:[%s282 + $0x38] sm:$0xff] %vm935, %v1331
        %1645 = vst.msk [vmem:[%s282 + $0x40] sm:$0xff] %vm935, %v1336
        %1646 = vst.msk [vmem:[%s282 + $0x48] sm:$0xff] %vm935, %v1339
        %1647 = vst.msk [vmem:[%s282 + $0x50] sm:$0xff] %vm935, %v1344
        %1648 = vst.msk [vmem:[%s282 + $0x58] sm:$0xff] %vm935, %v1347
        %1649 = vst.msk [vmem:[%s282 + $0x60] sm:$0xff] %vm935, %v1352
        %1650 = vst.msk [vmem:[%s282 + $0x68] sm:$0xff] %vm935, %v1355
        %1651 = vst.msk [vmem:[%s282 + $0x70] sm:$0xff] %vm935, %v1360
        %1652 = vst.msk [vmem:[%s282 + $0x78] sm:$0xff] %vm935, %v1363
        %1653 = vst.msk [vmem:[%s282 + $0x80] sm:$0xff] %vm935, %v1368
        %1654 = vst.msk [vmem:[%s282 + $0x88] sm:$0xff] %vm935, %v1371
        %1655 = vst.msk [vmem:[%s282 + $0x90] sm:$0xff] %vm935, %v1376
        %1656 = vst.msk [vmem:[%s282 + $0x98] sm:$0xff] %vm935, %v1379
        %1657 = vst.msk [vmem:[%s282 + $0xa0] sm:$0xff] %vm935, %v1384
        %1658 = vst.msk [vmem:[%s282 + $0xa8] sm:$0xff] %vm935, %v1387
        %1659 = vst.msk [vmem:[%s282 + $0xb0] sm:$0xff] %vm935, %v1392
        %1660 = vst.msk [vmem:[%s282 + $0xb8] sm:$0xff] %vm935, %v1395
        %1661 = vst.msk [vmem:[%s282 + $0xc0] sm:$0xff] %vm935, %v1400
        %1662 = vst.msk [vmem:[%s282 + $0xc8] sm:$0xff] %vm935, %v1403
        %1663 = vst.msk [vmem:[%s282 + $0xd0] sm:$0xff] %vm935, %v1408
        %1664 = vst.msk [vmem:[%s282 + $0xd8] sm:$0xff] %vm935, %v1411
        %1665 = vst.msk [vmem:[%s282 + $0xe0] sm:$0xff] %vm935, %v1416
        %1666 = vst.msk [vmem:[%s282 + $0xe8] sm:$0xff] %vm935, %v1419
        %1667 = vst.msk [vmem:[%s282 + $0xf0] sm:$0xff] %vm935, %v1424
        %1668 = vst.msk [vmem:[%s282 + $0xf8] sm:$0xff] %vm935, %v1427
        %p1669 = scmp.lt.s32.totalorder %s21, 1
        %s1670 = scalar_select %p1669, %s21, 1
        %s1671 = smul.addr %s1670, 32
        %s1672 = smul.addr %s1671, 8
        %s1673 = scalar_lea.vmem %s5, %s1672
        %s1674 = sand.u32 %s170, 1
        %s1675 = scalar_lea.sflag [#allocation3], %s1674
        %s1676 = sand.u32 %s170, 1
        %s1677 = smul.addr %s1676, 2
        %s1678 = scalar_lea.vmem [#allocation2], %s1677
        // Predicated region
        $region41: #{residual_block_nhwc.3} parent=39 // pred_check
          %p1679 = pneg %p154
        $region42: #{residual_block_nhwc.3} parent=39 // pred_check_branch
          %1681 = sbr.rel (%p1679) target = $region44
        $region43: #{residual_block_nhwc.3} parent=39 // pred_region
          _
        $region44: #{residual_block_nhwc.3} parent=39 // pred_fallthru
          _
        // Predicated region
        $region45: #{residual_block_nhwc.3} parent=39 // pred_check
          %p1682 = pneg %p180
        $region46: #{residual_block_nhwc.3} parent=39 // pred_check_branch
          %1684 = sbr.rel (%p1682) target = $region48
        $region47: #{residual_block_nhwc.3} parent=39 // pred_region
          %s1686 = ssub.s32 32, 32
          %1687 = vsyncadd %s1675, %s1686
          %s1688 = smul.addr %s21, 2
          %s1689 = smul.addr %s1688, 16
          %s1690 = scalar_lea.hbm %s6, %s1689
          %s1691 = sshll.u32 %s1678, 4
          %s1692 = int_to_ptr.vmem [resolvable:$true] %s1691
          %1697 = dma.vmem_to_hbm [thread:$0]  %s1692, 32, %s1690, %s1675, 16, 16, 1
        $region48: #{residual_block_nhwc.3} parent=39 // pred_fallthru
          _
      $region40: #{residual_block_nhwc.3} parent=5 // pred_fallthru
        _
      %p1698 = scmp.le.s32.totalorder 2, %s16
      // Predicated region
      $region49: #{residual_block_nhwc.3} parent=5 // pred_check
        %p1699 = pneg %p1698
      $region50: #{residual_block_nhwc.3} parent=5 // pred_check_branch
        %1701 = sbr.rel (%p1699) target = $region52
      $region51: #{residual_block_nhwc.3} parent=5 // pred_region
        %s1702 = ssub.s32 %s16, 2
        // Predicated region
        $region53: #{residual_block_nhwc.3} parent=51 // pred_check
          %p1703 = pneg %p160
        $region54: #{residual_block_nhwc.3} parent=51 // pred_check_branch
          %1705 = sbr.rel (%p1703) target = $region56
        $region55: #{residual_block_nhwc.3} parent=51 // pred_region
          %p1706 = scmp.lt.s32.totalorder %s22, 1
          %s1707 = scalar_select %p1706, %s22, 1
          %s1708 = smul.addr %s1707, 32
          %s1709 = smul.addr %s1708, 8
          %s1710 = scalar_lea.vmem %s5, %s1709
        $region56: #{residual_block_nhwc.3} parent=51 // pred_fallthru
          _
        // Predicated region
        $region57: #{residual_block_nhwc.3} parent=51 // pred_check
          %p1711 = pneg %p186
        $region58: #{residual_block_nhwc.3} parent=51 // pred_check_branch
          %1713 = sbr.rel (%p1711) target = $region60
        $region59: #{residual_block_nhwc.3} parent=51 // pred_region
          %s1714 = sand.u32 %s171, 1
          %s1715 = scalar_lea.sflag [#allocation3], %s1714
          %s1716 = sand.u32 %s171, 1
          %s1717 = smul.addr %s1716, 2
          %s1718 = scalar_lea.vmem [#allocation2], %s1717
          %1719 = dma.done %s1715, 32
        $region60: #{residual_block_nhwc.3} parent=51 // pred_fallthru
          _
      $region52: #{residual_block_nhwc.3} parent=5 // pred_fallthru
        _
    $region6: #{residual_block_nhwc.3} parent=1 // loop_footer
      %s20 = sadd.s32 1, %s16
    $region7: #{residual_block_nhwc.3} parent=1 // loop_footer_branch
      %15 = sbr.rel target = $region3
    $region8: #{residual_block_nhwc.3} parent=1 // loop_exit
      _
    %1720 = vsyncpa [#allocation3], 1
    %s1721 = scalar_lea.sflag [#allocation3], 1
    %1722 = vsyncpa %s1721, 1

// kernel: residual_block_nhwc.2
$region0: #{residual_block_nhwc.2}
  #allocation0 [shape = 'u32[]', space=smem, size = 0x4, offset = 0x4, fixed_abs, tag = 'smem constant byte address 0x4 - core index']
  #allocation1 [shape = 'u32[144,128]{1,0:T(1,128)}', space=vmem, size = 0x12000, scoped, tag = 'internal scratch']
  %s0 = inlined_call_operand.vmem [shape: f32[2,16,16,4], index: 0, kind: input, shape index: {}]
  %s1 = inlined_call_operand.vmem [shape: f32[1,1,1,4], index: 1, kind: input, shape index: {}]
  %s2 = inlined_call_operand.vmem [shape: f32[1,1,1,4], index: 2, kind: input, shape index: {}]
  %s3 = inlined_call_operand.vmem [shape: bf16[36,4], index: 3, kind: input, shape index: {}]
  %s4 = inlined_call_operand.vmem [shape: bf16[2,16,16,4], index: 4, kind: output, shape index: {0}]
  %s5 = inlined_call_operand.vmem [shape: f32[2,2,1,4], index: 5, kind: output, shape index: {1}]
  %6 = xla_tuple %s4, %s5
  %s7 = sld [smem:[#allocation0]]
  $region57: #{residual_block_nhwc.2} parent=0
    _
  %s9 = ssub.s32 1, %s7
  %s10 = scalar_select 0, %s9, %s7
  loop: start=0, step=1, limit=4
  $region2: #{residual_block_nhwc.2} parent=0 // loop_pre_header
    _
  $region3: #{residual_block_nhwc.2} parent=0 // loop_header
    %s12 = sphi 0, %s16
    %p13 = scmp.ge.s32.totalorder %s12, 4
    %s22 = sphi 0, %s24
    %s25 = sphi 0, %s22
    %s26 = sphi 0, %s25
    %s42 = sphi 0, %s26
    %s46 = sphi 0, %s46
    %s48 = sphi 0, %s46
    %s49 = sphi 0, %s48
    %s63 = sphi 0, %s49
    %s67 = sphi 0, %s67
    %s69 = sphi 0, %s67
    %s70 = sphi 0, %s69
    %s84 = sphi 0, %s70
    %s88 = sphi 0, %s88
    %s90 = sphi 0, %s88
    %s91 = sphi 0, %s90
    %s105 = sphi 0, %s91
    %s111 = sphi 0, %s113
    %s114 = sphi 0, %s111
    %s115 = sphi 0, %s114
    %s131 = sphi 0, %s115
    %s137 = sphi 0, %s139
    %s140 = sphi 0, %s137
    %s141 = sphi 0, %s140
    %s157 = sphi 0, %s141
  $region4: #{residual_block_nhwc.2} parent=0 // loop_header_branch
    %15 = sbr.rel (%p13) target = $region8
  $region5: #{residual_block_nhwc.2} parent=0 // loop_body
    %s17 = ssub.s32 %s12, 1
    %s18 = ssub.s32 %s12, 2
    %s19 = sadd.s32 %s12, 1
    %s20 = ssub.s32 %s12, %s19
    %p21 = scmp.eq.s32.totalorder %s20, 0
    %s23 = sadd.s32 %s22, 1
    %s24 = scalar_select %p21, %s22, %s23
    %p27 = pneg %p21
    %p28 = scmp.eq.s32.totalorder %s12, 1
    %p29 = por %p27, %p28
    %p30 = scmp.ne.s32.totalorder %s22, %s25
    %p31 = scmp.eq.s32.totalorder %s12, 0
    %p32 = por %p30, %p31
    %p33 = scmp.ne.s32.totalorder %s22, %s25
    %p34 = scmp.eq.s32.totalorder %s17, 1
    %p35 = por %p33, %p34
    %p36 = scmp.ne.s32.totalorder %s25, %s26
    %p37 = scmp.eq.s32.totalorder %s17, 0
    %p38 = por %p36, %p37
    %p39 = scmp.ne.s32.totalorder %s25, %s26
    %p40 = scmp.eq.s32.totalorder %s18, 1
    %p41 = por %p39, %p40
    %p43 = scmp.ne.s32.totalorder %s26, %s42
    %p44 = scmp.eq.s32.totalorder %s18, 0
    %p45 = por %p43, %p44
    %s47 = sadd.s32 %s46, 1
    %p50 = scmp.eq.s32.totalorder %s12, 1
    %p51 = scmp.ne.s32.totalorder %s46, %s48
    %p52 = scmp.eq.s32.totalorder %s12, 0
    %p53 = por %p51, %p52
    %p54 = scmp.ne.s32.totalorder %s46, %s48
    %p55 = scmp.eq.s32.totalorder %s17, 1
    %p56 = por %p54, %p55
    %p57 = scmp.ne.s32.totalorder %s48, %s49
    %p58 = scmp.eq.s32.totalorder %s17, 0
    %p59 = por %p57, %p58
    %p60 = scmp.ne.s32.totalorder %s48, %s49
    %p61 = scmp.eq.s32.totalorder %s18, 1
    %p62 = por %p60, %p61
    %p64 = scmp.ne.s32.totalorder %s49, %s63
    %p65 = scmp.eq.s32.totalorder %s18, 0
    %p66 = por %p64, %p65
    %s68 = sadd.s32 %s67, 1
    %p71 = scmp.eq.s32.totalorder %s12, 1
    %p72 = scmp.ne.s32.totalorder %s67, %s69
    %p73 = scmp.eq.s32.totalorder %s12, 0
    %p74 = por %p72, %p73
    %p75 = scmp.ne.s32.totalorder %s67, %s69
    %p76 = scmp.eq.s32.totalorder %s17, 1
    %p77 = por %p75, %p76
    %p78 = scmp.ne.s32.totalorder %s69, %s70
    %p79 = scmp.eq.s32.totalorder %s17, 0
    %p80 = por %p78, %p79
    %p81 = scmp.ne.s32.totalorder %s69, %s70
    %p82 = scmp.eq.s32.totalorder %s18, 1
    %p83 = por %p81, %p82
    %p85 = scmp.ne.s32.totalorder %s70, %s84
    %p86 = scmp.eq.s32.totalorder %s18, 0
    %p87 = por %p85, %p86
    %s89 = sadd.s32 %s88, 1
    %p92 = scmp.eq.s32.totalorder %s12, 1
    %p93 = scmp.ne.s32.totalorder %s88, %s90
    %p94 = scmp.eq.s32.totalorder %s12, 0
    %p95 = por %p93, %p94
    %p96 = scmp.ne.s32.totalorder %s88, %s90
    %p97 = scmp.eq.s32.totalorder %s17, 1
    %p98 = por %p96, %p97
    %p99 = scmp.ne.s32.totalorder %s90, %s91
    %p100 = scmp.eq.s32.totalorder %s17, 0
    %p101 = por %p99, %p100
    %p102 = scmp.ne.s32.totalorder %s90, %s91
    %p103 = scmp.eq.s32.totalorder %s18, 1
    %p104 = por %p102, %p103
    %p106 = scmp.ne.s32.totalorder %s91, %s105
    %p107 = scmp.eq.s32.totalorder %s18, 0
    %p108 = por %p106, %p107
    %s109 = ssub.s32 %s12, %s19
    %p110 = scmp.eq.s32.totalorder %s109, 0
    %s112 = sadd.s32 %s111, 1
    %s113 = scalar_select %p110, %s111, %s112
    %p116 = pneg %p110
    %p117 = scmp.eq.s32.totalorder %s12, 1
    %p118 = por %p116, %p117
    %p119 = scmp.ne.s32.totalorder %s111, %s114
    %p120 = scmp.eq.s32.totalorder %s12, 0
    %p121 = por %p119, %p120
    %p122 = scmp.ne.s32.totalorder %s111, %s114
    %p123 = scmp.eq.s32.totalorder %s17, 1
    %p124 = por %p122, %p123
    %p125 = scmp.ne.s32.totalorder %s114, %s115
    %p126 = scmp.eq.s32.totalorder %s17, 0
    %p127 = por %p125, %p126
    %p128 = scmp.ne.s32.totalorder %s114, %s115
    %p129 = scmp.eq.s32.totalorder %s18, 1
    %p130 = por %p128, %p129
    %p132 = scmp.ne.s32.totalorder %s115, %s131
    %p133 = scmp.eq.s32.totalorder %s18, 0
    %p134 = por %p132, %p133
    %s135 = ssub.s32 %s12, %s19
    %p136 = scmp.eq.s32.totalorder %s135, 0
    %s138 = sadd.s32 %s137, 1
    %s139 = scalar_select %p136, %s137, %s138
    %p142 = pneg %p136
    %p143 = scmp.eq.s32.totalorder %s12, 1
    %p144 = por %p142, %p143
    %p145 = scmp.ne.s32.totalorder %s137, %s140
    %p146 = scmp.eq.s32.totalorder %s12, 0
    %p147 = por %p145, %p146
    %p148 = scmp.ne.s32.totalorder %s137, %s140
    %p149 = scmp.eq.s32.totalorder %s17, 1
    %p150 = por %p148, %p149
    %p151 = scmp.ne.s32.totalorder %s140, %s141
    %p152 = scmp.eq.s32.totalorder %s17, 0
    %p153 = por %p151, %p152
    %p154 = scmp.ne.s32.totalorder %s140, %s141
    %p155 = scmp.eq.s32.totalorder %s18, 1
    %p156 = por %p154, %p155
    %p158 = scmp.ne.s32.totalorder %s141, %s157
    %p159 = scmp.eq.s32.totalorder %s18, 0
    %p160 = por %p158, %p159
    %p161 = scmp.le.s32.totalorder 1, %s12
    %p162 = scmp.lt.s32.totalorder %s12, 3
    %p163 = pnand %p161, %p162
    %p164 = pneg %p163
    // Predicated region
    $region9: #{residual_block_nhwc.2} parent=5 // pred_check
      _
    $region10: #{residual_block_nhwc.2} parent=5 // pred_check_branch
      %166 = sbr.rel (%p163) target = $region12
    $region11: #{residual_block_nhwc.2} parent=5 // pred_region
      %s167 = ssub.s32 %s12, 1
      // Predicated region
      $region13: #{residual_block_nhwc.2} parent=11 // pred_check
        %p168 = pneg %p59
      $region14: #{residual_block_nhwc.2} parent=11 // pred_check_branch
        %170 = sbr.rel (%p168) target = $region16
      $region15: #{residual_block_nhwc.2} parent=11 // pred_region
        _
      $region16: #{residual_block_nhwc.2} parent=11 // pred_fallthru
        _
      // Predicated region
      $region17: #{residual_block_nhwc.2} parent=11 // pred_check
        %p171 = pneg %p80
      $region18: #{residual_block_nhwc.2} parent=11 // pred_check_branch
        %173 = sbr.rel (%p171) target = $region20
      $region19: #{residual_block_nhwc.2} parent=11 // pred_region
        _
      $region20: #{residual_block_nhwc.2} parent=11 // pred_fallthru
        _
      // Predicated region
      $region21: #{residual_block_nhwc.2} parent=11 // pred_check
        %p174 = pneg %p101
      $region22: #{residual_block_nhwc.2} parent=11 // pred_check_branch
        %176 = sbr.rel (%p174) target = $region24
      $region23: #{residual_block_nhwc.2} parent=11 // pred_region
        _
      $region24: #{residual_block_nhwc.2} parent=11 // pred_fallthru
        _
    $region12: #{residual_block_nhwc.2} parent=5 // pred_fallthru
      _
    %p177 = scmp.lt.s32.totalorder %s12, 2
    // Predicated region
    $region25: #{residual_block_nhwc.2} parent=5 // pred_check
      %p178 = pneg %p177
    $region26: #{residual_block_nhwc.2} parent=5 // pred_check_branch
      %180 = sbr.rel (%p178) target = $region28
    $region27: #{residual_block_nhwc.2} parent=5 // pred_region
      // Predicated region
      $region29: #{residual_block_nhwc.2} parent=27 // pred_check
        %p181 = pneg %p32
      $region30: #{residual_block_nhwc.2} parent=27 // pred_check_branch
        %183 = sbr.rel (%p181) target = $region32
      $region31: #{residual_block_nhwc.2} parent=27 // pred_region
        %p184 = scmp.lt.s32.totalorder %s12, 1
        %s185 = scalar_select %p184, %s12, 1
        %s186 = smul.addr %s185, 32
        %s187 = smul.addr %s186, 8
        %s188 = scalar_lea.vmem %s0, %s187
      $region32: #{residual_block_nhwc.2} parent=27 // pred_fallthru
        _
    $region28: #{residual_block_nhwc.2} parent=5 // pred_fallthru
      _
    %p189 = scmp.le.s32.totalorder 1, %s12
    %p190 = scmp.lt.s32.totalorder %s12, 3
    %p191 = pnand %p189, %p190
    %p192 = pneg %p191
    // Predicated region
    $region33: #{residual_block_nhwc.2} parent=5 // pred_check
      _
    $region34: #{residual_block_nhwc.2} parent=5 // pred_check_branch
      %194 = sbr.rel (%p191) target = $region36
    $region35: #{residual_block_nhwc.2} parent=5 // pred_region
      %s195 = ssub.s32 %s12, 1
      %p196 = scmp.lt.s32.totalorder %s17, 1
      %s197 = scalar_select %p196, %s17, 1
      %s198 = smul.addr %s197, 32
      %s199 = smul.addr %s198, 8
      %s200 = scalar_lea.vmem %s0, %s199
      %p201 = pneg %p38
      %p202 = pneg %p35
      %p203 = pneg %p59
      %p204 = pneg %p56
      %p205 = pneg %p80
      %p206 = pneg %p77
      %p207 = pneg %p101
      %p208 = pneg %p98
      %p209 = pneg %p127
      %p210 = pneg %p124
      %p211 = scmp.lt.s32.totalorder %s17, 1
      %s212 = scalar_select %p211, %s17, 1
      %s213 = smul.addr %s212, 32
      %s214 = smul.addr %s213, 4
      %s215 = scalar_lea.vmem %s4, %s214
      %p216 = pneg %p153
      %p217 = pneg %p150
      %p218 = scmp.lt.s32.totalorder %s17, 1
      %s219 = scalar_select %p218, %s17, 1
      %s220 = smul.addr %s219, 2
      %s221 = scalar_lea.vmem %s5, %s220
      %p222 = scmp.lt.s32.totalorder %s17, 1
      %s223 = scalar_select %p222, %s17, 1
      %s224 = smul.addr %s223, 32
      %s225 = smul.addr %s224, 8
      %s226 = scalar_lea.vmem %s0, %s225
      %p227 = scmp.lt.s32.totalorder %s17, 1
      %s228 = scalar_select %p227, %s17, 1
      %s229 = smul.addr %s228, 32
      %s230 = smul.addr %s229, 4
      %s231 = scalar_lea.vmem %s4, %s230
      %p232 = scmp.lt.s32.totalorder %s17, 1
      %s233 = scalar_select %p232, %s17, 1
      %s234 = smul.addr %s233, 2
      %s235 = scalar_lea.vmem %s5, %s234
      %v237 = vld [vmem:[%s226] sm:$0xff]
      %v238 = vld [vmem:[%s226 + $0x8] sm:$0xff]
      %v239 = vld [vmem:[%s226 + $0x10] sm:$0xff]
      %v240 = vld [vmem:[%s226 + $0x18] sm:$0xff]
      %v241 = vld [vmem:[%s226 + $0x20] sm:$0xff]
      %v242 = vld [vmem:[%s226 + $0x28] sm:$0xff]
      %v243 = vld [vmem:[%s226 + $0x30] sm:$0xff]
      %v244 = vld [vmem:[%s226 + $0x38] sm:$0xff]
      %v245 = vld [vmem:[%s226 + $0x40] sm:$0xff]
      %v246 = vld [vmem:[%s226 + $0x48] sm:$0xff]
      %v247 = vld [vmem:[%s226 + $0x50] sm:$0xff]
      %v248 = vld [vmem:[%s226 + $0x58] sm:$0xff]
      %v249 = vld [vmem:[%s226 + $0x60] sm:$0xff]
      %v250 = vld [vmem:[%s226 + $0x68] sm:$0xff]
      %v251 = vld [vmem:[%s226 + $0x70] sm:$0xff]
      %v252 = vld [vmem:[%s226 + $0x78] sm:$0xff]
      %v253 = vld [vmem:[%s226 + $0x80] sm:$0xff]
      %v254 = vld [vmem:[%s226 + $0x88] sm:$0xff]
      %v255 = vld [vmem:[%s226 + $0x90] sm:$0xff]
      %v256 = vld [vmem:[%s226 + $0x98] sm:$0xff]
      %v257 = vld [vmem:[%s226 + $0xa0] sm:$0xff]
      %v258 = vld [vmem:[%s226 + $0xa8] sm:$0xff]
      %v259 = vld [vmem:[%s226 + $0xb0] sm:$0xff]
      %v260 = vld [vmem:[%s226 + $0xb8] sm:$0xff]
      %v261 = vld [vmem:[%s226 + $0xc0] sm:$0xff]
      %v262 = vld [vmem:[%s226 + $0xc8] sm:$0xff]
      %v263 = vld [vmem:[%s226 + $0xd0] sm:$0xff]
      %v264 = vld [vmem:[%s226 + $0xd8] sm:$0xff]
      %v265 = vld [vmem:[%s226 + $0xe0] sm:$0xff]
      %v266 = vld [vmem:[%s226 + $0xe8] sm:$0xff]
      %v267 = vld [vmem:[%s226 + $0xf0] sm:$0xff]
      %v268 = vld [vmem:[%s226 + $0xf8] sm:$0xff]
      %v269 = vld [vmem:[%s1] sm:$0x1]
      %v271 = vlaneseq
      %v272 = vshrl.u32 %v271, 7
      %v273 = vsub.s32 0, %v272
      %v274 = vrot.slane %v269, %v273
      %v276 = vmul.f32 %v237, %v274
      %v277 = vmul.f32 %v238, %v274
      %v278 = vmul.f32 %v239, %v274
      %v279 = vmul.f32 %v240, %v274
      %v280 = vmul.f32 %v241, %v274
      %v281 = vmul.f32 %v242, %v274
      %v282 = vmul.f32 %v243, %v274
      %v283 = vmul.f32 %v244, %v274
      %v284 = vmul.f32 %v245, %v274
      %v285 = vmul.f32 %v246, %v274
      %v286 = vmul.f32 %v247, %v274
      %v287 = vmul.f32 %v248, %v274
      %v288 = vmul.f32 %v249, %v274
      %v289 = vmul.f32 %v250, %v274
      %v290 = vmul.f32 %v251, %v274
      %v291 = vmul.f32 %v252, %v274
      %v292 = vmul.f32 %v253, %v274
      %v293 = vmul.f32 %v254, %v274
      %v294 = vmul.f32 %v255, %v274
      %v295 = vmul.f32 %v256, %v274
      %v296 = vmul.f32 %v257, %v274
      %v297 = vmul.f32 %v258, %v274
      %v298 = vmul.f32 %v259, %v274
      %v299 = vmul.f32 %v260, %v274
      %v300 = vmul.f32 %v261, %v274
      %v301 = vmul.f32 %v262, %v274
      %v302 = vmul.f32 %v263, %v274
      %v303 = vmul.f32 %v264, %v274
      %v304 = vmul.f32 %v265, %v274
      %v305 = vmul.f32 %v266, %v274
      %v306 = vmul.f32 %v267, %v274
      %v307 = vmul.f32 %v268, %v274
      %v308 = vld [vmem:[%s2] sm:$0x1]
      %v310 = vlaneseq
      %v311 = vshrl.u32 %v310, 7
      %v312 = vsub.s32 0, %v311
      %v313 = vrot.slane %v308, %v312
      %v315 = vadd.f32 %v276, %v313
      %v316 = vadd.f32 %v277, %v313
      %v317 = vadd.f32 %v278, %v313
      %v318 = vadd.f32 %v279, %v313
      %v319 = vadd.f32 %v280, %v313
      %v320 = vadd.f32 %v281, %v313
      %v321 = vadd.f32 %v282, %v313
      %v322 = vadd.f32 %v283, %v313
      %v323 = vadd.f32 %v284, %v313
      %v324 = vadd.f32 %v285, %v313
      %v325 = vadd.f32 %v286, %v313
      %v326 = vadd.f32 %v287, %v313
      %v327 = vadd.f32 %v288, %v313
      %v328 = vadd.f32 %v289, %v313
      %v329 = vadd.f32 %v290, %v313
      %v330 = vadd.f32 %v291, %v313
      %v331 = vadd.f32 %v292, %v313
      %v332 = vadd.f32 %v293, %v313
      %v333 = vadd.f32 %v294, %v313
      %v334 = vadd.f32 %v295, %v313
      %v335 = vadd.f32 %v296, %v313
      %v336 = vadd.f32 %v297, %v313
      %v337 = vadd.f32 %v298, %v313
      %v338 = vadd.f32 %v299, %v313
      %v339 = vadd.f32 %v300, %v313
      %v340 = vadd.f32 %v301, %v313
      %v341 = vadd.f32 %v302, %v313
      %v342 = vadd.f32 %v303, %v313
      %v343 = vadd.f32 %v304, %v313
      %v344 = vadd.f32 %v305, %v313
      %v345 = vadd.f32 %v306, %v313
      %v346 = vadd.f32 %v307, %v313
      %v347 = vmax.f32 %v315, 0.0
      %v348 = vmax.f32 %v316, 0.0
      %v349 = vmax.f32 %v317, 0.0
      %v350 = vmax.f32 %v318, 0.0
      %v351 = vmax.f32 %v319, 0.0
      %v352 = vmax.f32 %v320, 0.0
      %v353 = vmax.f32 %v321, 0.0
      %v354 = vmax.f32 %v322, 0.0
      %v355 = vmax.f32 %v323, 0.0
      %v356 = vmax.f32 %v324, 0.0
      %v357 = vmax.f32 %v325, 0.0
      %v358 = vmax.f32 %v326, 0.0
      %v359 = vmax.f32 %v327, 0.0
      %v360 = vmax.f32 %v328, 0.0
      %v361 = vmax.f32 %v329, 0.0
      %v362 = vmax.f32 %v330, 0.0
      %v363 = vmax.f32 %v331, 0.0
      %v364 = vmax.f32 %v332, 0.0
      %v365 = vmax.f32 %v333, 0.0
      %v366 = vmax.f32 %v334, 0.0
      %v367 = vmax.f32 %v335, 0.0
      %v368 = vmax.f32 %v336, 0.0
      %v369 = vmax.f32 %v337, 0.0
      %v370 = vmax.f32 %v338, 0.0
      %v371 = vmax.f32 %v339, 0.0
      %v372 = vmax.f32 %v340, 0.0
      %v373 = vmax.f32 %v341, 0.0
      %v374 = vmax.f32 %v342, 0.0
      %v375 = vmax.f32 %v343, 0.0
      %v376 = vmax.f32 %v344, 0.0
      %v377 = vmax.f32 %v345, 0.0
      %v378 = vmax.f32 %v346, 0.0
      %v379 = vlaneseq
      %v380 = vshrl.u32 %v379, 7
      %v381 = vadd.s32 %v380, 8
      %v382 = vrot.slane %v347, 7
      %v383 = vrot.slane %v349, 7
      %v384 = vrot.slane %v351, 7
      %v385 = vrot.slane %v353, 7
      %v386 = vrot.slane %v355, 7
      %v387 = vrot.slane %v357, 7
      %v388 = vrot.slane %v359, 7
      %v389 = vrot.slane %v361, 7
      %v390 = vrot.slane %v363, 7
      %v391 = vrot.slane %v365, 7
      %v392 = vrot.slane %v367, 7
      %v393 = vrot.slane %v369, 7
      %v394 = vrot.slane %v371, 7
      %v395 = vrot.slane %v373, 7
      %v396 = vrot.slane %v375, 7
      %v397 = vrot.slane %v377, 7
      %v398 = vrot.slane %v348, 7
      %v399 = vrot.slane %v350, 7
      %v400 = vrot.slane %v352, 7
      %v401 = vrot.slane %v354, 7
      %v402 = vrot.slane %v356, 7
      %v403 = vrot.slane %v358, 7
      %v404 = vrot.slane %v360, 7
      %v405 = vrot.slane %v362, 7
      %v406 = vrot.slane %v364, 7
      %v407 = vrot.slane %v366, 7
      %v408 = vrot.slane %v368, 7
      %v409 = vrot.slane %v370, 7
      %v410 = vrot.slane %v372, 7
      %v411 = vrot.slane %v374, 7
      %v412 = vrot.slane %v376, 7
      %v413 = vrot.slane %v378, 7
      %vm414 = vcmp.lt.s32.totalorder %v380, 1
      %v415 = vsel %vm414, %v382, %v398
      %v416 = vsel %vm414, %v383, %v399
      %v417 = vsel %vm414, %v384, %v400
      %v418 = vsel %vm414, %v385, %v401
      %v419 = vsel %vm414, %v386, %v402
      %v420 = vsel %vm414, %v387, %v403
      %v421 = vsel %vm414, %v388, %v404
      %v422 = vsel %vm414, %v389, %v405
      %v423 = vsel %vm414, %v390, %v406
      %v424 = vsel %vm414, %v391, %v407
      %v425 = vsel %vm414, %v392, %v408
      %v426 = vsel %vm414, %v393, %v409
      %v427 = vsel %vm414, %v394, %v410
      %v428 = vsel %vm414, %v395, %v411
      %v429 = vsel %vm414, %v396, %v412
      %v430 = vsel %vm414, %v397, %v413
      %v431 = vsel %vm414, %v398, %v382
      %v432 = vsel %vm414, %v399, %v383
      %v433 = vsel %vm414, %v400, %v384
      %v434 = vsel %vm414, %v401, %v385
      %v435 = vsel %vm414, %v402, %v386
      %v436 = vsel %vm414, %v403, %v387
      %v437 = vsel %vm414, %v404, %v388
      %v438 = vsel %vm414, %v405, %v389
      %v439 = vsel %vm414, %v406, %v390
      %v440 = vsel %vm414, %v407, %v391
      %v441 = vsel %vm414, %v408, %v392
      %v442 = vsel %vm414, %v409, %v393
      %v443 = vsel %vm414, %v410, %v394
      %v444 = vsel %vm414, %v411, %v395
      %v445 = vsel %vm414, %v412, %v396
      %v446 = vsel %vm414, %v413, %v397
      %v447 = vadd.s32 %v380, 4294967295
      %v448 = vadd.s32 %v381, 4294967295
      %vm449 = vcmp.ge.s32.totalorder %v447, 0
      %vm450 = vcmp.ge.s32.totalorder %v448, 0
      %vm451 = vcmp.lt.s32.totalorder %v447, 16
      %vm452 = vcmp.lt.s32.totalorder %v448, 16
      %vm453 = vmand %vm449, %vm451
      %vm454 = vmand %vm450, %vm452
      %v455 = vsel %vm453, 1, 0
      %v456 = vsel %vm454, 1, 0
      %vm457 = vcmp.eq.s32.totalorder %v455, 1
      %vm458 = vcmp.eq.s32.totalorder %v456, 1
      %v459 = vsel %vm457, %v431, 0.0
      %v460 = vsel %vm458, %v415, 0.0
      %v461 = vsel %vm457, %v432, 0.0
      %v462 = vsel %vm458, %v416, 0.0
      %v463 = vsel %vm457, %v433, 0.0
      %v464 = vsel %vm458, %v417, 0.0
      %v465 = vsel %vm457, %v434, 0.0
      %v466 = vsel %vm458, %v418, 0.0
      %v467 = vsel %vm457, %v435, 0.0
      %v468 = vsel %vm458, %v419, 0.0
      %v469 = vsel %vm457, %v436, 0.0
      %v470 = vsel %vm458, %v420, 0.0
      %v471 = vsel %vm457, %v437, 0.0
      %v472 = vsel %vm458, %v421, 0.0
      %v473 = vsel %vm457, %v438, 0.0
      %v474 = vsel %vm458, %v422, 0.0
      %v475 = vsel %vm457, %v439, 0.0
      %v476 = vsel %vm458, %v423, 0.0
      %v477 = vsel %vm457, %v440, 0.0
      %v478 = vsel %vm458, %v424, 0.0
      %v479 = vsel %vm457, %v441, 0.0
      %v480 = vsel %vm458, %v425, 0.0
      %v481 = vsel %vm457, %v442, 0.0
      %v482 = vsel %vm458, %v426, 0.0
      %v483 = vsel %vm457, %v443, 0.0
      %v484 = vsel %vm458, %v427, 0.0
      %v485 = vsel %vm457, %v444, 0.0
      %v486 = vsel %vm458, %v428, 0.0
      %v487 = vsel %vm457, %v445, 0.0
      %v488 = vsel %vm458, %v429, 0.0
      %v489 = vsel %vm457, %v446, 0.0
      %v490 = vsel %vm458, %v430, 0.0
      %v491 = vrot.slane %v347, 1
      %v492 = vrot.slane %v349, 1
      %v493 = vrot.slane %v351, 1
      %v494 = vrot.slane %v353, 1
      %v495 = vrot.slane %v355, 1
      %v496 = vrot.slane %v357, 1
      %v497 = vrot.slane %v359, 1
      %v498 = vrot.slane %v361, 1
      %v499 = vrot.slane %v363, 1
      %v500 = vrot.slane %v365, 1
      %v501 = vrot.slane %v367, 1
      %v502 = vrot.slane %v369, 1
      %v503 = vrot.slane %v371, 1
      %v504 = vrot.slane %v373, 1
      %v505 = vrot.slane %v375, 1
      %v506 = vrot.slane %v377, 1
      %v507 = vrot.slane %v348, 1
      %v508 = vrot.slane %v350, 1
      %v509 = vrot.slane %v352, 1
      %v510 = vrot.slane %v354, 1
      %v511 = vrot.slane %v356, 1
      %v512 = vrot.slane %v358, 1
      %v513 = vrot.slane %v360, 1
      %v514 = vrot.slane %v362, 1
      %v515 = vrot.slane %v364, 1
      %v516 = vrot.slane %v366, 1
      %v517 = vrot.slane %v368, 1
      %v518 = vrot.slane %v370, 1
      %v519 = vrot.slane %v372, 1
      %v520 = vrot.slane %v374, 1
      %v521 = vrot.slane %v376, 1
      %v522 = vrot.slane %v378, 1
      %vm523 = vcmp.lt.s32.totalorder %v380, 7
      %v524 = vsel %vm523, %v491, %v507
      %v525 = vsel %vm523, %v492, %v508
      %v526 = vsel %vm523, %v493, %v509
      %v527 = vsel %vm523, %v494, %v510
      %v528 = vsel %vm523, %v495, %v511
      %v529 = vsel %vm523, %v496, %v512
      %v530 = vsel %vm523, %v497, %v513
      %v531 = vsel %vm523, %v498, %v514
      %v532 = vsel %vm523, %v499, %v515
      %v533 = vsel %vm523, %v500, %v516
      %v534 = vsel %vm523, %v501, %v517
      %v535 = vsel %vm523, %v502, %v518
      %v536 = vsel %vm523, %v503, %v519
      %v537 = vsel %vm523, %v504, %v520
      %v538 = vsel %vm523, %v505, %v521
      %v539 = vsel %vm523, %v506, %v522
      %v540 = vsel %vm523, %v507, %v491
      %v541 = vsel %vm523, %v508, %v492
      %v542 = vsel %vm523, %v509, %v493
      %v543 = vsel %vm523, %v510, %v494
      %v544 = vsel %vm523, %v511, %v495
      %v545 = vsel %vm523, %v512, %v496
      %v546 = vsel %vm523, %v513, %v497
      %v547 = vsel %vm523, %v514, %v498
      %v548 = vsel %vm523, %v515, %v499
      %v549 = vsel %vm523, %v516, %v500
      %v550 = vsel %vm523, %v517, %v501
      %v551 = vsel %vm523, %v518, %v502
      %v552 = vsel %vm523, %v519, %v503
      %v553 = vsel %vm523, %v520, %v504
      %v554 = vsel %vm523, %v521, %v505
      %v555 = vsel %vm523, %v522, %v506
      %v556 = vadd.s32 %v380, 1
      %v557 = vadd.s32 %v381, 1
      %vm558 = vcmp.ge.s32.totalorder %v556, 0
      %vm559 = vcmp.ge.s32.totalorder %v557, 0
      %vm560 = vcmp.lt.s32.totalorder %v556, 16
      %vm561 = vcmp.lt.s32.totalorder %v557, 16
      %vm562 = vmand %vm558, %vm560
      %vm563 = vmand %vm559, %vm561
      %v564 = vsel %vm562, 1, 0
      %v565 = vsel %vm563, 1, 0
      %vm566 = vcmp.eq.s32.totalorder %v564, 1
      %vm567 = vcmp.eq.s32.totalorder %v565, 1
      %v568 = vsel %vm566, %v524, 0.0
      %v569 = vsel %vm567, %v540, 0.0
      %v570 = vsel %vm566, %v525, 0.0
      %v571 = vsel %vm567, %v541, 0.0
      %v572 = vsel %vm566, %v526, 0.0
      %v573 = vsel %vm567, %v542, 0.0
      %v574 = vsel %vm566, %v527, 0.0
      %v575 = vsel %vm567, %v543, 0.0
      %v576 = vsel %vm566, %v528, 0.0
      %v577 = vsel %vm567, %v544, 0.0
      %v578 = vsel %vm566, %v529, 0.0
      %v579 = vsel %vm567, %v545, 0.0
      %v580 = vsel %vm566, %v530, 0.0
      %v581 = vsel %vm567, %v546, 0.0
      %v582 = vsel %vm566, %v531, 0.0
      %v583 = vsel %vm567, %v547, 0.0
      %v584 = vsel %vm566, %v532, 0.0
      %v585 = vsel %vm567, %v548, 0.0
      %v586 = vsel %vm566, %v533, 0.0
      %v587 = vsel %vm567, %v549, 0.0
      %v588 = vsel %vm566, %v534, 0.0
      %v589 = vsel %vm567, %v550, 0.0
      %v590 = vsel %vm566, %v535, 0.0
      %v591 = vsel %vm567, %v551, 0.0
      %v592 = vsel %vm566, %v536, 0.0
      %v593 = vsel %vm567, %v552, 0.0
      %v594 = vsel %vm566, %v537, 0.0
      %v595 = vsel %vm567, %v553, 0.0
      %v596 = vsel %vm566, %v538, 0.0
      %v597 = vsel %vm567, %v554, 0.0
      %v598 = vsel %vm566, %v539, 0.0
      %v599 = vsel %vm567, %v555, 0.0
      %632 = vrot.lane.b32.xlu0 %v347, 4
      %v633 = vpop.permute.xlu0 %632
      %634 = vrot.lane.b32.xlu0 %v348, 4
      %v635 = vpop.permute.xlu0 %634
      %636 = vrot.lane.b32.xlu0 %v349, 4
      %v637 = vpop.permute.xlu0 %636
      %638 = vrot.lane.b32.xlu0 %v350, 4
      %v639 = vpop.permute.xlu0 %638
      %640 = vrot.lane.b32.xlu0 %v351, 4
      %v641 = vpop.permute.xlu0 %640
      %642 = vrot.lane.b32.xlu0 %v352, 4
      %v643 = vpop.permute.xlu0 %642
      %644 = vrot.lane.b32.xlu0 %v353, 4
      %v645 = vpop.permute.xlu0 %644
      %646 = vrot.lane.b32.xlu0 %v354, 4
      %v647 = vpop.permute.xlu0 %646
      %648 = vrot.lane.b32.xlu0 %v355, 4
      %v649 = vpop.permute.xlu0 %648
      %650 = vrot.lane.b32.xlu0 %v356, 4
      %v651 = vpop.permute.xlu0 %650
      %652 = vrot.lane.b32.xlu0 %v357, 4
      %v653 = vpop.permute.xlu0 %652
      %654 = vrot.lane.b32.xlu0 %v358, 4
      %v655 = vpop.permute.xlu0 %654
      %656 = vrot.lane.b32.xlu0 %v359, 4
      %v657 = vpop.permute.xlu0 %656
      %658 = vrot.lane.b32.xlu0 %v360, 4
      %v659 = vpop.permute.xlu0 %658
      %660 = vrot.lane.b32.xlu0 %v361, 4
      %v661 = vpop.permute.xlu0 %660
      %662 = vrot.lane.b32.xlu0 %v362, 4
      %v663 = vpop.permute.xlu0 %662
      %664 = vrot.lane.b32.xlu0 %v363, 4
      %v665 = vpop.permute.xlu0 %664
      %666 = vrot.lane.b32.xlu0 %v364, 4
      %v667 = vpop.permute.xlu0 %666
      %668 = vrot.lane.b32.xlu0 %v365, 4
      %v669 = vpop.permute.xlu0 %668
      %670 = vrot.lane.b32.xlu0 %v366, 4
      %v671 = vpop.permute.xlu0 %670
      %672 = vrot.lane.b32.xlu0 %v367, 4
      %v673 = vpop.permute.xlu0 %672
      %674 = vrot.lane.b32.xlu0 %v368, 4
      %v675 = vpop.permute.xlu0 %674
      %676 = vrot.lane.b32.xlu0 %v369, 4
      %v677 = vpop.permute.xlu0 %676
      %678 = vrot.lane.b32.xlu0 %v370, 4
      %v679 = vpop.permute.xlu0 %678
      %680 = vrot.lane.b32.xlu0 %v371, 4
      %v681 = vpop.permute.xlu0 %680
      %682 = vrot.lane.b32.xlu0 %v372, 4
      %v683 = vpop.permute.xlu0 %682
      %684 = vrot.lane.b32.xlu0 %v373, 4
      %v685 = vpop.permute.xlu0 %684
      %686 = vrot.lane.b32.xlu0 %v374, 4
      %v687 = vpop.permute.xlu0 %686
      %688 = vrot.lane.b32.xlu0 %v375, 4
      %v689 = vpop.permute.xlu0 %688
      %690 = vrot.lane.b32.xlu0 %v376, 4
      %v691 = vpop.permute.xlu0 %690
      %692 = vrot.lane.b32.xlu0 %v377, 4
      %v693 = vpop.permute.xlu0 %692
      %694 = vrot.lane.b32.xlu0 %v378, 4
      %v695 = vpop.permute.xlu0 %694
      %760 = vrot.lane.b32.xlu0 %v568, 8
      %v761 = vpop.permute.xlu0 %760
      %762 = vrot.lane.b32.xlu0 %v569, 8
      %v763 = vpop.permute.xlu0 %762
      %764 = vrot.lane.b32.xlu0 %v570, 8
      %v765 = vpop.permute.xlu0 %764
      %766 = vrot.lane.b32.xlu0 %v571, 8
      %v767 = vpop.permute.xlu0 %766
      %768 = vrot.lane.b32.xlu0 %v572, 8
      %v769 = vpop.permute.xlu0 %768
      %770 = vrot.lane.b32.xlu0 %v573, 8
      %v771 = vpop.permute.xlu0 %770
      %772 = vrot.lane.b32.xlu0 %v574, 8
      %v773 = vpop.permute.xlu0 %772
      %774 = vrot.lane.b32.xlu0 %v575, 8
      %v775 = vpop.permute.xlu0 %774
      %776 = vrot.lane.b32.xlu0 %v576, 8
      %v777 = vpop.permute.xlu0 %776
      %778 = vrot.lane.b32.xlu0 %v577, 8
      %v779 = vpop.permute.xlu0 %778
      %780 = vrot.lane.b32.xlu0 %v578, 8
      %v781 = vpop.permute.xlu0 %780
      %782 = vrot.lane.b32.xlu0 %v579, 8
      %v783 = vpop.permute.xlu0 %782
      %784 = vrot.lane.b32.xlu0 %v580, 8
      %v785 = vpop.permute.xlu0 %784
      %786 = vrot.lane.b32.xlu0 %v581, 8
      %v787 = vpop.permute.xlu0 %786
      %788 = vrot.lane.b32.xlu0 %v582, 8
      %v789 = vpop.permute.xlu0 %788
      %790 = vrot.lane.b32.xlu0 %v583, 8
      %v791 = vpop.permute.xlu0 %790
      %792 = vrot.lane.b32.xlu0 %v584, 8
      %v793 = vpop.permute.xlu0 %792
      %794 = vrot.lane.b32.xlu0 %v585, 8
      %v795 = vpop.permute.xlu0 %794
      %796 = vrot.lane.b32.xlu0 %v586, 8
      %v797 = vpop.permute.xlu0 %796
      %798 = vrot.lane.b32.xlu0 %v587, 8
      %v799 = vpop.permute.xlu0 %798
      %800 = vrot.lane.b32.xlu0 %v588, 8
      %v801 = vpop.permute.xlu0 %800
      %802 = vrot.lane.b32.xlu0 %v589, 8
      %v803 = vpop.permute.xlu0 %802
      %804 = vrot.lane.b32.xlu0 %v590, 8
      %v805 = vpop.permute.xlu0 %804
      %806 = vrot.lane.b32.xlu0 %v591, 8
      %v807 = vpop.permute.xlu0 %806
      %808 = vrot.lane.b32.xlu0 %v592, 8
      %v809 = vpop.permute.xlu0 %808
      %810 = vrot.lane.b32.xlu0 %v593, 8
      %v811 = vpop.permute.xlu0 %810
      %812 = vrot.lane.b32.xlu0 %v594, 8
      %v813 = vpop.permute.xlu0 %812
      %814 = vrot.lane.b32.xlu0 %v595, 8
      %v815 = vpop.permute.xlu0 %814
      %816 = vrot.lane.b32.xlu0 %v596, 8
      %v817 = vpop.permute.xlu0 %816
      %818 = vrot.lane.b32.xlu0 %v597, 8
      %v819 = vpop.permute.xlu0 %818
      %820 = vrot.lane.b32.xlu0 %v598, 8
      %v821 = vpop.permute.xlu0 %820
      %822 = vrot.lane.b32.xlu0 %v599, 8
      %v823 = vpop.permute.xlu0 %822
      %vm856 = vcmask 31744
      %v857 = vsel %vm856, %v459, %v633
      %v858 = vsel %vm856, %v460, %v635
      %v859 = vsel %vm856, %v461, %v637
      %v860 = vsel %vm856, %v462, %v639
      %v861 = vsel %vm856, %v463, %v641
      %v862 = vsel %vm856, %v464, %v643
      %v863 = vsel %vm856, %v465, %v645
      %v864 = vsel %vm856, %v466, %v647
      %v865 = vsel %vm856, %v467, %v649
      %v866 = vsel %vm856, %v468, %v651
      %v867 = vsel %vm856, %v469, %v653
      %v868 = vsel %vm856, %v470, %v655
      %v869 = vsel %vm856, %v471, %v657
      %v870 = vsel %vm856, %v472, %v659
      %v871 = vsel %vm856, %v473, %v661
      %v872 = vsel %vm856, %v474, %v663
      %v873 = vsel %vm856, %v475, %v665
      %v874 = vsel %vm856, %v476, %v667
      %v875 = vsel %vm856, %v477, %v669
      %v876 = vsel %vm856, %v478, %v671
      %v877 = vsel %vm856, %v479, %v673
      %v878 = vsel %vm856, %v480, %v675
      %v879 = vsel %vm856, %v481, %v677
      %v880 = vsel %vm856, %v482, %v679
      %v881 = vsel %vm856, %v483, %v681
      %v882 = vsel %vm856, %v484, %v683
      %v883 = vsel %vm856, %v485, %v685
      %v884 = vsel %vm856, %v486, %v687
      %v885 = vsel %vm856, %v487, %v689
      %v886 = vsel %vm856, %v488, %v691
      %v887 = vsel %vm856, %v489, %v693
      %v888 = vsel %vm856, %v490, %v695
      %vm889 = vcmask 64512
      %v890 = vsel %vm889, %v857, %v761
      %v891 = vsel %vm889, %v858, %v763
      %v892 = vsel %vm889, %v859, %v765
      %v893 = vsel %vm889, %v860, %v767
      %v894 = vsel %vm889, %v861, %v769
      %v895 = vsel %vm889, %v862, %v771
      %v896 = vsel %vm889, %v863, %v773
      %v897 = vsel %vm889, %v864, %v775
      %v898 = vsel %vm889, %v865, %v777
      %v899 = vsel %vm889, %v866, %v779
      %v900 = vsel %vm889, %v867, %v781
      %v901 = vsel %vm889, %v868, %v783
      %v902 = vsel %vm889, %v869, %v785
      %v903 = vsel %vm889, %v870, %v787
      %v904 = vsel %vm889, %v871, %v789
      %v905 = vsel %vm889, %v872, %v791
      %v906 = vsel %vm889, %v873, %v793
      %v907 = vsel %vm889, %v874, %v795
      %v908 = vsel %vm889, %v875, %v797
      %v909 = vsel %vm889, %v876, %v799
      %v910 = vsel %vm889, %v877, %v801
      %v911 = vsel %vm889, %v878, %v803
      %v912 = vsel %vm889, %v879, %v805
      %v913 = vsel %vm889, %v880, %v807
      %v914 = vsel %vm889, %v881, %v809
      %v915 = vsel %vm889, %v882, %v811
      %v916 = vsel %vm889, %v883, %v813
      %v917 = vsel %vm889, %v884, %v815
      %v918 = vsel %vm889, %v885, %v817
      %v919 = vsel %vm889, %v886, %v819
      %v920 = vsel %vm889, %v887, %v821
      %v921 = vsel %vm889, %v888, %v823
      %v922 = vpack.c.bf16 %v891, %v890
      %v923 = vpack.c.bf16 %v893, %v892
      %v924 = vpack.c.bf16 %v895, %v894
      %v925 = vpack.c.bf16 %v897, %v896
      %v926 = vpack.c.bf16 %v899, %v898
      %v927 = vpack.c.bf16 %v901, %v900
      %v928 = vpack.c.bf16 %v903, %v902
      %v929 = vpack.c.bf16 %v905, %v904
      %v930 = vpack.c.bf16 %v907, %v906
      %v931 = vpack.c.bf16 %v909, %v908
      %v932 = vpack.c.bf16 %v911, %v910
      %v933 = vpack.c.bf16 %v913, %v912
      %v934 = vpack.c.bf16 %v915, %v914
      %v935 = vpack.c.bf16 %v917, %v916
      %v936 = vpack.c.bf16 %v919, %v918
      %v937 = vpack.c.bf16 %v921, %v920
      %954 = vrot.lane.b32.xlu0 %v922, 12
      %v955 = vpop.permute.xlu0 %954
      %956 = vrot.lane.b32.xlu0 %v923, 12
      %v957 = vpop.permute.xlu0 %956
      %958 = vrot.lane.b32.xlu0 %v924, 12
      %v959 = vpop.permute.xlu0 %958
      %960 = vrot.lane.b32.xlu0 %v925, 12
      %v961 = vpop.permute.xlu0 %960
      %962 = vrot.lane.b32.xlu0 %v926, 12
      %v963 = vpop.permute.xlu0 %962
      %964 = vrot.lane.b32.xlu0 %v927, 12
      %v965 = vpop.permute.xlu0 %964
      %966 = vrot.lane.b32.xlu0 %v928, 12
      %v967 = vpop.permute.xlu0 %966
      %968 = vrot.lane.b32.xlu0 %v929, 12
      %v969 = vpop.permute.xlu0 %968
      %970 = vrot.lane.b32.xlu0 %v930, 12
      %v971 = vpop.permute.xlu0 %970
      %972 = vrot.lane.b32.xlu0 %v931, 12
      %v973 = vpop.permute.xlu0 %972
      %974 = vrot.lane.b32.xlu0 %v932, 12
      %v975 = vpop.permute.xlu0 %974
      %976 = vrot.lane.b32.xlu0 %v933, 12
      %v977 = vpop.permute.xlu0 %976
      %978 = vrot.lane.b32.xlu0 %v934, 12
      %v979 = vpop.permute.xlu0 %978
      %980 = vrot.lane.b32.xlu0 %v935, 12
      %v981 = vpop.permute.xlu0 %980
      %982 = vrot.lane.b32.xlu0 %v936, 12
      %v983 = vpop.permute.xlu0 %982
      %984 = vrot.lane.b32.xlu0 %v937, 12
      %v985 = vpop.permute.xlu0 %984
      %987 = vrot.lane.b32.xlu0 %v923, 24
      %v988 = vpop.permute.xlu0 %987
      %989 = vrot.lane.b32.xlu0 %v924, 24
      %v990 = vpop.permute.xlu0 %989
      %991 = vrot.lane.b32.xlu0 %v925, 24
      %v992 = vpop.permute.xlu0 %991
      %993 = vrot.lane.b32.xlu0 %v926, 24
      %v994 = vpop.permute.xlu0 %993
      %995 = vrot.lane.b32.xlu0 %v927, 24
      %v996 = vpop.permute.xlu0 %995
      %997 = vrot.lane.b32.xlu0 %v928, 24
      %v998 = vpop.permute.xlu0 %997
      %999 = vrot.lane.b32.xlu0 %v929, 24
      %v1000 = vpop.permute.xlu0 %999
      %1001 = vrot.lane.b32.xlu0 %v930, 24
      %v1002 = vpop.permute.xlu0 %1001
      %1003 = vrot.lane.b32.xlu0 %v931, 24
      %v1004 = vpop.permute.xlu0 %1003
      %1005 = vrot.lane.b32.xlu0 %v932, 24
      %v1006 = vpop.permute.xlu0 %1005
      %1007 = vrot.lane.b32.xlu0 %v933, 24
      %v1008 = vpop.permute.xlu0 %1007
      %1009 = vrot.lane.b32.xlu0 %v934, 24
      %v1010 = vpop.permute.xlu0 %1009
      %1011 = vrot.lane.b32.xlu0 %v935, 24
      %v1012 = vpop.permute.xlu0 %1011
      %1013 = vrot.lane.b32.xlu0 %v936, 24
      %v1014 = vpop.permute.xlu0 %1013
      %1015 = vrot.lane.b32.xlu0 %v937, 24
      %v1016 = vpop.permute.xlu0 %1015
      %1017 = vrot.lane.b32.xlu0 0, 24
      %v1018 = vpop.permute.xlu0 %1017
      %vm1019 = vcmask 97280
      %v1022 = vsel %vm1019, 0, %v955
      %v1025 = vsel %vm1019, %v922, %v957
      %v1028 = vsel %vm1019, %v923, %v959
      %v1031 = vsel %vm1019, %v924, %v961
      %v1034 = vsel %vm1019, %v925, %v963
      %v1037 = vsel %vm1019, %v926, %v965
      %v1040 = vsel %vm1019, %v927, %v967
      %v1043 = vsel %vm1019, %v928, %v969
      %v1046 = vsel %vm1019, %v929, %v971
      %v1049 = vsel %vm1019, %v930, %v973
      %v1052 = vsel %vm1019, %v931, %v975
      %v1055 = vsel %vm1019, %v932, %v977
      %v1058 = vsel %vm1019, %v933, %v979
      %v1061 = vsel %vm1019, %v934, %v981
      %v1064 = vsel %vm1019, %v935, %v983
      %v1067 = vsel %vm1019, %v936, %v985
      %vm1068 = vcmask 195584
      %v1070 = vsel %vm1068, %v1022, %v988
      %v1072 = vsel %vm1068, %v1025, %v990
      %v1074 = vsel %vm1068, %v1028, %v992
      %v1076 = vsel %vm1068, %v1031, %v994
      %v1078 = vsel %vm1068, %v1034, %v996
      %v1080 = vsel %vm1068, %v1037, %v998
      %v1082 = vsel %vm1068, %v1040, %v1000
      %v1084 = vsel %vm1068, %v1043, %v1002
      %v1086 = vsel %vm1068, %v1046, %v1004
      %v1088 = vsel %vm1068, %v1049, %v1006
      %v1090 = vsel %vm1068, %v1052, %v1008
      %v1092 = vsel %vm1068, %v1055, %v1010
      %v1094 = vsel %vm1068, %v1058, %v1012
      %v1096 = vsel %vm1068, %v1061, %v1014
      %v1098 = vsel %vm1068, %v1064, %v1016
      %v1100 = vsel %vm1068, %v1067, %v1018
      %v1101 = vld [vmem:[%s3] sm:$0xf]
      %v1102 = vld [vmem:[%s3 + $0x4] sm:$0xf]
      %v1103 = vld [vmem:[%s3 + $0x8] sm:$0xf]
      %v1104 = vld [vmem:[%s3 + $0xc] sm:$0xf]
      %v1105 = vld [vmem:[%s3 + $0x10] sm:$0x3]
      %v1111 = vunpack.c.l.b16 %v1101
      %v1112 = vunpack.c.l.b16 %v1102
      %v1113 = vunpack.c.l.b16 %v1103
      %v1114 = vunpack.c.l.b16 %v1104
      %v1115 = vunpack.c.l.b16 %v1105
      %v1116 = vpack.c.b16 %v1112, %v1111
      %v1117 = vpack.c.b16 %v1114, %v1113
      %v1118 = vpack.c.b16 %v1115, %v1115
      %vm1121 = vcmask 293888
      %v1122 = vsel %vm1121, %v1070, 0
      %v1124 = vsel %vm1121, %v1072, 0
      %v1126 = vsel %vm1121, %v1074, 0
      %v1128 = vsel %vm1121, %v1076, 0
      %v1130 = vsel %vm1121, %v1078, 0
      %v1132 = vsel %vm1121, %v1080, 0
      %v1134 = vsel %vm1121, %v1082, 0
      %v1136 = vsel %vm1121, %v1084, 0
      %v1138 = vsel %vm1121, %v1086, 0
      %v1140 = vsel %vm1121, %v1088, 0
      %v1142 = vsel %vm1121, %v1090, 0
      %v1144 = vsel %vm1121, %v1092, 0
      %v1146 = vsel %vm1121, %v1094, 0
      %v1148 = vsel %vm1121, %v1096, 0
      %v1150 = vsel %vm1121, %v1098, 0
      %v1152 = vsel %vm1121, %v1100, 0
      %vm1154 = vcmask 1041408
      %v1156 = vsel %vm1154, %v1118, 0
      %1158 = vmatprep.subr.bf16.mxu0 0
      %1159 = vmatpush1.bf16.msra.mxu0 %v1116
      %1160 = vmatprep.subr.bf16.mxu0 0
      %1161 = vmatpush1.bf16.msra.mxu0 %v1117
      %1162 = vmatprep.subr.bf16.mxu0 0
      %1163 = vmatpush1.bf16.msra.mxu0 %v1156
      %1164 = vmatprep.subr.bf16.mxu0 0
      %1165 = vmatpush1.bf16.msra.mxu0 0
      %1166 = vmatprep.subr.bf16.mxu0 0
      %1167 = vmatpush1.bf16.msra.mxu0 0
      %1168 = vmatprep.subr.bf16.mxu0 0
      %1169 = vmatpush1.bf16.msra.mxu0 0
      %1170 = vmatprep.subr.bf16.mxu0 0
      %1171 = vmatpush1.bf16.msra.mxu0 0
      %1172 = vmatprep.subr.bf16.mxu0 0
      %1173 = vmatpush1.bf16.msra.mxu0 0
      %1174 = vmatprep.subr.bf16.mxu0 0
      %1175 = vmatpush1.bf16.msra.mxu0 0
      %1176 = vmatprep.subr.bf16.mxu0 0
      %1177 = vmatpush1.bf16.msra.mxu0 0
      %1178 = vmatprep.subr.bf16.mxu0 0
      %1179 = vmatpush1.bf16.msra.mxu0 0
      %1180 = vmatprep.subr.bf16.mxu0 0
      %1181 = vmatpush1.bf16.msra.mxu0 0
      %1182 = vmatprep.subr.bf16.mxu0 0
      %1183 = vmatpush1.bf16.msra.mxu0 0
      %1184 = vmatprep.subr.bf16.mxu0 0
      %1185 = vmatpush1.bf16.msra.mxu0 0
      %1186 = vmatprep.subr.bf16.mxu0 0
      %1187 = vmatpush1.bf16.msra.mxu0 0
      %1188 = vmatprep.subr.bf16.mxu0 0
      %1189 = vmatpush1.bf16.msra.mxu0 0
      %1190 = vmatprep.mubr.bf16.mxu0 0
      %1191 = vmatmul.mubr.bf16.gmra.mrb[0].mxu0 %v1122
      %v1192 = vpop.f32.mrb[0].mxu0
      %v1193 = vadd.f32 0.0, %v1192
      %v1194 = vpop.f32.mrb[0].mxu0
      %v1195 = vpop.f32.mrb[0].mxu0
      %v1196 = vadd.f32 0.0, %v1195
      %v1197 = vpop.f32.mrb[0].mxu0
      %1198 = vmatprep.mubr.bf16.mxu0 0
      %1199 = vmatmul.mubr.bf16.gmra.mrb[0].mxu0 %v1124
      %v1200 = vpop.f32.mrb[0].mxu0
      %v1201 = vadd.f32 0.0, %v1200
      %v1202 = vpop.f32.mrb[0].mxu0
      %v1203 = vpop.f32.mrb[0].mxu0
      %v1204 = vadd.f32 0.0, %v1203
      %v1205 = vpop.f32.mrb[0].mxu0
      %1206 = vmatprep.mubr.bf16.mxu0 0
      %1207 = vmatmul.mubr.bf16.gmra.mrb[0].mxu0 %v1126
      %v1208 = vpop.f32.mrb[0].mxu0
      %v1209 = vadd.f32 0.0, %v1208
      %v1210 = vpop.f32.mrb[0].mxu0
      %v1211 = vpop.f32.mrb[0].mxu0
      %v1212 = vadd.f32 0.0, %v1211
      %v1213 = vpop.f32.mrb[0].mxu0
      %1214 = vmatprep.mubr.bf16.mxu0 0
      %1215 = vmatmul.mubr.bf16.gmra.mrb[0].mxu0 %v1128
      %v1216 = vpop.f32.mrb[0].mxu0
      %v1217 = vadd.f32 0.0, %v1216
      %v1218 = vpop.f32.mrb[0].mxu0
      %v1219 = vpop.f32.mrb[0].mxu0
      %v1220 = vadd.f32 0.0, %v1219
      %v1221 = vpop.f32.mrb[0].mxu0
      %1222 = vmatprep.mubr.bf16.mxu0 0
      %1223 = vmatmul.mubr.bf16.gmra.mrb[0].mxu0 %v1130
      %v1224 = vpop.f32.mrb[0].mxu0
      %v1225 = vadd.f32 0.0, %v1224
      %v1226 = vpop.f32.mrb[0].mxu0
      %v1227 = vpop.f32.mrb[0].mxu0
      %v1228 = vadd.f32 0.0, %v1227
      %v1229 = vpop.f32.mrb[0].mxu0
      %1230 = vmatprep.mubr.bf16.mxu0 0
      %1231 = vmatmul.mubr.bf16.gmra.mrb[0].mxu0 %v1132
      %v1232 = vpop.f32.mrb[0].mxu0
      %v1233 = vadd.f32 0.0, %v1232
      %v1234 = vpop.f32.mrb[0].mxu0
      %v1235 = vpop.f32.mrb[0].mxu0
      %v1236 = vadd.f32 0.0, %v1235
      %v1237 = vpop.f32.mrb[0].mxu0
      %1238 = vmatprep.mubr.bf16.mxu0 0
      %1239 = vmatmul.mubr.bf16.gmra.mrb[0].mxu0 %v1134
      %v1240 = vpop.f32.mrb[0].mxu0
      %v1241 = vadd.f32 0.0, %v1240
      %v1242 = vpop.f32.mrb[0].mxu0
      %v1243 = vpop.f32.mrb[0].mxu0
      %v1244 = vadd.f32 0.0, %v1243
      %v1245 = vpop.f32.mrb[0].mxu0
      %1246 = vmatprep.mubr.bf16.mxu0 0
      %1247 = vmatmul.mubr.bf16.gmra.mrb[0].mxu0 %v1136
      %v1248 = vpop.f32.mrb[0].mxu0
      %v1249 = vadd.f32 0.0, %v1248
      %v1250 = vpop.f32.mrb[0].mxu0
      %v1251 = vpop.f32.mrb[0].mxu0
      %v1252 = vadd.f32 0.0, %v1251
      %v1253 = vpop.f32.mrb[0].mxu0
      %1254 = vmatprep.mubr.bf16.mxu0 0
      %1255 = vmatmul.mubr.bf16.gmra.mrb[0].mxu0 %v1138
      %v1256 = vpop.f32.mrb[0].mxu0
      %v1257 = vadd.f32 0.0, %v1256
      %v1258 = vpop.f32.mrb[0].mxu0
      %v1259 = vpop.f32.mrb[0].mxu0
      %v1260 = vadd.f32 0.0, %v1259
      %v1261 = vpop.f32.mrb[0].mxu0
      %1262 = vmatprep.mubr.bf16.mxu0 0
      %1263 = vmatmul.mubr.bf16.gmra.mrb[0].mxu0 %v1140
      %v1264 = vpop.f32.mrb[0].mxu0
      %v1265 = vadd.f32 0.0, %v1264
      %v1266 = vpop.f32.mrb[0].mxu0
      %v1267 = vpop.f32.mrb[0].mxu0
      %v1268 = vadd.f32 0.0, %v1267
      %v1269 = vpop.f32.mrb[0].mxu0
      %1270 = vmatprep.mubr.bf16.mxu0 0
      %1271 = vmatmul.mubr.bf16.gmra.mrb[0].mxu0 %v1142
      %v1272 = vpop.f32.mrb[0].mxu0
      %v1273 = vadd.f32 0.0, %v1272
      %v1274 = vpop.f32.mrb[0].mxu0
      %v1275 = vpop.f32.mrb[0].mxu0
      %v1276 = vadd.f32 0.0, %v1275
      %v1277 = vpop.f32.mrb[0].mxu0
      %1278 = vmatprep.mubr.bf16.mxu0 0
      %1279 = vmatmul.mubr.bf16.gmra.mrb[0].mxu0 %v1144
      %v1280 = vpop.f32.mrb[0].mxu0
      %v1281 = vadd.f32 0.0, %v1280
      %v1282 = vpop.f32.mrb[0].mxu0
      %v1283 = vpop.f32.mrb[0].mxu0
      %v1284 = vadd.f32 0.0, %v1283
      %v1285 = vpop.f32.mrb[0].mxu0
      %1286 = vmatprep.mubr.bf16.mxu0 0
      %1287 = vmatmul.mubr.bf16.gmra.mrb[0].mxu0 %v1146
      %v1288 = vpop.f32.mrb[0].mxu0
      %v1289 = vadd.f32 0.0, %v1288
      %v1290 = vpop.f32.mrb[0].mxu0
      %v1291 = vpop.f32.mrb[0].mxu0
      %v1292 = vadd.f32 0.0, %v1291
      %v1293 = vpop.f32.mrb[0].mxu0
      %1294 = vmatprep.mubr.bf16.mxu0 0
      %1295 = vmatmul.mubr.bf16.gmra.mrb[0].mxu0 %v1148
      %v1296 = vpop.f32.mrb[0].mxu0
      %v1297 = vadd.f32 0.0, %v1296
      %v1298 = vpop.f32.mrb[0].mxu0
      %v1299 = vpop.f32.mrb[0].mxu0
      %v1300 = vadd.f32 0.0, %v1299
      %v1301 = vpop.f32.mrb[0].mxu0
      %1302 = vmatprep.mubr.bf16.mxu0 0
      %1303 = vmatmul.mubr.bf16.gmra.mrb[0].mxu0 %v1150
      %v1304 = vpop.f32.mrb[0].mxu0
      %v1305 = vadd.f32 0.0, %v1304
      %v1306 = vpop.f32.mrb[0].mxu0
      %v1307 = vpop.f32.mrb[0].mxu0
      %v1308 = vadd.f32 0.0, %v1307
      %v1309 = vpop.f32.mrb[0].mxu0
      %1310 = vmatprep.mubr.bf16.mxu0 0
      %1311 = vmatmul.mubr.bf16.gmra.mrb[0].mxu0 %v1152
      %v1312 = vpop.f32.mrb[0].mxu0
      %v1313 = vadd.f32 0.0, %v1312
      %v1314 = vpop.f32.mrb[0].mxu0
      %v1315 = vpop.f32.mrb[0].mxu0
      %v1316 = vadd.f32 0.0, %v1315
      %v1317 = vpop.f32.mrb[0].mxu0
      %1318 = vdwg.mxu0
      %v1319 = vsel %vm856, %v1193, 0.0
      %v1320 = vsel %vm856, %v1196, 0.0
      %v1321 = vadd.f32 %v1319, %v1320
      %v1322 = vsel %vm856, %v1201, 0.0
      %v1323 = vadd.f32 %v1321, %v1322
      %v1324 = vsel %vm856, %v1204, 0.0
      %v1325 = vadd.f32 %v1323, %v1324
      %v1326 = vsel %vm856, %v1209, 0.0
      %v1327 = vadd.f32 %v1325, %v1326
      %v1328 = vsel %vm856, %v1212, 0.0
      %v1329 = vadd.f32 %v1327, %v1328
      %v1330 = vsel %vm856, %v1217, 0.0
      %v1331 = vadd.f32 %v1329, %v1330
      %v1332 = vsel %vm856, %v1220, 0.0
      %v1333 = vadd.f32 %v1331, %v1332
      %v1334 = vsel %vm856, %v1225, 0.0
      %v1335 = vadd.f32 %v1333, %v1334
      %v1336 = vsel %vm856, %v1228, 0.0
      %v1337 = vadd.f32 %v1335, %v1336
      %v1338 = vsel %vm856, %v1233, 0.0
      %v1339 = vadd.f32 %v1337, %v1338
      %v1340 = vsel %vm856, %v1236, 0.0
      %v1341 = vadd.f32 %v1339, %v1340
      %v1342 = vsel %vm856, %v1241, 0.0
      %v1343 = vadd.f32 %v1341, %v1342
      %v1344 = vsel %vm856, %v1244, 0.0
      %v1345 = vadd.f32 %v1343, %v1344
      %v1346 = vsel %vm856, %v1249, 0.0
      %v1347 = vadd.f32 %v1345, %v1346
      %v1348 = vsel %vm856, %v1252, 0.0
      %v1349 = vadd.f32 %v1347, %v1348
      %v1350 = vsel %vm856, %v1257, 0.0
      %v1351 = vadd.f32 %v1349, %v1350
      %v1352 = vsel %vm856, %v1260, 0.0
      %v1353 = vadd.f32 %v1351, %v1352
      %v1354 = vsel %vm856, %v1265, 0.0
      %v1355 = vadd.f32 %v1353, %v1354
      %v1356 = vsel %vm856, %v1268, 0.0
      %v1357 = vadd.f32 %v1355, %v1356
      %v1358 = vsel %vm856, %v1273, 0.0
      %v1359 = vadd.f32 %v1357, %v1358
      %v1360 = vsel %vm856, %v1276, 0.0
      %v1361 = vadd.f32 %v1359, %v1360
      %v1362 = vsel %vm856, %v1281, 0.0
      %v1363 = vadd.f32 %v1361, %v1362
      %v1364 = vsel %vm856, %v1284, 0.0
      %v1365 = vadd.f32 %v1363, %v1364
      %v1366 = vsel %vm856, %v1289, 0.0
      %v1367 = vadd.f32 %v1365, %v1366
      %v1368 = vsel %vm856, %v1292, 0.0
      %v1369 = vadd.f32 %v1367, %v1368
      %v1370 = vsel %vm856, %v1297, 0.0
      %v1371 = vadd.f32 %v1369, %v1370
      %v1372 = vsel %vm856, %v1300, 0.0
      %v1373 = vadd.f32 %v1371, %v1372
      %v1374 = vsel %vm856, %v1305, 0.0
      %v1375 = vadd.f32 %v1373, %v1374
      %v1376 = vsel %vm856, %v1308, 0.0
      %v1377 = vadd.f32 %v1375, %v1376
      %v1378 = vsel %vm856, %v1313, 0.0
      %v1379 = vadd.f32 %v1377, %v1378
      %v1380 = vsel %vm856, %v1316, 0.0
      %v1381 = vadd.f32 %v1379, %v1380
      %v1382 = vrot.slane %v1381, 4
      %v1383 = vadd.f32 %v1381, %v1382
      %v1384 = vrot.slane %v1383, 2
      %v1385 = vadd.f32 %v1383, %v1384
      %v1386 = vrot.slane %v1385, 1
      %v1387 = vadd.f32 %v1385, %v1386
      %v1388 = vmul.f32 %v1387, 0.00390625
      %v1389 = vsub.f32 %v1193, %v1388
      %v1390 = vsub.f32 %v1196, %v1388
      %v1391 = vsub.f32 %v1201, %v1388
      %v1392 = vsub.f32 %v1204, %v1388
      %v1393 = vsub.f32 %v1209, %v1388
      %v1394 = vsub.f32 %v1212, %v1388
      %v1395 = vsub.f32 %v1217, %v1388
      %v1396 = vsub.f32 %v1220, %v1388
      %v1397 = vsub.f32 %v1225, %v1388
      %v1398 = vsub.f32 %v1228, %v1388
      %v1399 = vsub.f32 %v1233, %v1388
      %v1400 = vsub.f32 %v1236, %v1388
      %v1401 = vsub.f32 %v1241, %v1388
      %v1402 = vsub.f32 %v1244, %v1388
      %v1403 = vsub.f32 %v1249, %v1388
      %v1404 = vsub.f32 %v1252, %v1388
      %v1405 = vsub.f32 %v1257, %v1388
      %v1406 = vsub.f32 %v1260, %v1388
      %v1407 = vsub.f32 %v1265, %v1388
      %v1408 = vsub.f32 %v1268, %v1388
      %v1409 = vsub.f32 %v1273, %v1388
      %v1410 = vsub.f32 %v1276, %v1388
      %v1411 = vsub.f32 %v1281, %v1388
      %v1412 = vsub.f32 %v1284, %v1388
      %v1413 = vsub.f32 %v1289, %v1388
      %v1414 = vsub.f32 %v1292, %v1388
      %v1415 = vsub.f32 %v1297, %v1388
      %v1416 = vsub.f32 %v1300, %v1388
      %v1417 = vsub.f32 %v1305, %v1388
      %v1418 = vsub.f32 %v1308, %v1388
      %v1419 = vsub.f32 %v1313, %v1388
      %v1420 = vsub.f32 %v1316, %v1388
      %v1421 = vmul.f32 %v1389, %v1389
      %v1422 = vmul.f32 %v1390, %v1390
      %v1423 = vmul.f32 %v1391, %v1391
      %v1424 = vmul.f32 %v1392, %v1392
      %v1425 = vmul.f32 %v1393, %v1393
      %v1426 = vmul.f32 %v1394, %v1394
      %v1427 = vmul.f32 %v1395, %v1395
      %v1428 = vmul.f32 %v1396, %v1396
      %v1429 = vmul.f32 %v1397, %v1397
      %v1430 = vmul.f32 %v1398, %v1398
      %v1431 = vmul.f32 %v1399, %v1399
      %v1432 = vmul.f32 %v1400, %v1400
      %v1433 = vmul.f32 %v1401, %v1401
      %v1434 = vmul.f32 %v1402, %v1402
      %v1435 = vmul.f32 %v1403, %v1403
      %v1436 = vmul.f32 %v1404, %v1404
      %v1437 = vmul.f32 %v1405, %v1405
      %v1438 = vmul.f32 %v1406, %v1406
      %v1439 = vmul.f32 %v1407, %v1407
      %v1440 = vmul.f32 %v1408, %v1408
      %v1441 = vmul.f32 %v1409, %v1409
      %v1442 = vmul.f32 %v1410, %v1410
      %v1443 = vmul.f32 %v1411, %v1411
      %v1444 = vmul.f32 %v1412, %v1412
      %v1445 = vmul.f32 %v1413, %v1413
      %v1446 = vmul.f32 %v1414, %v1414
      %v1447 = vmul.f32 %v1415, %v1415
      %v1448 = vmul.f32 %v1416, %v1416
      %v1449 = vmul.f32 %v1417, %v1417
      %v1450 = vmul.f32 %v1418, %v1418
      %v1451 = vmul.f32 %v1419, %v1419
      %v1452 = vmul.f32 %v1420, %v1420
      %v1453 = vsel %vm856, %v1421, 0.0
      %v1454 = vsel %vm856, %v1422, 0.0
      %v1455 = vadd.f32 %v1453, %v1454
      %v1456 = vsel %vm856, %v1423, 0.0
      %v1457 = vadd.f32 %v1455, %v1456
      %v1458 = vsel %vm856, %v1424, 0.0
      %v1459 = vadd.f32 %v1457, %v1458
      %v1460 = vsel %vm856, %v1425, 0.0
      %v1461 = vadd.f32 %v1459, %v1460
      %v1462 = vsel %vm856, %v1426, 0.0
      %v1463 = vadd.f32 %v1461, %v1462
      %v1464 = vsel %vm856, %v1427, 0.0
      %v1465 = vadd.f32 %v1463, %v1464
      %v1466 = vsel %vm856, %v1428, 0.0
      %v1467 = vadd.f32 %v1465, %v1466
      %v1468 = vsel %vm856, %v1429, 0.0
      %v1469 = vadd.f32 %v1467, %v1468
      %v1470 = vsel %vm856, %v1430, 0.0
      %v1471 = vadd.f32 %v1469, %v1470
      %v1472 = vsel %vm856, %v1431, 0.0
      %v1473 = vadd.f32 %v1471, %v1472
      %v1474 = vsel %vm856, %v1432, 0.0
      %v1475 = vadd.f32 %v1473, %v1474
      %v1476 = vsel %vm856, %v1433, 0.0
      %v1477 = vadd.f32 %v1475, %v1476
      %v1478 = vsel %vm856, %v1434, 0.0
      %v1479 = vadd.f32 %v1477, %v1478
      %v1480 = vsel %vm856, %v1435, 0.0
      %v1481 = vadd.f32 %v1479, %v1480
      %v1482 = vsel %vm856, %v1436, 0.0
      %v1483 = vadd.f32 %v1481, %v1482
      %v1484 = vsel %vm856, %v1437, 0.0
      %v1485 = vadd.f32 %v1483, %v1484
      %v1486 = vsel %vm856, %v1438, 0.0
      %v1487 = vadd.f32 %v1485, %v1486
      %v1488 = vsel %vm856, %v1439, 0.0
      %v1489 = vadd.f32 %v1487, %v1488
      %v1490 = vsel %vm856, %v1440, 0.0
      %v1491 = vadd.f32 %v1489, %v1490
      %v1492 = vsel %vm856, %v1441, 0.0
      %v1493 = vadd.f32 %v1491, %v1492
      %v1494 = vsel %vm856, %v1442, 0.0
      %v1495 = vadd.f32 %v1493, %v1494
      %v1496 = vsel %vm856, %v1443, 0.0
      %v1497 = vadd.f32 %v1495, %v1496
      %v1498 = vsel %vm856, %v1444, 0.0
      %v1499 = vadd.f32 %v1497, %v1498
      %v1500 = vsel %vm856, %v1445, 0.0
      %v1501 = vadd.f32 %v1499, %v1500
      %v1502 = vsel %vm856, %v1446, 0.0
      %v1503 = vadd.f32 %v1501, %v1502
      %v1504 = vsel %vm856, %v1447, 0.0
      %v1505 = vadd.f32 %v1503, %v1504
      %v1506 = vsel %vm856, %v1448, 0.0
      %v1507 = vadd.f32 %v1505, %v1506
      %v1508 = vsel %vm856, %v1449, 0.0
      %v1509 = vadd.f32 %v1507, %v1508
      %v1510 = vsel %vm856, %v1450, 0.0
      %v1511 = vadd.f32 %v1509, %v1510
      %v1512 = vsel %vm856, %v1451, 0.0
      %v1513 = vadd.f32 %v1511, %v1512
      %v1514 = vsel %vm856, %v1452, 0.0
      %v1515 = vadd.f32 %v1513, %v1514
      %v1516 = vrot.slane %v1515, 4
      %v1517 = vadd.f32 %v1515, %v1516
      %v1518 = vrot.slane %v1517, 2
      %v1519 = vadd.f32 %v1517, %v1518
      %v1520 = vrot.slane %v1519, 1
      %v1521 = vadd.f32 %v1519, %v1520
      %vm1522 = vcmask 24576
      %1523 = vst.msk [vmem:[%s235] sm:$0x1] %vm1522, %v1388
      %s1524 = scalar_lea.vmem %s235, 1
      %1525 = vst.msk [vmem:[%s1524] sm:$0x1] %vm1522, %v1521
      %v1526 = vpack.c.bf16 %v1196, %v1193
      %v1527 = vpack.c.bf16 %v1204, %v1201
      %v1528 = vpack.c.bf16 %v1212, %v1209
      %v1529 = vpack.c.bf16 %v1220, %v1217
      %v1530 = vpack.c.bf16 %v1228, %v1225
      %v1531 = vpack.c.bf16 %v1236, %v1233
      %v1532 = vpack.c.bf16 %v1244, %v1241
      %v1533 = vpack.c.bf16 %v1252, %v1249
      %v1534 = vpack.c.bf16 %v1260, %v1257
      %v1535 = vpack.c.bf16 %v1268, %v1265
      %v1536 = vpack.c.bf16 %v1276, %v1273
      %v1537 = vpack.c.bf16 %v1284, %v1281
      %v1538 = vpack.c.bf16 %v1292, %v1289
      %v1539 = vpack.c.bf16 %v1300, %v1297
      %v1540 = vpack.c.bf16 %v1308, %v1305
      %v1541 = vpack.c.bf16 %v1316, %v1313
      %v1558 = vunpack.c.l.b16 %v1526
      %v1559 = vunpack.c.h.b16 %v1526
      %v1560 = vunpack.c.l.b16 %v1527
      %v1561 = vunpack.c.h.b16 %v1527
      %v1562 = vunpack.c.l.b16 %v1528
      %v1563 = vunpack.c.h.b16 %v1528
      %v1564 = vunpack.c.l.b16 %v1529
      %v1565 = vunpack.c.h.b16 %v1529
      %v1566 = vunpack.c.l.b16 %v1530
      %v1567 = vunpack.c.h.b16 %v1530
      %v1568 = vunpack.c.l.b16 %v1531
      %v1569 = vunpack.c.h.b16 %v1531
      %v1570 = vunpack.c.l.b16 %v1532
      %v1571 = vunpack.c.h.b16 %v1532
      %v1572 = vunpack.c.l.b16 %v1533
      %v1573 = vunpack.c.h.b16 %v1533
      %v1574 = vunpack.c.l.b16 %v1534
      %v1575 = vunpack.c.h.b16 %v1534
      %v1576 = vunpack.c.l.b16 %v1535
      %v1577 = vunpack.c.h.b16 %v1535
      %v1578 = vunpack.c.l.b16 %v1536
      %v1579 = vunpack.c.h.b16 %v1536
      %v1580 = vunpack.c.l.b16 %v1537
      %v1581 = vunpack.c.h.b16 %v1537
      %v1582 = vunpack.c.l.b16 %v1538
      %v1583 = vunpack.c.h.b16 %v1538
      %v1584 = vunpack.c.l.b16 %v1539
      %v1585 = vunpack.c.h.b16 %v1539
      %v1586 = vunpack.c.l.b16 %v1540
      %v1587 = vunpack.c.h.b16 %v1540
      %v1588 = vunpack.c.l.b16 %v1541
      %v1589 = vunpack.c.h.b16 %v1541
      %v1590 = vpack.c.b16 %v1558, %v1558
      %v1591 = vpack.c.b16 %v1559, %v1559
      %v1592 = vpack.c.b16 %v1560, %v1560
      %v1593 = vpack.c.b16 %v1561, %v1561
      %v1594 = vpack.c.b16 %v1562, %v1562
      %v1595 = vpack.c.b16 %v1563, %v1563
      %v1596 = vpack.c.b16 %v1564, %v1564
      %v1597 = vpack.c.b16 %v1565, %v1565
      %v1598 = vpack.c.b16 %v1566, %v1566
      %v1599 = vpack.c.b16 %v1567, %v1567
      %v1600 = vpack.c.b16 %v1568, %v1568
      %v1601 = vpack.c.b16 %v1569, %v1569
      %v1602 = vpack.c.b16 %v1570, %v1570
      %v1603 = vpack.c.b16 %v1571, %v1571
      %v1604 = vpack.c.b16 %v1572, %v1572
      %v1605 = vpack.c.b16 %v1573, %v1573
      %v1606 = vpack.c.b16 %v1574, %v1574
      %v1607 = vpack.c.b16 %v1575, %v1575
      %v1608 = vpack.c.b16 %v1576, %v1576
      %v1609 = vpack.c.b16 %v1577, %v1577
      %v1610 = vpack.c.b16 %v1578, %v1578
      %v1611 = vpack.c.b16 %v1579, %v1579
      %v1612 = vpack.c.b16 %v1580, %v1580
      %v1613 = vpack.c.b16 %v1581, %v1581
      %v1614 = vpack.c.b16 %v1582, %v1582
      %v1615 = vpack.c.b16 %v1583, %v1583
      %v1616 = vpack.c.b16 %v1584, %v1584
      %v1617 = vpack.c.b16 %v1585, %v1585
      %v1618 = vpack.c.b16 %v1586, %v1586
      %v1619 = vpack.c.b16 %v1587, %v1587
      %v1620 = vpack.c.b16 %v1588, %v1588
      %v1621 = vpack.c.b16 %v1589, %v1589
      %vm1654 = vcmask 27648
      %1655 = vst.msk [vmem:[%s231] sm:$0xf] %vm1654, %v1590
      %1656 = vst.msk [vmem:[%s231 + $0x4] sm:$0xf] %vm1654, %v1591
      %1657 = vst.msk [vmem:[%s231 + $0x8] sm:$0xf] %vm1654, %v1592
      %1658 = vst.msk [vmem:[%s231 + $0xc] sm:$0xf] %vm1654, %v1593
      %1659 = vst.msk [vmem:[%s231 + $0x10] sm:$0xf] %vm1654, %v1594
      %1660 = vst.msk [vmem:[%s231 + $0x14] sm:$0xf] %vm1654, %v1595
      %1661 = vst.msk [vmem:[%s231 + $0x18] sm:$0xf] %vm1654, %v1596
      %1662 = vst.msk [vmem:[%s231 + $0x1c] sm:$0xf] %vm1654, %v1597
      %1663 = vst.msk [vmem:[%s231 + $0x20] sm:$0xf] %vm1654, %v1598
      %1664 = vst.msk [vmem:[%s231 + $0x24] sm:$0xf] %vm1654, %v1599
      %1665 = vst.msk [vmem:[%s231 + $0x28] sm:$0xf] %vm1654, %v1600
      %1666 = vst.msk [vmem:[%s231 + $0x2c] sm:$0xf] %vm1654, %v1601
      %1667 = vst.msk [vmem:[%s231 + $0x30] sm:$0xf] %vm1654, %v1602
      %1668 = vst.msk [vmem:[%s231 + $0x34] sm:$0xf] %vm1654, %v1603
      %1669 = vst.msk [vmem:[%s231 + $0x38] sm:$0xf] %vm1654, %v1604
      %1670 = vst.msk [vmem:[%s231 + $0x3c] sm:$0xf] %vm1654, %v1605
      %1671 = vst.msk [vmem:[%s231 + $0x40] sm:$0xf] %vm1654, %v1606
      %1672 = vst.msk [vmem:[%s231 + $0x44] sm:$0xf] %vm1654, %v1607
      %1673 = vst.msk [vmem:[%s231 + $0x48] sm:$0xf] %vm1654, %v1608
      %1674 = vst.msk [vmem:[%s231 + $0x4c] sm:$0xf] %vm1654, %v1609
      %1675 = vst.msk [vmem:[%s231 + $0x50] sm:$0xf] %vm1654, %v1610
      %1676 = vst.msk [vmem:[%s231 + $0x54] sm:$0xf] %vm1654, %v1611
      %1677 = vst.msk [vmem:[%s231 + $0x58] sm:$0xf] %vm1654, %v1612
      %1678 = vst.msk [vmem:[%s231 + $0x5c] sm:$0xf] %vm1654, %v1613
      %1679 = vst.msk [vmem:[%s231 + $0x60] sm:$0xf] %vm1654, %v1614
      %1680 = vst.msk [vmem:[%s231 + $0x64] sm:$0xf] %vm1654, %v1615
      %1681 = vst.msk [vmem:[%s231 + $0x68] sm:$0xf] %vm1654, %v1616
      %1682 = vst.msk [vmem:[%s231 + $0x6c] sm:$0xf] %vm1654, %v1617
      %1683 = vst.msk [vmem:[%s231 + $0x70] sm:$0xf] %vm1654, %v1618
      %1684 = vst.msk [vmem:[%s231 + $0x74] sm:$0xf] %vm1654, %v1619
      %1685 = vst.msk [vmem:[%s231 + $0x78] sm:$0xf] %vm1654, %v1620
      %1686 = vst.msk [vmem:[%s231 + $0x7c] sm:$0xf] %vm1654, %v1621
      %p1687 = scmp.lt.s32.totalorder %s17, 1
      %s1688 = scalar_select %p1687, %s17, 1
      %s1689 = smul.addr %s1688, 32
      %s1690 = smul.addr %s1689, 4
      %s1691 = scalar_lea.vmem %s4, %s1690
      %p1692 = scmp.lt.s32.totalorder %s17, 1
      %s1693 = scalar_select %p1692, %s17, 1
      %s1694 = smul.addr %s1693, 2
      %s1695 = scalar_lea.vmem %s5, %s1694
      // Predicated region
      $region37: #{residual_block_nhwc.2} parent=35 // pred_check
        %p1696 = pneg %p124
      $region38: #{residual_block_nhwc.2} parent=35 // pred_check_branch
        %1698 = sbr.rel (%p1696) target = $region40
      $region39: #{residual_block_nhwc.2} parent=35 // pred_region
        _
      $region40: #{residual_block_nhwc.2} parent=35 // pred_fallthru
        _
      // Predicated region
      $region41: #{residual_block_nhwc.2} parent=35 // pred_check
        %p1699 = pneg %p150
      $region42: #{residual_block_nhwc.2} parent=35 // pred_check_branch
        %1701 = sbr.rel (%p1699) target = $region44
      $region43: #{residual_block_nhwc.2} parent=35 // pred_region
        _
      $region44: #{residual_block_nhwc.2} parent=35 // pred_fallthru
        _
    $region36: #{residual_block_nhwc.2} parent=5 // pred_fallthru
      _
    %p1702 = scmp.le.s32.totalorder 2, %s12
    // Predicated region
    $region45: #{residual_block_nhwc.2} parent=5 // pred_check
      %p1703 = pneg %p1702
    $region46: #{residual_block_nhwc.2} parent=5 // pred_check_branch
      %1705 = sbr.rel (%p1703) target = $region48
    $region47: #{residual_block_nhwc.2} parent=5 // pred_region
      %s1706 = ssub.s32 %s12, 2
      // Predicated region
      $region49: #{residual_block_nhwc.2} parent=47 // pred_check
        %p1707 = pneg %p130
      $region50: #{residual_block_nhwc.2} parent=47 // pred_check_branch
        %1709 = sbr.rel (%p1707) target = $region52
      $region51: #{residual_block_nhwc.2} parent=47 // pred_region
        %p1710 = scmp.lt.s32.totalorder %s18, 1
        %s1711 = scalar_select %p1710, %s18, 1
        %s1712 = smul.addr %s1711, 32
        %s1713 = smul.addr %s1712, 4
        %s1714 = scalar_lea.vmem %s4, %s1713
      $region52: #{residual_block_nhwc.2} parent=47 // pred_fallthru
        _
      // Predicated region
      $region53: #{residual_block_nhwc.2} parent=47 // pred_check
        %p1715 = pneg %p156
      $region54: #{residual_block_nhwc.2} parent=47 // pred_check_branch
        %1717 = sbr.rel (%p1715) target = $region56
      $region55: #{residual_block_nhwc.2} parent=47 // pred_region
        %p1718 = scmp.lt.s32.totalorder %s18, 1
        %s1719 = scalar_select %p1718, %s18, 1
        %s1720 = smul.addr %s1719, 2
        %s1721 = scalar_lea.vmem %s5, %s1720
      $region56: #{residual_block_nhwc.2} parent=47 // pred_fallthru
        _
    $region48: #{residual_block_nhwc.2} parent=5 // pred_fallthru
      _
  $region6: #{residual_block_nhwc.2} parent=0 // loop_footer
    %s16 = sadd.s32 1, %s12
  $region7: #{residual_block_nhwc.2} parent=0 // loop_footer_branch
    %11 = sbr.rel target = $region3
  $region8: #{residual_block_nhwc.2} parent=0 // loop_exit
    _

</llo_original>
